<compile_context>
chip_gen: v7x
topology: tpu7x:2x2x1
jax: 0.10.0
libtpu: 0.0.40
codegen_flags: <defaults>
</compile_context>

<pallas_src>
import functools

import jax
import jax.numpy as jnp
from jax.experimental import pallas as pl
from jax.experimental.pallas import tpu as pltpu

LANE = 128
_BF16 = jnp.bfloat16


def _round_up(x, m):
    return (x + m - 1) // m * m


def _largest_divisor_leq(n, cap):
    cap = max(1, min(n, cap))
    for d in range(cap, 0, -1):
        if n % d == 0:
            return d
    return 1


def _vmem_budget():
    """(scoped vmem limit, per-step footprint budget) for this TPU generation."""
    cap = 64 << 20  # conservative default (v7x per-TC)
    try:
        info = pltpu.get_tpu_info()
        for attr in ("vmem_capacity_bytes", "vmem_bytes", "vmem_size_bytes"):
            v = getattr(info, attr, None)
            if v:
                cap = int(v)
                break
    except Exception:
        pass
    if cap >= (96 << 20):           # v5e / v6e: 128 MiB physical VMEM
        return 96 << 20, 28 << 20
    return 40 << 20, 12 << 20       # v7x: 64 MiB physical VMEM


# ----------------------------------------------------------------------------
# Kernel 1: ConvTranspose2d with kernel_size=2, stride=2 (no overlap).
#   out[n, 2i+di, 2j+dj, o] = b[o] + sum_c x[n,i,j,c] * W[c,o,di,dj]
# One matmul per di; the (dj, o) pair is packed on the lane axis so the
# sub-pixel scatter becomes a free (flat-order-preserving) reshape.
# ----------------------------------------------------------------------------
def _deconv2x2_kernel(x_ref, w_ref, b_ref, o_ref):
    # x_ref : (tR, W, Cp)  bf16      w_ref : (2, Cp, 2*Cop) bf16
    # b_ref : (1, 2*Cop)   f32       o_ref : (tR, 2, W, 2*Cop) bf16
    tR, W, Cp = x_ref.shape
    x = x_ref[...].reshape(tR * W, Cp)
    for di in range(2):
        y = jnp.dot(x, w_ref[di], preferred_element_type=jnp.float32)
        y = y + b_ref[0]
        o_ref[:, di, :, :] = y.reshape(tR, W, -1).astype(o_ref.dtype)


def conv_transpose_2x2(x_nhwc, w, b, *, tile_rows=None):
    """ConvTranspose2d(k=2, s=2).

    x_nhwc : (N, H, W, Cp) bf16, channels already padded to a multiple of 128.
    w      : torch layout (Cin, Cout, 2, 2) f32;  b : (Cout,) f32.
    Returns (N, 2H, 2W, Cop) bf16, Cop = round_up(Cout, 128); channels >= Cout
    are exactly zero.
    """
    N, H, W, Cp = x_nhwc.shape
    Cin, Cout = w.shape[0], w.shape[1]
    Cop = _round_up(Cout, LANE)
    vmem_limit, budget = _vmem_budget()

    # w_p[di, c, dj*Cop + o] = w[c, o, di, dj]
    wt = jnp.transpose(w, (2, 0, 3, 1))                        # (di, c, dj, o)
    wt = jnp.pad(wt, ((0, 0), (0, Cp - Cin), (0, 0), (0, Cop - Cout)))
    w_p = wt.reshape(2, Cp, 2 * Cop).astype(_BF16)
    b_p = jnp.pad(b, (0, Cop - Cout))
    b_p = jnp.concatenate([b_p, b_p]).reshape(1, 2 * Cop).astype(jnp.float32)

    rows = N * H
    x3 = x_nhwc.reshape(rows, W, Cp)                           # free reshape

    if tile_rows is None:
        # Per-row footprint: double-buffered input block, double-buffered
        # output block, and the per-di f32 matmul intermediate.
        per_row = 2 * (W * Cp * 2) + 2 * (2 * W * 2 * Cop * 2) + (W * 2 * Cop * 4)
        fixed = 2 * (2 * Cp * 2 * Cop * 2) + 4 * 2 * Cop       # weights (dbl-buf) + bias
        cap_rows = max(1, (budget - fixed) // per_row)
        tile_rows = _largest_divisor_leq(rows, cap_rows)
        # keep >= 2 grid steps so both v7x TensorCores get work
        if rows // tile_rows < 2 and rows >= 2:
            tile_rows = _largest_divisor_leq(rows, max(1, rows // 2))
    tR = tile_rows
    assert rows % tR == 0, (rows, tR)

    out = pl.pallas_call(
        _deconv2x2_kernel,
        out_shape=jax.ShapeDtypeStruct((rows, 2, W, 2 * Cop), _BF16),
        grid=(rows // tR,),
        in_specs=[
            pl.BlockSpec((tR, W, Cp), lambda r: (r, 0, 0)),
            pl.BlockSpec((2, Cp, 2 * Cop), lambda r: (0, 0, 0)),
            pl.BlockSpec((1, 2 * Cop), lambda r: (0, 0)),
        ],
        out_specs=pl.BlockSpec((tR, 2, W, 2 * Cop), lambda r: (r, 0, 0, 0)),
        compiler_params=pltpu.CompilerParams(
            dimension_semantics=("parallel",),
            vmem_limit_bytes=vmem_limit),
    )(x3, w_p, b_p)

    # (N*H, 2, W, 2*Cop) -> (N, 2H, 2W, Cop) is flat-order preserving => free.
    return out.reshape(N, 2 * H, 2 * W, Cop)


# ----------------------------------------------------------------------------
# Kernel 2: fused 3x3 conv (pad=1) + folded BatchNorm + ReLU.
# Row-tiled grid (N, H//tH); the row halo comes from two extra single-row
# operands assembled into a bf16 VMEM scratch with aligned whole-plane stores;
# the 3x3 stencil is 9 accumulated MXU dots against a (9, Cp, Cop) weight slab.
# ----------------------------------------------------------------------------
def _conv3x3_bn_relu_kernel(prev_ref, x_ref, next_ref, w_ref, scale_ref,
                            shift_ref, o_ref, xloc):
    # prev_ref/next_ref : (1, 1, W, Cp) bf16   x_ref : (1, tH, W, Cp) bf16
    # w_ref  : (9, Cp, Cop) bf16               scale/shift : (1, Cop) f32
    # o_ref  : (1, tH, W, Cop) bf16            xloc : (tH+2, W, Cp) bf16 scratch
    _, tH, W, Cp = x_ref.shape
    Cop = o_ref.shape[-1]
    r = pl.program_id(1)
    R = pl.num_programs(1)

    # ---- assemble the row-extended tile (whole-plane, aligned stores only)
    xloc[1:tH + 1] = x_ref[0]

    @pl.when(r == 0)
    def _():
        xloc[0:1] = jnp.zeros((1, W, Cp), xloc.dtype)

    @pl.when(r > 0)
    def _():
        xloc[0:1] = prev_ref[0]

    @pl.when(r == R - 1)
    def _():
        xloc[tH + 1:tH + 2] = jnp.zeros((1, W, Cp), xloc.dtype)

    @pl.when(r < R - 1)
    def _():
        xloc[tH + 1:tH + 2] = next_ref[0]

    # ---- 3x3 stencil as 9 accumulated MXU dots (f32 accumulator).
    xt = xloc[...]                                     # (tH+2, W, Cp) bf16
    zc = jnp.zeros((tH + 2, 1, Cp), xt.dtype)
    acc = jnp.zeros((tH * W, Cop), jnp.float32)
    for dj in range(3):
        if dj == 0:      # left neighbour column (zero pad on the left)
            xs = jnp.concatenate([zc, xt[:, :W - 1, :]], axis=1)
        elif dj == 1:    # centre column
            xs = xt
        else:            # right neighbour column (zero pad on the right)
            xs = jnp.concatenate([xt[:, 1:, :], zc], axis=1)
        for di in range(3):
            tap = xs[di:di + tH].reshape(tH * W, Cp)
            acc = acc + jnp.dot(tap, w_ref[dj * 3 + di],
                                preferred_element_type=jnp.float32)

    # ---- folded BatchNorm + ReLU epilogue (f32)
    y = jnp.maximum(acc * scale_ref[0] + shift_ref[0], 0.0)
    o_ref[0] = y.reshape(tH, W, Cop).astype(o_ref.dtype)


def conv3x3_bn_relu(x_nhwc, w, b, gamma, beta, mean, var, *,
                    eps=1e-5, tile_rows=None):
    """Fused Conv2d(3x3, pad=1) + BatchNorm2d (inference) + ReLU.

    x_nhwc : (N, H, W, Cp) bf16, channels padded to a multiple of 128.
    w      : torch layout (Cout, Cin, 3, 3) f32.
    Returns (N, H, W, Cop) bf16; channels >= Cout are exactly zero.
    """
    N, H, W, Cp = x_nhwc.shape
    Cout, Cin = w.shape[0], w.shape[1]
    Cop = _round_up(Cout, LANE)
    vmem_limit, budget = _vmem_budget()

    # w_p[dj*3 + di, c, o] = w[o, c, di, dj]   (matches kernel tap order)
    wt = jnp.transpose(w, (3, 2, 1, 0))                        # (dj, di, c, o)
    wt = jnp.pad(wt, ((0, 0), (0, 0), (0, Cp - Cin), (0, Cop - Cout)))
    w_p = wt.reshape(9, Cp, Cop).astype(_BF16)

    scale = gamma / jnp.sqrt(var + eps)                        # fold BN
    shift = scale * (b - mean) + beta                          # fold conv bias
    scale = jnp.pad(scale, (0, Cop - Cout)).reshape(1, Cop).astype(jnp.float32)
    shift = jnp.pad(shift, (0, Cop - Cout)).reshape(1, Cop).astype(jnp.float32)

    if tile_rows is None:
        # Per-row footprint: double-buffered x block, double-buffered output
        # block, bf16 scratch, live shifted copies (~2x), f32 accumulator.
        per_row = (2 * (W * Cp * 2)            # x block, double-buffered
                   + 2 * (W * Cop * 2)         # out block, double-buffered
                   + W * Cp * 2                # xloc scratch
                   + 2 * (W * Cp * 2)          # xt + one shifted copy live
                   + W * Cop * 4)              # f32 accumulator
        fixed = (2 * (9 * Cp * Cop * 2)        # weight slab, double-buffered
                 + 2 * 2 * (W * Cp * 2)        # prev/next halo blocks, dbl-buf
                 + 2 * (W * Cp * 2))           # scratch halo rows
        cap_rows = max(1, (budget - fixed) // per_row)
        tile_rows = _largest_divisor_leq(H, cap_rows)
        # keep >= 2 parallel grid steps so both v7x TensorCores get work
        if N * (H // tile_rows) < 2 and H >= 2:
            tile_rows = _largest_divisor_leq(H, max(1, H // 2))
    tH = tile_rows
    assert H % tH == 0, (H, tH)
    R = H // tH

    def prev_map(n, r):
        return (n, jnp.maximum(r * tH - 1, 0), 0, 0)

    def next_map(n, r):
        return (n, jnp.minimum(r * tH + tH, H - 1), 0, 0)

    out = pl.pallas_call(
        _conv3x3_bn_relu_kernel,
        out_shape=jax.ShapeDtypeStruct((N, H, W, Cop), _BF16),
        grid=(N, R),
        in_specs=[
            pl.BlockSpec((1, 1, W, Cp), prev_map),              # halo row above
            pl.BlockSpec((1, tH, W, Cp), lambda n, r: (n, r, 0, 0)),
            pl.BlockSpec((1, 1, W, Cp), next_map),              # halo row below
            pl.BlockSpec((9, Cp, Cop), lambda n, r: (0, 0, 0)),  # weights resident
            pl.BlockSpec((1, Cop), lambda n, r: (0, 0)),
            pl.BlockSpec((1, Cop), lambda n, r: (0, 0)),
        ],
        out_specs=pl.BlockSpec((1, tH, W, Cop), lambda n, r: (n, r, 0, 0)),
        scratch_shapes=[pltpu.VMEM((tH + 2, W, Cp), _BF16)],
        compiler_params=pltpu.CompilerParams(
            dimension_semantics=("parallel", "parallel"),
            vmem_limit_bytes=vmem_limit),
    )(x_nhwc, x_nhwc, x_nhwc, w_p, scale, shift)
    return out


# ----------------------------------------------------------------------------
# Parameter init (deterministic, synthetic) and forward pass.
# ----------------------------------------------------------------------------
def _init_conv_layer(key, cin, cout):
    kw, kb, kg, kbeta = jax.random.split(key, 4)
    return dict(
        w=0.1 * jax.random.normal(kw, (cout, cin, 3, 3), jnp.float32),
        b=0.1 * jax.random.normal(kb, (cout,), jnp.float32),
        gamma=1.0 + 0.1 * jax.random.normal(kg, (cout,), jnp.float32),
        beta=0.1 * jax.random.normal(kbeta, (cout,), jnp.float32),
        mean=jnp.zeros((cout,), jnp.float32),
        var=jnp.ones((cout,), jnp.float32),
    )


def init_decoder_block(key, in_channels, out_channels, num_conv_layers):
    assert num_conv_layers >= 2, "num_conv_layers must be >= 2"
    mid = in_channels // 2
    k_dw, k_db, k_first, k_mid, k_last = jax.random.split(key, 5)
    params = dict(
        deconv_w=0.1 * jax.random.normal(
            k_dw, (in_channels, in_channels, 2, 2), jnp.float32),
        deconv_b=0.1 * jax.random.normal(k_db, (in_channels,), jnp.float32),
    )
    convs = [_init_conv_layer(k_first, in_channels, mid)]
    # torch's `[conv, bn, relu] * (n-2)` repeats the SAME modules -> shared params
    shared_mid = _init_conv_layer(k_mid, mid, mid)
    convs += [shared_mid] * (num_conv_layers - 2)
    convs += [_init_conv_layer(k_last, mid, out_channels)]
    params["convs"] = convs
    return params


def decoder_block_forward(params, x_nchw, *, conv_tile_rows=None):
    N, Cin, H, W = x_nchw.shape
    Cp = _round_up(Cin, LANE)
    x = jnp.transpose(x_nchw, (0, 2, 3, 1))                    # NCHW -> NHWC
    x = jnp.pad(x, ((0, 0), (0, 0), (0, 0), (0, Cp - Cin)))    # lane-dense ch
    x = x.astype(_BF16)

    x = conv_transpose_2x2(x, params["deconv_w"], params["deconv_b"])
    for layer in params["convs"]:
        x = conv3x3_bn_relu(x, layer["w"], layer["b"], layer["gamma"],
                            layer["beta"], layer["mean"], layer["var"],
                            tile_rows=conv_tile_rows)
    out_channels = params["convs"][-1]["w"].shape[0]
    x = x[..., :out_channels].astype(jnp.float32)
    return jnp.transpose(x, (0, 3, 1, 2))                      # NHWC -> NCHW


# ----------------------------------------------------------------------------
# Pure-JAX f32 reference (for correctness checking only).
# ----------------------------------------------------------------------------
def reference_forward(params, x_nchw, eps=1e-5):
    x = jnp.transpose(x_nchw, (0, 2, 3, 1)).astype(jnp.float32)
    w, b = params["deconv_w"], params["deconv_b"]
    t = jnp.einsum("nijc,copq->nipjqo", x, w, precision="highest")
    N, H, _, W, _, Co = t.shape
    y = t.reshape(N, 2 * H, 2 * W, Co) + b
    for layer in params["convs"]:
        wt = jnp.transpose(layer["w"], (2, 3, 1, 0))           # HWIO
        y = jax.lax.conv_general_dilated(
            y, wt, window_strides=(1, 1), padding="SAME",
            dimension_numbers=("NHWC", "HWIO", "NHWC"),
            precision=jax.lax.Precision.HIGHEST) + layer["b"]
        scale = layer["gamma"] / jnp.sqrt(layer["var"] + eps)
        y = scale * (y - layer["mean"]) + layer["beta"]
        y = jnp.maximum(y, 0.0)
    return jnp.transpose(y, (0, 3, 1, 2))


if __name__ == "__main__":
    key = jax.random.PRNGKey(0)
    kx, kp = jax.random.split(key)

    in_channels, out_channels, num_conv_layers = 8, 8, 3
    N, H, W = 2, 16, 16

    x = jax.random.normal(kx, (N, in_channels, H, W), jnp.float32)
    params = init_decoder_block(kp, in_channels, out_channels, num_conv_layers)

    # conv layers run at 32x32; tile_rows=8 -> 4 row tiles per image so the
    # halo (prev/next) and edge-zero paths are all exercised.
    fwd = jax.jit(functools.partial(decoder_block_forward, conv_tile_rows=8))
    y = jax.block_until_ready(fwd(params, x))

    assert y.shape == (N, out_channels, 2 * H, 2 * W), y.shape
    assert bool(jnp.all(y >= 0.0))                             # final ReLU

    y_ref = reference_forward(params, x)
    err = float(jnp.max(jnp.abs(y - y_ref)))
    assert err < 0.1, f"max abs error vs f32 reference too large: {err}"

    # also run the default (heuristic) tiling path once
    y2 = jax.block_until_ready(jax.jit(decoder_block_forward)(params, x))
    err2 = float(jnp.max(jnp.abs(y2 - y_ref)))
    assert err2 < 0.1, f"heuristic-tiling error too large: {err2}"

    print("KERNEL_OK")
</pallas_src>

<mosaic_0001>
module attributes {stable_mosaic.version = 11 : i64} {
  func.func @_conv3x3_bn_relu_kernel(%arg0: i32, %arg1: i32, %arg2: memref<1x1x32x128xbf16, #tpu.memory_space<vmem>>, %arg3: memref<1x8x32x128xbf16, #tpu.memory_space<vmem>>, %arg4: memref<1x1x32x128xbf16, #tpu.memory_space<vmem>>, %arg5: memref<9x128x128xbf16, #tpu.memory_space<vmem>>, %arg6: memref<1x128xf32, #tpu.memory_space<vmem>>, %arg7: memref<1x128xf32, #tpu.memory_space<vmem>>, %arg8: memref<1x8x32x128xbf16, #tpu.memory_space<vmem>>, %arg9: memref<10x32x128xbf16, #tpu.memory_space<vmem>>) attributes {dimension_semantics = [#tpu.dimension_semantics<parallel>, #tpu.dimension_semantics<parallel>], iteration_bounds = array<i64: 2, 4>, scalar_prefetch = 0 : i64, scratch_operands = 1 : i64, tpu.core_type = #tpu.core_type<tc>, window_params = [{transform_indices = @transform_0, window_bounds = array<i64: 1, 1, 32, 128>}, {transform_indices = @transform_1, window_bounds = array<i64: 1, 8, 32, 128>}, {transform_indices = @transform_2, window_bounds = array<i64: 1, 1, 32, 128>}, {pipeline_mode = #tpu.pipeline_mode<synchronous>, transform_indices = @transform_3, window_bounds = array<i64: 9, 128, 128>}, {pipeline_mode = #tpu.pipeline_mode<synchronous>, transform_indices = @transform_4, window_bounds = array<i64: 1, 128>}, {pipeline_mode = #tpu.pipeline_mode<synchronous>, transform_indices = @transform_5, window_bounds = array<i64: 1, 128>}, {transform_indices = @transform_6, window_bounds = array<i64: 1, 8, 32, 128>}]} {
    %c0 = arith.constant 0 : index
    %c0_0 = arith.constant 0 : index
    %c0_1 = arith.constant 0 : index
    %c0_2 = arith.constant 0 : index
    %0 = vector.load %arg3[%c0, %c0_0, %c0_1, %c0_2] : memref<1x8x32x128xbf16, #tpu.memory_space<vmem>>, vector<1x8x32x128xbf16>
    %1 = vector.shape_cast %0 : vector<1x8x32x128xbf16> to vector<8x32x128xbf16>
    %c1 = arith.constant 1 : index
    %c0_3 = arith.constant 0 : index
    %c0_4 = arith.constant 0 : index
    %2 = vector.load %arg9[%c1, %c0_3, %c0_4] : memref<10x32x128xbf16, #tpu.memory_space<vmem>>, vector<8x32x128xbf16>
    tpu.vector_store %arg9[%c1, %c0_3, %c0_4], %1 {strides = array<i32>} : memref<10x32x128xbf16, #tpu.memory_space<vmem>>, vector<8x32x128xbf16>,
    %c0_i32 = arith.constant 0 : i32
    %3 = arith.cmpi eq, %arg1, %c0_i32 : i32
    %4 = arith.extui %3 : i1 to i32
    %c0_i32_5 = arith.constant 0 : i32
    %5 = arith.cmpi ne, %4, %c0_i32_5 : i32
    scf.if %5 {
      %cst_53 = arith.constant 0.000000e+00 : bf16
      %93 = vector.broadcast %cst_53 : bf16 to vector<1x32x128xbf16>
      %c0_54 = arith.constant 0 : index
      %c0_55 = arith.constant 0 : index
      %c0_56 = arith.constant 0 : index
      %94 = vector.load %arg9[%c0_54, %c0_55, %c0_56] : memref<10x32x128xbf16, #tpu.memory_space<vmem>>, vector<1x32x128xbf16>
      tpu.vector_store %arg9[%c0_54, %c0_55, %c0_56], %93 {strides = array<i32>} : memref<10x32x128xbf16, #tpu.memory_space<vmem>>, vector<1x32x128xbf16>,
    } else {
    }
    %c0_i32_6 = arith.constant 0 : i32
    %6 = arith.cmpi sgt, %arg1, %c0_i32_6 : i32
    %7 = arith.extui %6 : i1 to i32
    %c0_i32_7 = arith.constant 0 : i32
    %8 = arith.cmpi ne, %7, %c0_i32_7 : i32
    scf.if %8 {
      %c0_53 = arith.constant 0 : index
      %c0_54 = arith.constant 0 : index
      %c0_55 = arith.constant 0 : index
      %c0_56 = arith.constant 0 : index
      %93 = vector.load %arg2[%c0_53, %c0_54, %c0_55, %c0_56] : memref<1x1x32x128xbf16, #tpu.memory_space<vmem>>, vector<1x1x32x128xbf16>
      %94 = vector.shape_cast %93 : vector<1x1x32x128xbf16> to vector<1x32x128xbf16>
      %c0_57 = arith.constant 0 : index
      %c0_58 = arith.constant 0 : index
      %c0_59 = arith.constant 0 : index
      %95 = vector.load %arg9[%c0_57, %c0_58, %c0_59] : memref<10x32x128xbf16, #tpu.memory_space<vmem>>, vector<1x32x128xbf16>
      tpu.vector_store %arg9[%c0_57, %c0_58, %c0_59], %94 {strides = array<i32>} : memref<10x32x128xbf16, #tpu.memory_space<vmem>>, vector<1x32x128xbf16>,
    } else {
    }
    %c3_i32 = arith.constant 3 : i32
    %9 = arith.cmpi eq, %arg1, %c3_i32 : i32
    %10 = arith.extui %9 : i1 to i32
    %c0_i32_8 = arith.constant 0 : i32
    %11 = arith.cmpi ne, %10, %c0_i32_8 : i32
    scf.if %11 {
      %cst_53 = arith.constant 0.000000e+00 : bf16
      %93 = vector.broadcast %cst_53 : bf16 to vector<1x32x128xbf16>
      %c9 = arith.constant 9 : index
      %c0_54 = arith.constant 0 : index
      %c0_55 = arith.constant 0 : index
      %94 = vector.load %arg9[%c9, %c0_54, %c0_55] : memref<10x32x128xbf16, #tpu.memory_space<vmem>>, vector<1x32x128xbf16>
      tpu.vector_store %arg9[%c9, %c0_54, %c0_55], %93 {strides = array<i32>} : memref<10x32x128xbf16, #tpu.memory_space<vmem>>, vector<1x32x128xbf16>,
    } else {
    }
    %c3_i32_9 = arith.constant 3 : i32
    %12 = arith.cmpi slt, %arg1, %c3_i32_9 : i32
    %13 = arith.extui %12 : i1 to i32
    %c0_i32_10 = arith.constant 0 : i32
    %14 = arith.cmpi ne, %13, %c0_i32_10 : i32
    scf.if %14 {
      %c0_53 = arith.constant 0 : index
      %c0_54 = arith.constant 0 : index
      %c0_55 = arith.constant 0 : index
      %c0_56 = arith.constant 0 : index
      %93 = vector.load %arg4[%c0_53, %c0_54, %c0_55, %c0_56] : memref<1x1x32x128xbf16, #tpu.memory_space<vmem>>, vector<1x1x32x128xbf16>
      %94 = vector.shape_cast %93 : vector<1x1x32x128xbf16> to vector<1x32x128xbf16>
      %c9 = arith.constant 9 : index
      %c0_57 = arith.constant 0 : index
      %c0_58 = arith.constant 0 : index
      %95 = vector.load %arg9[%c9, %c0_57, %c0_58] : memref<10x32x128xbf16, #tpu.memory_space<vmem>>, vector<1x32x128xbf16>
      tpu.vector_store %arg9[%c9, %c0_57, %c0_58], %94 {strides = array<i32>} : memref<10x32x128xbf16, #tpu.memory_space<vmem>>, vector<1x32x128xbf16>,
    } else {
    }
    %c0_11 = arith.constant 0 : index
    %c0_12 = arith.constant 0 : index
    %c0_13 = arith.constant 0 : index
    %15 = vector.load %arg9[%c0_11, %c0_12, %c0_13] : memref<10x32x128xbf16, #tpu.memory_space<vmem>>, vector<10x32x128xbf16>
    %cst = arith.constant 0.000000e+00 : bf16
    %16 = vector.broadcast %cst : bf16 to vector<10x1x128xbf16>
    %cst_14 = arith.constant 0.000000e+00 : f32
    %17 = vector.broadcast %cst_14 : f32 to vector<256x128xf32>
    %18 = vector.extract_strided_slice %15 {offsets = [0, 0, 0], sizes = [10, 31, 128], strides = [1, 1, 1]} : vector<10x32x128xbf16> to vector<10x31x128xbf16>
    %19 = tpu.concatenate %16, %18 in 1 : vector<10x1x128xbf16>, vector<10x31x128xbf16> -> vector<10x32x128xbf16>
    %20 = vector.extract_strided_slice %19 {offsets = [0, 0, 0], sizes = [8, 32, 128], strides = [1, 1, 1]} : vector<10x32x128xbf16> to vector<8x32x128xbf16>
    %21 = vector.shape_cast %20 : vector<8x32x128xbf16> to vector<256x128xbf16>
    %c0_15 = arith.constant 0 : index
    %c0_16 = arith.constant 0 : index
    %c0_17 = arith.constant 0 : index
    %22 = vector.load %arg5[%c0_15, %c0_16, %c0_17] : memref<9x128x128xbf16, #tpu.memory_space<vmem>>, vector<1x128x128xbf16>
    %23 = vector.shape_cast %22 : vector<1x128x128xbf16> to vector<128x128xbf16>
    %cst_18 = arith.constant dense<0.000000e+00> : vector<256x128xf32>
    %24 = tpu.matmul %21, %23, %cst_18 {dimension_numbers = #tpu.dot_dimension_numbers<[1], [0], [0], [1], [0, 0, 1, 1], [], []>} : vector<256x128xbf16>, vector<128x128xbf16>, vector<256x128xf32> -> vector<256x128xf32>
    %25 = arith.addf %17, %24 : vector<256x128xf32>
    %26 = vector.extract_strided_slice %19 {offsets = [1, 0, 0], sizes = [8, 32, 128], strides = [1, 1, 1]} : vector<10x32x128xbf16> to vector<8x32x128xbf16>
    %27 = vector.shape_cast %26 : vector<8x32x128xbf16> to vector<256x128xbf16>
    %c1_19 = arith.constant 1 : index
    %c0_20 = arith.constant 0 : index
    %c0_21 = arith.constant 0 : index
    %28 = vector.load %arg5[%c1_19, %c0_20, %c0_21] : memref<9x128x128xbf16, #tpu.memory_space<vmem>>, vector<1x128x128xbf16>
    %29 = vector.shape_cast %28 : vector<1x128x128xbf16> to vector<128x128xbf16>
    %cst_22 = arith.constant dense<0.000000e+00> : vector<256x128xf32>
    %30 = tpu.matmul %27, %29, %cst_22 {dimension_numbers = #tpu.dot_dimension_numbers<[1], [0], [0], [1], [0, 0, 1, 1], [], []>} : vector<256x128xbf16>, vector<128x128xbf16>, vector<256x128xf32> -> vector<256x128xf32>
    %31 = arith.addf %25, %30 : vector<256x128xf32>
    %32 = vector.extract_strided_slice %19 {offsets = [2, 0, 0], sizes = [8, 32, 128], strides = [1, 1, 1]} : vector<10x32x128xbf16> to vector<8x32x128xbf16>
    %33 = vector.shape_cast %32 : vector<8x32x128xbf16> to vector<256x128xbf16>
    %c2 = arith.constant 2 : index
    %c0_23 = arith.constant 0 : index
    %c0_24 = arith.constant 0 : index
    %34 = vector.load %arg5[%c2, %c0_23, %c0_24] : memref<9x128x128xbf16, #tpu.memory_space<vmem>>, vector<1x128x128xbf16>
    %35 = vector.shape_cast %34 : vector<1x128x128xbf16> to vector<128x128xbf16>
    %cst_25 = arith.constant dense<0.000000e+00> : vector<256x128xf32>
    %36 = tpu.matmul %33, %35, %cst_25 {dimension_numbers = #tpu.dot_dimension_numbers<[1], [0], [0], [1], [0, 0, 1, 1], [], []>} : vector<256x128xbf16>, vector<128x128xbf16>, vector<256x128xf32> -> vector<256x128xf32>
    %37 = arith.addf %31, %36 : vector<256x128xf32>
    %38 = vector.extract_strided_slice %15 {offsets = [0, 0, 0], sizes = [8, 32, 128], strides = [1, 1, 1]} : vector<10x32x128xbf16> to vector<8x32x128xbf16>
    %39 = vector.shape_cast %38 : vector<8x32x128xbf16> to vector<256x128xbf16>
    %c3 = arith.constant 3 : index
    %c0_26 = arith.constant 0 : index
    %c0_27 = arith.constant 0 : index
    %40 = vector.load %arg5[%c3, %c0_26, %c0_27] : memref<9x128x128xbf16, #tpu.memory_space<vmem>>, vector<1x128x128xbf16>
    %41 = vector.shape_cast %40 : vector<1x128x128xbf16> to vector<128x128xbf16>
    %cst_28 = arith.constant dense<0.000000e+00> : vector<256x128xf32>
    %42 = tpu.matmul %39, %41, %cst_28 {dimension_numbers = #tpu.dot_dimension_numbers<[1], [0], [0], [1], [0, 0, 1, 1], [], []>} : vector<256x128xbf16>, vector<128x128xbf16>, vector<256x128xf32> -> vector<256x128xf32>
    %43 = arith.addf %37, %42 : vector<256x128xf32>
    %44 = vector.extract_strided_slice %15 {offsets = [1, 0, 0], sizes = [8, 32, 128], strides = [1, 1, 1]} : vector<10x32x128xbf16> to vector<8x32x128xbf16>
    %45 = vector.shape_cast %44 : vector<8x32x128xbf16> to vector<256x128xbf16>
    %c4 = arith.constant 4 : index
    %c0_29 = arith.constant 0 : index
    %c0_30 = arith.constant 0 : index
    %46 = vector.load %arg5[%c4, %c0_29, %c0_30] : memref<9x128x128xbf16, #tpu.memory_space<vmem>>, vector<1x128x128xbf16>
    %47 = vector.shape_cast %46 : vector<1x128x128xbf16> to vector<128x128xbf16>
    %cst_31 = arith.constant dense<0.000000e+00> : vector<256x128xf32>
    %48 = tpu.matmul %45, %47, %cst_31 {dimension_numbers = #tpu.dot_dimension_numbers<[1], [0], [0], [1], [0, 0, 1, 1], [], []>} : vector<256x128xbf16>, vector<128x128xbf16>, vector<256x128xf32> -> vector<256x128xf32>
    %49 = arith.addf %43, %48 : vector<256x128xf32>
    %50 = vector.extract_strided_slice %15 {offsets = [2, 0, 0], sizes = [8, 32, 128], strides = [1, 1, 1]} : vector<10x32x128xbf16> to vector<8x32x128xbf16>
    %51 = vector.shape_cast %50 : vector<8x32x128xbf16> to vector<256x128xbf16>
    %c5 = arith.constant 5 : index
    %c0_32 = arith.constant 0 : index
    %c0_33 = arith.constant 0 : index
    %52 = vector.load %arg5[%c5, %c0_32, %c0_33] : memref<9x128x128xbf16, #tpu.memory_space<vmem>>, vector<1x128x128xbf16>
    %53 = vector.shape_cast %52 : vector<1x128x128xbf16> to vector<128x128xbf16>
    %cst_34 = arith.constant dense<0.000000e+00> : vector<256x128xf32>
    %54 = tpu.matmul %51, %53, %cst_34 {dimension_numbers = #tpu.dot_dimension_numbers<[1], [0], [0], [1], [0, 0, 1, 1], [], []>} : vector<256x128xbf16>, vector<128x128xbf16>, vector<256x128xf32> -> vector<256x128xf32>
    %55 = arith.addf %49, %54 : vector<256x128xf32>
    %56 = vector.extract_strided_slice %15 {offsets = [0, 1, 0], sizes = [10, 31, 128], strides = [1, 1, 1]} : vector<10x32x128xbf16> to vector<10x31x128xbf16>
    %57 = tpu.concatenate %56, %16 in 1 : vector<10x31x128xbf16>, vector<10x1x128xbf16> -> vector<10x32x128xbf16>
    %58 = vector.extract_strided_slice %57 {offsets = [0, 0, 0], sizes = [8, 32, 128], strides = [1, 1, 1]} : vector<10x32x128xbf16> to vector<8x32x128xbf16>
    %59 = vector.shape_cast %58 : vector<8x32x128xbf16> to vector<256x128xbf16>
    %c6 = arith.constant 6 : index
    %c0_35 = arith.constant 0 : index
    %c0_36 = arith.constant 0 : index
    %60 = vector.load %arg5[%c6, %c0_35, %c0_36] : memref<9x128x128xbf16, #tpu.memory_space<vmem>>, vector<1x128x128xbf16>
    %61 = vector.shape_cast %60 : vector<1x128x128xbf16> to vector<128x128xbf16>
    %cst_37 = arith.constant dense<0.000000e+00> : vector<256x128xf32>
    %62 = tpu.matmul %59, %61, %cst_37 {dimension_numbers = #tpu.dot_dimension_numbers<[1], [0], [0], [1], [0, 0, 1, 1], [], []>} : vector<256x128xbf16>, vector<128x128xbf16>, vector<256x128xf32> -> vector<256x128xf32>
    %63 = arith.addf %55, %62 : vector<256x128xf32>
    %64 = vector.extract_strided_slice %57 {offsets = [1, 0, 0], sizes = [8, 32, 128], strides = [1, 1, 1]} : vector<10x32x128xbf16> to vector<8x32x128xbf16>
    %65 = vector.shape_cast %64 : vector<8x32x128xbf16> to vector<256x128xbf16>
    %c7 = arith.constant 7 : index
    %c0_38 = arith.constant 0 : index
    %c0_39 = arith.constant 0 : index
    %66 = vector.load %arg5[%c7, %c0_38, %c0_39] : memref<9x128x128xbf16, #tpu.memory_space<vmem>>, vector<1x128x128xbf16>
    %67 = vector.shape_cast %66 : vector<1x128x128xbf16> to vector<128x128xbf16>
    %cst_40 = arith.constant dense<0.000000e+00> : vector<256x128xf32>
    %68 = tpu.matmul %65, %67, %cst_40 {dimension_numbers = #tpu.dot_dimension_numbers<[1], [0], [0], [1], [0, 0, 1, 1], [], []>} : vector<256x128xbf16>, vector<128x128xbf16>, vector<256x128xf32> -> vector<256x128xf32>
    %69 = arith.addf %63, %68 : vector<256x128xf32>
    %70 = vector.extract_strided_slice %57 {offsets = [2, 0, 0], sizes = [8, 32, 128], strides = [1, 1, 1]} : vector<10x32x128xbf16> to vector<8x32x128xbf16>
    %71 = vector.shape_cast %70 : vector<8x32x128xbf16> to vector<256x128xbf16>
    %c8 = arith.constant 8 : index
    %c0_41 = arith.constant 0 : index
    %c0_42 = arith.constant 0 : index
    %72 = vector.load %arg5[%c8, %c0_41, %c0_42] : memref<9x128x128xbf16, #tpu.memory_space<vmem>>, vector<1x128x128xbf16>
    %73 = vector.shape_cast %72 : vector<1x128x128xbf16> to vector<128x128xbf16>
    %cst_43 = arith.constant dense<0.000000e+00> : vector<256x128xf32>
    %74 = tpu.matmul %71, %73, %cst_43 {dimension_numbers = #tpu.dot_dimension_numbers<[1], [0], [0], [1], [0, 0, 1, 1], [], []>} : vector<256x128xbf16>, vector<128x128xbf16>, vector<256x128xf32> -> vector<256x128xf32>
    %75 = arith.addf %69, %74 : vector<256x128xf32>
    %c0_44 = arith.constant 0 : index
    %c0_45 = arith.constant 0 : index
    %76 = vector.load %arg6[%c0_44, %c0_45] : memref<1x128xf32, #tpu.memory_space<vmem>>, vector<1x128xf32>
    %77 = vector.shape_cast %76 : vector<1x128xf32> to vector<128xf32>
    %78 = vector.shape_cast %77 : vector<128xf32> to vector<1x128xf32>
    %79 = vector.broadcast %78 : vector<1x128xf32> to vector<256x128xf32>
    %80 = arith.mulf %75, %79 : vector<256x128xf32>
    %c0_46 = arith.constant 0 : index
    %c0_47 = arith.constant 0 : index
    %81 = vector.load %arg7[%c0_46, %c0_47] : memref<1x128xf32, #tpu.memory_space<vmem>>, vector<1x128xf32>
    %82 = vector.shape_cast %81 : vector<1x128xf32> to vector<128xf32>
    %83 = vector.shape_cast %82 : vector<128xf32> to vector<1x128xf32>
    %84 = vector.broadcast %83 : vector<1x128xf32> to vector<256x128xf32>
    %85 = arith.addf %80, %84 : vector<256x128xf32>
    %cst_48 = arith.constant 0.000000e+00 : f32
    %86 = vector.broadcast %cst_48 : f32 to vector<256x128xf32>
    %87 = arith.maximumf %85, %86 : vector<256x128xf32>
    %88 = vector.shape_cast %87 : vector<256x128xf32> to vector<8x32x128xf32>
    %89 = arith.truncf %88 : vector<8x32x128xf32> to vector<8x32x128xbf16>
    %c0_49 = arith.constant 0 : index
    %c0_50 = arith.constant 0 : index
    %c0_51 = arith.constant 0 : index
    %c0_52 = arith.constant 0 : index
    %90 = vector.load %arg8[%c0_49, %c0_50, %c0_51, %c0_52] : memref<1x8x32x128xbf16, #tpu.memory_space<vmem>>, vector<1x8x32x128xbf16>
    %91 = vector.shape_cast %90 : vector<1x8x32x128xbf16> to vector<8x32x128xbf16>
    %92 = vector.shape_cast %89 : vector<8x32x128xbf16> to vector<1x8x32x128xbf16>
    tpu.vector_store %arg8[%c0_49, %c0_50, %c0_51, %c0_52], %92 {strides = array<i32>} : memref<1x8x32x128xbf16, #tpu.memory_space<vmem>>, vector<1x8x32x128xbf16>,
    return
  }
  func.func @transform_0(%arg0: i32, %arg1: i32) -> (i32, i32, i32, i32) {
    %c8_i32 = arith.constant 8 : i32
    %0 = arith.muli %arg1, %c8_i32 : i32
    %c1_i32 = arith.constant 1 : i32
    %1 = arith.subi %0, %c1_i32 : i32
    %c0_i32 = arith.constant 0 : i32
    %2 = arith.maxsi %1, %c0_i32 : i32
    %c0_i32_0 = arith.constant 0 : i32
    %c0_i32_1 = arith.constant 0 : i32
    %c0_i32_2 = arith.constant 0 : i32
    return %arg0, %2, %c0_i32_0, %c0_i32_1 : i32, i32, i32, i32
  }
  func.func @transform_1(%arg0: i32, %arg1: i32) -> (i32, i32, i32, i32) {
    %c0_i32 = arith.constant 0 : i32
    %c0_i32_0 = arith.constant 0 : i32
    %c0_i32_1 = arith.constant 0 : i32
    return %arg0, %arg1, %c0_i32, %c0_i32_0 : i32, i32, i32, i32
  }
  func.func @transform_2(%arg0: i32, %arg1: i32) -> (i32, i32, i32, i32) {
    %c8_i32 = arith.constant 8 : i32
    %0 = arith.muli %arg1, %c8_i32 : i32
    %c8_i32_0 = arith.constant 8 : i32
    %1 = arith.addi %0, %c8_i32_0 : i32
    %c31_i32 = arith.constant 31 : i32
    %2 = arith.minsi %1, %c31_i32 : i32
    %c0_i32 = arith.constant 0 : i32
    %c0_i32_1 = arith.constant 0 : i32
    %c0_i32_2 = arith.constant 0 : i32
    return %arg0, %2, %c0_i32, %c0_i32_1 : i32, i32, i32, i32
  }
  func.func @transform_3(%arg0: i32, %arg1: i32) -> (i32, i32, i32) {
    %c0_i32 = arith.constant 0 : i32
    %c0_i32_0 = arith.constant 0 : i32
    %c0_i32_1 = arith.constant 0 : i32
    %c0_i32_2 = arith.constant 0 : i32
    return %c0_i32, %c0_i32_0, %c0_i32_1 : i32, i32, i32
  }
  func.func @transform_4(%arg0: i32, %arg1: i32) -> (i32, i32) {
    %c0_i32 = arith.constant 0 : i32
    %c0_i32_0 = arith.constant 0 : i32
    %c0_i32_1 = arith.constant 0 : i32
    return %c0_i32, %c0_i32_0 : i32, i32
  }
  func.func @transform_5(%arg0: i32, %arg1: i32) -> (i32, i32) {
    %c0_i32 = arith.constant 0 : i32
    %c0_i32_0 = arith.constant 0 : i32
    %c0_i32_1 = arith.constant 0 : i32
    return %c0_i32, %c0_i32_0 : i32, i32
  }
  func.func @transform_6(%arg0: i32, %arg1: i32) -> (i32, i32, i32, i32) {
    %c0_i32 = arith.constant 0 : i32
    %c0_i32_0 = arith.constant 0 : i32
    %c0_i32_1 = arith.constant 0 : i32
    return %arg0, %arg1, %c0_i32, %c0_i32_0 : i32, i32, i32, i32
  }
}

module attributes {stable_mosaic.version = 11 : i64} {
  func.func @_deconv2x2_kernel(%arg0: i32, %arg1: memref<16x16x128xbf16, #tpu.memory_space<vmem>>, %arg2: memref<2x128x256xbf16, #tpu.memory_space<vmem>>, %arg3: memref<1x256xf32, #tpu.memory_space<vmem>>, %arg4: memref<16x2x16x256xbf16, #tpu.memory_space<vmem>>) attributes {dimension_semantics = [#tpu.dimension_semantics<parallel>], iteration_bounds = array<i64: 2>, scalar_prefetch = 0 : i64, scratch_operands = 0 : i64, tpu.core_type = #tpu.core_type<tc>, window_params = [{transform_indices = @transform_0, window_bounds = array<i64: 16, 16, 128>}, {pipeline_mode = #tpu.pipeline_mode<synchronous>, transform_indices = @transform_1, window_bounds = array<i64: 2, 128, 256>}, {pipeline_mode = #tpu.pipeline_mode<synchronous>, transform_indices = @transform_2, window_bounds = array<i64: 1, 256>}, {transform_indices = @transform_3, window_bounds = array<i64: 16, 2, 16, 256>}]} {
    %c0 = arith.constant 0 : index
    %c0_0 = arith.constant 0 : index
    %c0_1 = arith.constant 0 : index
    %0 = vector.load %arg1[%c0, %c0_0, %c0_1] : memref<16x16x128xbf16, #tpu.memory_space<vmem>>, vector<16x16x128xbf16>
    %1 = vector.shape_cast %0 : vector<16x16x128xbf16> to vector<256x128xbf16>
    %c0_2 = arith.constant 0 : index
    %c0_3 = arith.constant 0 : index
    %c0_4 = arith.constant 0 : index
    %2 = vector.load %arg2[%c0_2, %c0_3, %c0_4] : memref<2x128x256xbf16, #tpu.memory_space<vmem>>, vector<1x128x256xbf16>
    %3 = vector.shape_cast %2 : vector<1x128x256xbf16> to vector<128x256xbf16>
    %cst = arith.constant dense<0.000000e+00> : vector<256x256xf32>
    %4 = tpu.matmul %1, %3, %cst {dimension_numbers = #tpu.dot_dimension_numbers<[1], [0], [0], [1], [0, 0, 1, 1], [], []>} : vector<256x128xbf16>, vector<128x256xbf16>, vector<256x256xf32> -> vector<256x256xf32>
    %c0_5 = arith.constant 0 : index
    %c0_6 = arith.constant 0 : index
    %5 = vector.load %arg3[%c0_5, %c0_6] : memref<1x256xf32, #tpu.memory_space<vmem>>, vector<1x256xf32>
    %6 = vector.shape_cast %5 : vector<1x256xf32> to vector<256xf32>
    %7 = vector.shape_cast %6 : vector<256xf32> to vector<1x256xf32>
    %8 = vector.broadcast %7 : vector<1x256xf32> to vector<256x256xf32>
    %9 = arith.addf %4, %8 : vector<256x256xf32>
    %10 = vector.shape_cast %9 : vector<256x256xf32> to vector<16x16x256xf32>
    %11 = arith.truncf %10 : vector<16x16x256xf32> to vector<16x16x256xbf16>
    %c0_7 = arith.constant 0 : index
    %c0_8 = arith.constant 0 : index
    %c0_9 = arith.constant 0 : index
    %c0_10 = arith.constant 0 : index
    %12 = vector.load %arg4[%c0_7, %c0_8, %c0_9, %c0_10] : memref<16x2x16x256xbf16, #tpu.memory_space<vmem>>, vector<16x1x16x256xbf16>
    %13 = vector.shape_cast %12 : vector<16x1x16x256xbf16> to vector<16x16x256xbf16>
    %14 = vector.shape_cast %11 : vector<16x16x256xbf16> to vector<16x1x16x256xbf16>
    tpu.vector_store %arg4[%c0_7, %c0_8, %c0_9, %c0_10], %14 {strides = array<i32>} : memref<16x2x16x256xbf16, #tpu.memory_space<vmem>>, vector<16x1x16x256xbf16>,
    %c1 = arith.constant 1 : index
    %c0_11 = arith.constant 0 : index
    %c0_12 = arith.constant 0 : index
    %15 = vector.load %arg2[%c1, %c0_11, %c0_12] : memref<2x128x256xbf16, #tpu.memory_space<vmem>>, vector<1x128x256xbf16>
    %16 = vector.shape_cast %15 : vector<1x128x256xbf16> to vector<128x256xbf16>
    %cst_13 = arith.constant dense<0.000000e+00> : vector<256x256xf32>
    %17 = tpu.matmul %1, %16, %cst_13 {dimension_numbers = #tpu.dot_dimension_numbers<[1], [0], [0], [1], [0, 0, 1, 1], [], []>} : vector<256x128xbf16>, vector<128x256xbf16>, vector<256x256xf32> -> vector<256x256xf32>
    %c0_14 = arith.constant 0 : index
    %c0_15 = arith.constant 0 : index
    %18 = vector.load %arg3[%c0_14, %c0_15] : memref<1x256xf32, #tpu.memory_space<vmem>>, vector<1x256xf32>
    %19 = vector.shape_cast %18 : vector<1x256xf32> to vector<256xf32>
    %20 = vector.shape_cast %19 : vector<256xf32> to vector<1x256xf32>
    %21 = vector.broadcast %20 : vector<1x256xf32> to vector<256x256xf32>
    %22 = arith.addf %17, %21 : vector<256x256xf32>
    %23 = vector.shape_cast %22 : vector<256x256xf32> to vector<16x16x256xf32>
    %24 = arith.truncf %23 : vector<16x16x256xf32> to vector<16x16x256xbf16>
    %c0_16 = arith.constant 0 : index
    %c1_17 = arith.constant 1 : index
    %c0_18 = arith.constant 0 : index
    %c0_19 = arith.constant 0 : index
    %25 = vector.load %arg4[%c0_16, %c1_17, %c0_18, %c0_19] : memref<16x2x16x256xbf16, #tpu.memory_space<vmem>>, vector<16x1x16x256xbf16>
    %26 = vector.shape_cast %25 : vector<16x1x16x256xbf16> to vector<16x16x256xbf16>
    %27 = vector.shape_cast %24 : vector<16x16x256xbf16> to vector<16x1x16x256xbf16>
    tpu.vector_store %arg4[%c0_16, %c1_17, %c0_18, %c0_19], %27 {strides = array<i32>} : memref<16x2x16x256xbf16, #tpu.memory_space<vmem>>, vector<16x1x16x256xbf16>,
    return
  }
  func.func @transform_0(%arg0: i32) -> (i32, i32, i32) {
    %c0_i32 = arith.constant 0 : i32
    %c0_i32_0 = arith.constant 0 : i32
    %c0_i32_1 = arith.constant 0 : i32
    return %arg0, %c0_i32, %c0_i32_0 : i32, i32, i32
  }
  func.func @transform_1(%arg0: i32) -> (i32, i32, i32) {
    %c0_i32 = arith.constant 0 : i32
    %c0_i32_0 = arith.constant 0 : i32
    %c0_i32_1 = arith.constant 0 : i32
    %c0_i32_2 = arith.constant 0 : i32
    return %c0_i32, %c0_i32_0, %c0_i32_1 : i32, i32, i32
  }
  func.func @transform_2(%arg0: i32) -> (i32, i32) {
    %c0_i32 = arith.constant 0 : i32
    %c0_i32_0 = arith.constant 0 : i32
    %c0_i32_1 = arith.constant 0 : i32
    return %c0_i32, %c0_i32_0 : i32, i32
  }
  func.func @transform_3(%arg0: i32) -> (i32, i32, i32, i32) {
    %c0_i32 = arith.constant 0 : i32
    %c0_i32_0 = arith.constant 0 : i32
    %c0_i32_1 = arith.constant 0 : i32
    %c0_i32_2 = arith.constant 0 : i32
    return %arg0, %c0_i32, %c0_i32_0, %c0_i32_1 : i32, i32, i32, i32
  }
}

</mosaic_0001>

<llo_original>
// kernel: decoder_block_forward.4
$region0: #{decoder_block_forward.4}
  #allocation0 [shape = 'u32[]', space=smem, size = 0x4, offset = 0x4, fixed_abs, tag = 'smem constant byte address 0x4 - core index']
  #allocation1 [shape = 'u32[144,128]{1,0:T(1,128)}', space=vmem, size = 0x12000, scoped, tag = 'internal scratch']
  %s0 = inlined_call_operand.vmem [shape: bf16[32,16,128], index: 0, kind: input, shape index: {}]
  %s1 = inlined_call_operand.vmem [shape: bf16[2,128,256], index: 1, kind: input, shape index: {}]
  %s2 = inlined_call_operand.vmem [shape: f32[1,256], index: 2, kind: input, shape index: {}]
  %s3 = inlined_call_operand.vmem [shape: bf16[32,2,16,256], index: 3, kind: output, shape index: {}]
  %s4 = sld [smem:[#allocation0]]
  $region45: #{decoder_block_forward.4} parent=0
    _
  %s6 = ssub.s32 1, %s4
  %s7 = scalar_select 0, %s6, %s4
  loop: start=0, step=1, limit=4
  $region2: #{decoder_block_forward.4} parent=0 // loop_pre_header
    _
  $region3: #{decoder_block_forward.4} parent=0 // loop_header
    %s9 = sphi 0, %s13
    %p10 = scmp.ge.s32.totalorder %s9, 4
    %s19 = sphi 0, %s21
    %s22 = sphi 0, %s19
    %s23 = sphi 0, %s22
    %s39 = sphi 0, %s23
    %s43 = sphi 0, %s43
    %s45 = sphi 0, %s43
    %s46 = sphi 0, %s45
    %s60 = sphi 0, %s46
    %s64 = sphi 0, %s64
    %s66 = sphi 0, %s64
    %s67 = sphi 0, %s66
    %s81 = sphi 0, %s67
    %s87 = sphi 0, %s89
    %s90 = sphi 0, %s87
    %s91 = sphi 0, %s90
    %s107 = sphi 0, %s91
  $region4: #{decoder_block_forward.4} parent=0 // loop_header_branch
    %12 = sbr.rel (%p10) target = $region8
  $region5: #{decoder_block_forward.4} parent=0 // loop_body
    %s14 = ssub.s32 %s9, 1
    %s15 = ssub.s32 %s9, 2
    %s16 = sadd.s32 %s9, 1
    %s17 = ssub.s32 %s9, %s16
    %p18 = scmp.eq.s32.totalorder %s17, 0
    %s20 = sadd.s32 %s19, 1
    %s21 = scalar_select %p18, %s19, %s20
    %p24 = pneg %p18
    %p25 = scmp.eq.s32.totalorder %s9, 1
    %p26 = por %p24, %p25
    %p27 = scmp.ne.s32.totalorder %s19, %s22
    %p28 = scmp.eq.s32.totalorder %s9, 0
    %p29 = por %p27, %p28
    %p30 = scmp.ne.s32.totalorder %s19, %s22
    %p31 = scmp.eq.s32.totalorder %s14, 1
    %p32 = por %p30, %p31
    %p33 = scmp.ne.s32.totalorder %s22, %s23
    %p34 = scmp.eq.s32.totalorder %s14, 0
    %p35 = por %p33, %p34
    %p36 = scmp.ne.s32.totalorder %s22, %s23
    %p37 = scmp.eq.s32.totalorder %s15, 1
    %p38 = por %p36, %p37
    %p40 = scmp.ne.s32.totalorder %s23, %s39
    %p41 = scmp.eq.s32.totalorder %s15, 0
    %p42 = por %p40, %p41
    %s44 = sadd.s32 %s43, 1
    %p47 = scmp.eq.s32.totalorder %s9, 1
    %p48 = scmp.ne.s32.totalorder %s43, %s45
    %p49 = scmp.eq.s32.totalorder %s9, 0
    %p50 = por %p48, %p49
    %p51 = scmp.ne.s32.totalorder %s43, %s45
    %p52 = scmp.eq.s32.totalorder %s14, 1
    %p53 = por %p51, %p52
    %p54 = scmp.ne.s32.totalorder %s45, %s46
    %p55 = scmp.eq.s32.totalorder %s14, 0
    %p56 = por %p54, %p55
    %p57 = scmp.ne.s32.totalorder %s45, %s46
    %p58 = scmp.eq.s32.totalorder %s15, 1
    %p59 = por %p57, %p58
    %p61 = scmp.ne.s32.totalorder %s46, %s60
    %p62 = scmp.eq.s32.totalorder %s15, 0
    %p63 = por %p61, %p62
    %s65 = sadd.s32 %s64, 1
    %p68 = scmp.eq.s32.totalorder %s9, 1
    %p69 = scmp.ne.s32.totalorder %s64, %s66
    %p70 = scmp.eq.s32.totalorder %s9, 0
    %p71 = por %p69, %p70
    %p72 = scmp.ne.s32.totalorder %s64, %s66
    %p73 = scmp.eq.s32.totalorder %s14, 1
    %p74 = por %p72, %p73
    %p75 = scmp.ne.s32.totalorder %s66, %s67
    %p76 = scmp.eq.s32.totalorder %s14, 0
    %p77 = por %p75, %p76
    %p78 = scmp.ne.s32.totalorder %s66, %s67
    %p79 = scmp.eq.s32.totalorder %s15, 1
    %p80 = por %p78, %p79
    %p82 = scmp.ne.s32.totalorder %s67, %s81
    %p83 = scmp.eq.s32.totalorder %s15, 0
    %p84 = por %p82, %p83
    %s85 = ssub.s32 %s9, %s16
    %p86 = scmp.eq.s32.totalorder %s85, 0
    %s88 = sadd.s32 %s87, 1
    %s89 = scalar_select %p86, %s87, %s88
    %p92 = pneg %p86
    %p93 = scmp.eq.s32.totalorder %s9, 1
    %p94 = por %p92, %p93
    %p95 = scmp.ne.s32.totalorder %s87, %s90
    %p96 = scmp.eq.s32.totalorder %s9, 0
    %p97 = por %p95, %p96
    %p98 = scmp.ne.s32.totalorder %s87, %s90
    %p99 = scmp.eq.s32.totalorder %s14, 1
    %p100 = por %p98, %p99
    %p101 = scmp.ne.s32.totalorder %s90, %s91
    %p102 = scmp.eq.s32.totalorder %s14, 0
    %p103 = por %p101, %p102
    %p104 = scmp.ne.s32.totalorder %s90, %s91
    %p105 = scmp.eq.s32.totalorder %s15, 1
    %p106 = por %p104, %p105
    %p108 = scmp.ne.s32.totalorder %s91, %s107
    %p109 = scmp.eq.s32.totalorder %s15, 0
    %p110 = por %p108, %p109
    %p111 = scmp.le.s32.totalorder 1, %s9
    %p112 = scmp.lt.s32.totalorder %s9, 3
    %p113 = pnand %p111, %p112
    %p114 = pneg %p113
    // Predicated region
    $region9: #{decoder_block_forward.4} parent=5 // pred_check
      _
    $region10: #{decoder_block_forward.4} parent=5 // pred_check_branch
      %116 = sbr.rel (%p113) target = $region12
    $region11: #{decoder_block_forward.4} parent=5 // pred_region
      %s117 = ssub.s32 %s9, 1
      // Predicated region
      $region13: #{decoder_block_forward.4} parent=11 // pred_check
        %p118 = pneg %p56
      $region14: #{decoder_block_forward.4} parent=11 // pred_check_branch
        %120 = sbr.rel (%p118) target = $region16
      $region15: #{decoder_block_forward.4} parent=11 // pred_region
        _
      $region16: #{decoder_block_forward.4} parent=11 // pred_fallthru
        _
      // Predicated region
      $region17: #{decoder_block_forward.4} parent=11 // pred_check
        %p121 = pneg %p77
      $region18: #{decoder_block_forward.4} parent=11 // pred_check_branch
        %123 = sbr.rel (%p121) target = $region20
      $region19: #{decoder_block_forward.4} parent=11 // pred_region
        _
      $region20: #{decoder_block_forward.4} parent=11 // pred_fallthru
        _
    $region12: #{decoder_block_forward.4} parent=5 // pred_fallthru
      _
    %p124 = scmp.lt.s32.totalorder %s9, 2
    // Predicated region
    $region21: #{decoder_block_forward.4} parent=5 // pred_check
      %p125 = pneg %p124
    $region22: #{decoder_block_forward.4} parent=5 // pred_check_branch
      %127 = sbr.rel (%p125) target = $region24
    $region23: #{decoder_block_forward.4} parent=5 // pred_region
      // Predicated region
      $region25: #{decoder_block_forward.4} parent=23 // pred_check
        %p128 = pneg %p29
      $region26: #{decoder_block_forward.4} parent=23 // pred_check_branch
        %130 = sbr.rel (%p128) target = $region28
      $region27: #{decoder_block_forward.4} parent=23 // pred_region
        %s131 = smul.u32 16, %s9
        %p132 = scmp.lt.s32.totalorder %s131, 31
        %s133 = scalar_select %p132, %s131, 31
        %s134 = smul.addr %s133, 2
        %s135 = smul.addr %s134, 4
        %s136 = scalar_lea.vmem %s0, %s135
        %s137 = smul.u32 16, %s9
      $region28: #{decoder_block_forward.4} parent=23 // pred_fallthru
        _
    $region24: #{decoder_block_forward.4} parent=5 // pred_fallthru
      _
    %p138 = scmp.le.s32.totalorder 1, %s9
    %p139 = scmp.lt.s32.totalorder %s9, 3
    %p140 = pnand %p138, %p139
    %p141 = pneg %p140
    // Predicated region
    $region29: #{decoder_block_forward.4} parent=5 // pred_check
      _
    $region30: #{decoder_block_forward.4} parent=5 // pred_check_branch
      %143 = sbr.rel (%p140) target = $region32
    $region31: #{decoder_block_forward.4} parent=5 // pred_region
      %s144 = ssub.s32 %s9, 1
      %s145 = smul.u32 16, %s14
      %p146 = scmp.lt.s32.totalorder %s145, 31
      %s147 = scalar_select %p146, %s145, 31
      %s148 = smul.addr %s147, 2
      %s149 = smul.addr %s148, 4
      %s150 = scalar_lea.vmem %s0, %s149
      %p151 = pneg %p35
      %p152 = pneg %p32
      %p153 = pneg %p56
      %p154 = pneg %p53
      %p155 = pneg %p77
      %p156 = pneg %p74
      %p157 = pneg %p103
      %p158 = pneg %p100
      %s159 = smul.u32 16, %s14
      %p160 = scmp.lt.s32.totalorder %s159, 31
      %s161 = scalar_select %p160, %s159, 31
      %s162 = smul.addr %s161, 8
      %s163 = smul.addr %s162, 4
      %s164 = scalar_lea.vmem %s3, %s163
      %s165 = smul.u32 16, %s14
      %p166 = scmp.lt.s32.totalorder %s165, 31
      %s167 = scalar_select %p166, %s165, 31
      %s168 = smul.addr %s167, 2
      %s169 = smul.addr %s168, 4
      %s170 = scalar_lea.vmem %s0, %s169
      %s171 = smul.u32 16, %s14
      %s172 = smul.u32 16, %s14
      %p173 = scmp.lt.s32.totalorder %s172, 31
      %s174 = scalar_select %p173, %s172, 31
      %s175 = smul.addr %s174, 8
      %s176 = smul.addr %s175, 4
      %s177 = scalar_lea.vmem %s3, %s176
      %s178 = smul.u32 16, %s14
      %v180 = vld [vmem:[%s170] sm:$0xf]
      %v181 = vld [vmem:[%s170 + $0x4] sm:$0xf]
      %v182 = vld [vmem:[%s170 + $0x8] sm:$0xf]
      %v183 = vld [vmem:[%s170 + $0xc] sm:$0xf]
      %v184 = vld [vmem:[%s170 + $0x10] sm:$0xf]
      %v185 = vld [vmem:[%s170 + $0x14] sm:$0xf]
      %v186 = vld [vmem:[%s170 + $0x18] sm:$0xf]
      %v187 = vld [vmem:[%s170 + $0x1c] sm:$0xf]
      %v188 = vld [vmem:[%s170 + $0x20] sm:$0xf]
      %v189 = vld [vmem:[%s170 + $0x24] sm:$0xf]
      %v190 = vld [vmem:[%s170 + $0x28] sm:$0xf]
      %v191 = vld [vmem:[%s170 + $0x2c] sm:$0xf]
      %v192 = vld [vmem:[%s170 + $0x30] sm:$0xf]
      %v193 = vld [vmem:[%s170 + $0x34] sm:$0xf]
      %v194 = vld [vmem:[%s170 + $0x38] sm:$0xf]
      %v195 = vld [vmem:[%s170 + $0x3c] sm:$0xf]
      %v196 = vld [vmem:[%s170 + $0x40] sm:$0xf]
      %v197 = vld [vmem:[%s170 + $0x44] sm:$0xf]
      %v198 = vld [vmem:[%s170 + $0x48] sm:$0xf]
      %v199 = vld [vmem:[%s170 + $0x4c] sm:$0xf]
      %v200 = vld [vmem:[%s170 + $0x50] sm:$0xf]
      %v201 = vld [vmem:[%s170 + $0x54] sm:$0xf]
      %v202 = vld [vmem:[%s170 + $0x58] sm:$0xf]
      %v203 = vld [vmem:[%s170 + $0x5c] sm:$0xf]
      %v204 = vld [vmem:[%s170 + $0x60] sm:$0xf]
      %v205 = vld [vmem:[%s170 + $0x64] sm:$0xf]
      %v206 = vld [vmem:[%s170 + $0x68] sm:$0xf]
      %v207 = vld [vmem:[%s170 + $0x6c] sm:$0xf]
      %v208 = vld [vmem:[%s170 + $0x70] sm:$0xf]
      %v209 = vld [vmem:[%s170 + $0x74] sm:$0xf]
      %v210 = vld [vmem:[%s170 + $0x78] sm:$0xf]
      %v211 = vld [vmem:[%s170 + $0x7c] sm:$0xf]
      %v212 = vld [vmem:[%s1] sm:$0xff]
      %v213 = vld [vmem:[%s1 + $0x8] sm:$0xff]
      %v214 = vld [vmem:[%s1 + $0x10] sm:$0xff]
      %v215 = vld [vmem:[%s1 + $0x18] sm:$0xff]
      %v216 = vld [vmem:[%s1 + $0x20] sm:$0xff]
      %v217 = vld [vmem:[%s1 + $0x28] sm:$0xff]
      %v218 = vld [vmem:[%s1 + $0x30] sm:$0xff]
      %v219 = vld [vmem:[%s1 + $0x38] sm:$0xff]
      %v220 = vld [vmem:[%s1 + $0x40] sm:$0xff]
      %v221 = vld [vmem:[%s1 + $0x48] sm:$0xff]
      %v222 = vld [vmem:[%s1 + $0x50] sm:$0xff]
      %v223 = vld [vmem:[%s1 + $0x58] sm:$0xff]
      %v224 = vld [vmem:[%s1 + $0x60] sm:$0xff]
      %v225 = vld [vmem:[%s1 + $0x68] sm:$0xff]
      %v226 = vld [vmem:[%s1 + $0x70] sm:$0xff]
      %v227 = vld [vmem:[%s1 + $0x78] sm:$0xff]
      %v228 = vld [vmem:[%s2] sm:$0x3]
      %v230 = vlaneseq
      %v231 = vshrl.u32 %v230, 7
      %v232 = vsub.s32 0, %v231
      %v233 = vrot.slane %v228, %v232
      %v234 = vlaneseq
      %v235 = vshrl.u32 %v234, 7
      %v236 = vsub.s32 1, %v235
      %v237 = vrot.slane %v228, %v236
      %v272 = vunpack.c.l.b16 %v180
      %v273 = vunpack.c.l.b16 %v181
      %v274 = vunpack.c.l.b16 %v182
      %v275 = vunpack.c.l.b16 %v183
      %v276 = vunpack.c.l.b16 %v184
      %v277 = vunpack.c.l.b16 %v185
      %v278 = vunpack.c.l.b16 %v186
      %v279 = vunpack.c.l.b16 %v187
      %v280 = vunpack.c.l.b16 %v188
      %v281 = vunpack.c.l.b16 %v189
      %v282 = vunpack.c.l.b16 %v190
      %v283 = vunpack.c.l.b16 %v191
      %v284 = vunpack.c.l.b16 %v192
      %v285 = vunpack.c.l.b16 %v193
      %v286 = vunpack.c.l.b16 %v194
      %v287 = vunpack.c.l.b16 %v195
      %v288 = vunpack.c.l.b16 %v196
      %v289 = vunpack.c.l.b16 %v197
      %v290 = vunpack.c.l.b16 %v198
      %v291 = vunpack.c.l.b16 %v199
      %v292 = vunpack.c.l.b16 %v200
      %v293 = vunpack.c.l.b16 %v201
      %v294 = vunpack.c.l.b16 %v202
      %v295 = vunpack.c.l.b16 %v203
      %v296 = vunpack.c.l.b16 %v204
      %v297 = vunpack.c.l.b16 %v205
      %v298 = vunpack.c.l.b16 %v206
      %v299 = vunpack.c.l.b16 %v207
      %v300 = vunpack.c.l.b16 %v208
      %v301 = vunpack.c.l.b16 %v209
      %v302 = vunpack.c.l.b16 %v210
      %v303 = vunpack.c.l.b16 %v211
      %v304 = vpack.c.b16 %v273, %v272
      %v305 = vpack.c.b16 %v275, %v274
      %v306 = vpack.c.b16 %v277, %v276
      %v307 = vpack.c.b16 %v279, %v278
      %v308 = vpack.c.b16 %v281, %v280
      %v309 = vpack.c.b16 %v283, %v282
      %v310 = vpack.c.b16 %v285, %v284
      %v311 = vpack.c.b16 %v287, %v286
      %v312 = vpack.c.b16 %v289, %v288
      %v313 = vpack.c.b16 %v291, %v290
      %v314 = vpack.c.b16 %v293, %v292
      %v315 = vpack.c.b16 %v295, %v294
      %v316 = vpack.c.b16 %v297, %v296
      %v317 = vpack.c.b16 %v299, %v298
      %v318 = vpack.c.b16 %v301, %v300
      %v319 = vpack.c.b16 %v303, %v302
      %v352 = vunpack.c.l.b16 %v212
      %v353 = vunpack.c.h.b16 %v212
      %v354 = vunpack.c.l.b16 %v213
      %v355 = vunpack.c.h.b16 %v213
      %v356 = vunpack.c.l.b16 %v214
      %v357 = vunpack.c.h.b16 %v214
      %v358 = vunpack.c.l.b16 %v215
      %v359 = vunpack.c.h.b16 %v215
      %v360 = vunpack.c.l.b16 %v216
      %v361 = vunpack.c.h.b16 %v216
      %v362 = vunpack.c.l.b16 %v217
      %v363 = vunpack.c.h.b16 %v217
      %v364 = vunpack.c.l.b16 %v218
      %v365 = vunpack.c.h.b16 %v218
      %v366 = vunpack.c.l.b16 %v219
      %v367 = vunpack.c.h.b16 %v219
      %v368 = vunpack.c.l.b16 %v220
      %v369 = vunpack.c.h.b16 %v220
      %v370 = vunpack.c.l.b16 %v221
      %v371 = vunpack.c.h.b16 %v221
      %v372 = vunpack.c.l.b16 %v222
      %v373 = vunpack.c.h.b16 %v222
      %v374 = vunpack.c.l.b16 %v223
      %v375 = vunpack.c.h.b16 %v223
      %v376 = vunpack.c.l.b16 %v224
      %v377 = vunpack.c.h.b16 %v224
      %v378 = vunpack.c.l.b16 %v225
      %v379 = vunpack.c.h.b16 %v225
      %v380 = vunpack.c.l.b16 %v226
      %v381 = vunpack.c.h.b16 %v226
      %v382 = vunpack.c.l.b16 %v227
      %v383 = vunpack.c.h.b16 %v227
      %v384 = vpack.c.b16 %v354, %v352
      %v385 = vpack.c.b16 %v355, %v353
      %v386 = vpack.c.b16 %v358, %v356
      %v387 = vpack.c.b16 %v359, %v357
      %v388 = vpack.c.b16 %v362, %v360
      %v389 = vpack.c.b16 %v363, %v361
      %v390 = vpack.c.b16 %v366, %v364
      %v391 = vpack.c.b16 %v367, %v365
      %v392 = vpack.c.b16 %v370, %v368
      %v393 = vpack.c.b16 %v371, %v369
      %v394 = vpack.c.b16 %v374, %v372
      %v395 = vpack.c.b16 %v375, %v373
      %v396 = vpack.c.b16 %v378, %v376
      %v397 = vpack.c.b16 %v379, %v377
      %v398 = vpack.c.b16 %v382, %v380
      %v399 = vpack.c.b16 %v383, %v381
      %416 = vmatprep.subr.bf16.mxu0 %v385
      %417 = vmatpush1.bf16.msra.mxu0 %v384
      %418 = vmatprep.subr.bf16.mxu0 %v387
      %419 = vmatpush1.bf16.msra.mxu0 %v386
      %420 = vmatprep.subr.bf16.mxu0 %v389
      %421 = vmatpush1.bf16.msra.mxu0 %v388
      %422 = vmatprep.subr.bf16.mxu0 %v391
      %423 = vmatpush1.bf16.msra.mxu0 %v390
      %424 = vmatprep.subr.bf16.mxu0 %v393
      %425 = vmatpush1.bf16.msra.mxu0 %v392
      %426 = vmatprep.subr.bf16.mxu0 %v395
      %427 = vmatpush1.bf16.msra.mxu0 %v394
      %428 = vmatprep.subr.bf16.mxu0 %v397
      %429 = vmatpush1.bf16.msra.mxu0 %v396
      %430 = vmatprep.subr.bf16.mxu0 %v399
      %431 = vmatpush1.bf16.msra.mxu0 %v398
      %432 = vmatprep.subr.bf16.mxu0 0
      %433 = vmatpush1.bf16.msra.mxu0 0
      %434 = vmatprep.subr.bf16.mxu0 0
      %435 = vmatpush1.bf16.msra.mxu0 0
      %436 = vmatprep.subr.bf16.mxu0 0
      %437 = vmatpush1.bf16.msra.mxu0 0
      %438 = vmatprep.subr.bf16.mxu0 0
      %439 = vmatpush1.bf16.msra.mxu0 0
      %440 = vmatprep.subr.bf16.mxu0 0
      %441 = vmatpush1.bf16.msra.mxu0 0
      %442 = vmatprep.subr.bf16.mxu0 0
      %443 = vmatpush1.bf16.msra.mxu0 0
      %444 = vmatprep.subr.bf16.mxu0 0
      %445 = vmatpush1.bf16.msra.mxu0 0
      %446 = vmatprep.subr.bf16.mxu0 0
      %447 = vmatpush1.bf16.msra.mxu0 0
      %448 = vmatprep.mubr.bf16.mxu0 0
      %449 = vmatmul.mubr.bf16.gmra.mrb[0].mxu0 %v304
      %v450 = vpop.f32.mrb[0].mxu0
      %v451 = vadd.f32 %v233, %v450
      %v452 = vpop.f32.mrb[0].mxu0
      %v453 = vadd.f32 %v237, %v452
      %v454 = vpop.f32.mrb[0].mxu0
      %v455 = vadd.f32 %v233, %v454
      %v456 = vpop.f32.mrb[0].mxu0
      %v457 = vadd.f32 %v237, %v456
      %458 = vmatprep.mubr.bf16.mxu0 0
      %459 = vmatmul.mubr.bf16.gmra.mrb[0].mxu0 %v305
      %v460 = vpop.f32.mrb[0].mxu0
      %v461 = vadd.f32 %v233, %v460
      %v462 = vpop.f32.mrb[0].mxu0
      %v463 = vadd.f32 %v237, %v462
      %v464 = vpop.f32.mrb[0].mxu0
      %v465 = vadd.f32 %v233, %v464
      %v466 = vpop.f32.mrb[0].mxu0
      %v467 = vadd.f32 %v237, %v466
      %468 = vmatprep.mubr.bf16.mxu0 0
      %469 = vmatmul.mubr.bf16.gmra.mrb[0].mxu0 %v306
      %v470 = vpop.f32.mrb[0].mxu0
      %v471 = vadd.f32 %v233, %v470
      %v472 = vpop.f32.mrb[0].mxu0
      %v473 = vadd.f32 %v237, %v472
      %v474 = vpop.f32.mrb[0].mxu0
      %v475 = vadd.f32 %v233, %v474
      %v476 = vpop.f32.mrb[0].mxu0
      %v477 = vadd.f32 %v237, %v476
      %478 = vmatprep.mubr.bf16.mxu0 0
      %479 = vmatmul.mubr.bf16.gmra.mrb[0].mxu0 %v307
      %v480 = vpop.f32.mrb[0].mxu0
      %v481 = vadd.f32 %v233, %v480
      %v482 = vpop.f32.mrb[0].mxu0
      %v483 = vadd.f32 %v237, %v482
      %v484 = vpop.f32.mrb[0].mxu0
      %v485 = vadd.f32 %v233, %v484
      %v486 = vpop.f32.mrb[0].mxu0
      %v487 = vadd.f32 %v237, %v486
      %488 = vmatprep.mubr.bf16.mxu0 0
      %489 = vmatmul.mubr.bf16.gmra.mrb[0].mxu0 %v308
      %v490 = vpop.f32.mrb[0].mxu0
      %v491 = vadd.f32 %v233, %v490
      %v492 = vpop.f32.mrb[0].mxu0
      %v493 = vadd.f32 %v237, %v492
      %v494 = vpop.f32.mrb[0].mxu0
      %v495 = vadd.f32 %v233, %v494
      %v496 = vpop.f32.mrb[0].mxu0
      %v497 = vadd.f32 %v237, %v496
      %498 = vmatprep.mubr.bf16.mxu0 0
      %499 = vmatmul.mubr.bf16.gmra.mrb[0].mxu0 %v309
      %v500 = vpop.f32.mrb[0].mxu0
      %v501 = vadd.f32 %v233, %v500
      %v502 = vpop.f32.mrb[0].mxu0
      %v503 = vadd.f32 %v237, %v502
      %v504 = vpop.f32.mrb[0].mxu0
      %v505 = vadd.f32 %v233, %v504
      %v506 = vpop.f32.mrb[0].mxu0
      %v507 = vadd.f32 %v237, %v506
      %508 = vmatprep.mubr.bf16.mxu0 0
      %509 = vmatmul.mubr.bf16.gmra.mrb[0].mxu0 %v310
      %v510 = vpop.f32.mrb[0].mxu0
      %v511 = vadd.f32 %v233, %v510
      %v512 = vpop.f32.mrb[0].mxu0
      %v513 = vadd.f32 %v237, %v512
      %v514 = vpop.f32.mrb[0].mxu0
      %v515 = vadd.f32 %v233, %v514
      %v516 = vpop.f32.mrb[0].mxu0
      %v517 = vadd.f32 %v237, %v516
      %518 = vmatprep.mubr.bf16.mxu0 0
      %519 = vmatmul.mubr.bf16.gmra.mrb[0].mxu0 %v311
      %v520 = vpop.f32.mrb[0].mxu0
      %v521 = vadd.f32 %v233, %v520
      %v522 = vpop.f32.mrb[0].mxu0
      %v523 = vadd.f32 %v237, %v522
      %v524 = vpop.f32.mrb[0].mxu0
      %v525 = vadd.f32 %v233, %v524
      %v526 = vpop.f32.mrb[0].mxu0
      %v527 = vadd.f32 %v237, %v526
      %528 = vmatprep.mubr.bf16.mxu0 0
      %529 = vmatmul.mubr.bf16.gmra.mrb[0].mxu0 %v312
      %v530 = vpop.f32.mrb[0].mxu0
      %v531 = vadd.f32 %v233, %v530
      %v532 = vpop.f32.mrb[0].mxu0
      %v533 = vadd.f32 %v237, %v532
      %v534 = vpop.f32.mrb[0].mxu0
      %v535 = vadd.f32 %v233, %v534
      %v536 = vpop.f32.mrb[0].mxu0
      %v537 = vadd.f32 %v237, %v536
      %538 = vmatprep.mubr.bf16.mxu0 0
      %539 = vmatmul.mubr.bf16.gmra.mrb[0].mxu0 %v313
      %v540 = vpop.f32.mrb[0].mxu0
      %v541 = vadd.f32 %v233, %v540
      %v542 = vpop.f32.mrb[0].mxu0
      %v543 = vadd.f32 %v237, %v542
      %v544 = vpop.f32.mrb[0].mxu0
      %v545 = vadd.f32 %v233, %v544
      %v546 = vpop.f32.mrb[0].mxu0
      %v547 = vadd.f32 %v237, %v546
      %548 = vmatprep.mubr.bf16.mxu0 0
      %549 = vmatmul.mubr.bf16.gmra.mrb[0].mxu0 %v314
      %v550 = vpop.f32.mrb[0].mxu0
      %v551 = vadd.f32 %v233, %v550
      %v552 = vpop.f32.mrb[0].mxu0
      %v553 = vadd.f32 %v237, %v552
      %v554 = vpop.f32.mrb[0].mxu0
      %v555 = vadd.f32 %v233, %v554
      %v556 = vpop.f32.mrb[0].mxu0
      %v557 = vadd.f32 %v237, %v556
      %558 = vmatprep.mubr.bf16.mxu0 0
      %559 = vmatmul.mubr.bf16.gmra.mrb[0].mxu0 %v315
      %v560 = vpop.f32.mrb[0].mxu0
      %v561 = vadd.f32 %v233, %v560
      %v562 = vpop.f32.mrb[0].mxu0
      %v563 = vadd.f32 %v237, %v562
      %v564 = vpop.f32.mrb[0].mxu0
      %v565 = vadd.f32 %v233, %v564
      %v566 = vpop.f32.mrb[0].mxu0
      %v567 = vadd.f32 %v237, %v566
      %568 = vmatprep.mubr.bf16.mxu0 0
      %569 = vmatmul.mubr.bf16.gmra.mrb[0].mxu0 %v316
      %v570 = vpop.f32.mrb[0].mxu0
      %v571 = vadd.f32 %v233, %v570
      %v572 = vpop.f32.mrb[0].mxu0
      %v573 = vadd.f32 %v237, %v572
      %v574 = vpop.f32.mrb[0].mxu0
      %v575 = vadd.f32 %v233, %v574
      %v576 = vpop.f32.mrb[0].mxu0
      %v577 = vadd.f32 %v237, %v576
      %578 = vmatprep.mubr.bf16.mxu0 0
      %579 = vmatmul.mubr.bf16.gmra.mrb[0].mxu0 %v317
      %v580 = vpop.f32.mrb[0].mxu0
      %v581 = vadd.f32 %v233, %v580
      %v582 = vpop.f32.mrb[0].mxu0
      %v583 = vadd.f32 %v237, %v582
      %v584 = vpop.f32.mrb[0].mxu0
      %v585 = vadd.f32 %v233, %v584
      %v586 = vpop.f32.mrb[0].mxu0
      %v587 = vadd.f32 %v237, %v586
      %588 = vmatprep.mubr.bf16.mxu0 0
      %589 = vmatmul.mubr.bf16.gmra.mrb[0].mxu0 %v318
      %v590 = vpop.f32.mrb[0].mxu0
      %v591 = vadd.f32 %v233, %v590
      %v592 = vpop.f32.mrb[0].mxu0
      %v593 = vadd.f32 %v237, %v592
      %v594 = vpop.f32.mrb[0].mxu0
      %v595 = vadd.f32 %v233, %v594
      %v596 = vpop.f32.mrb[0].mxu0
      %v597 = vadd.f32 %v237, %v596
      %598 = vmatprep.mubr.bf16.mxu0 0
      %599 = vmatmul.mubr.bf16.gmra.mrb[0].mxu0 %v319
      %v600 = vpop.f32.mrb[0].mxu0
      %v601 = vadd.f32 %v233, %v600
      %v602 = vpop.f32.mrb[0].mxu0
      %v603 = vadd.f32 %v237, %v602
      %v604 = vpop.f32.mrb[0].mxu0
      %v605 = vadd.f32 %v233, %v604
      %v606 = vpop.f32.mrb[0].mxu0
      %v607 = vadd.f32 %v237, %v606
      %608 = vdwg.mxu0
      %v609 = vpack.c.bf16 %v455, %v451
      %v610 = vpack.c.bf16 %v457, %v453
      %v611 = vpack.c.bf16 %v465, %v461
      %v612 = vpack.c.bf16 %v467, %v463
      %v613 = vpack.c.bf16 %v475, %v471
      %v614 = vpack.c.bf16 %v477, %v473
      %v615 = vpack.c.bf16 %v485, %v481
      %v616 = vpack.c.bf16 %v487, %v483
      %v617 = vpack.c.bf16 %v495, %v491
      %v618 = vpack.c.bf16 %v497, %v493
      %v619 = vpack.c.bf16 %v505, %v501
      %v620 = vpack.c.bf16 %v507, %v503
      %v621 = vpack.c.bf16 %v515, %v511
      %v622 = vpack.c.bf16 %v517, %v513
      %v623 = vpack.c.bf16 %v525, %v521
      %v624 = vpack.c.bf16 %v527, %v523
      %v625 = vpack.c.bf16 %v535, %v531
      %v626 = vpack.c.bf16 %v537, %v533
      %v627 = vpack.c.bf16 %v545, %v541
      %v628 = vpack.c.bf16 %v547, %v543
      %v629 = vpack.c.bf16 %v555, %v551
      %v630 = vpack.c.bf16 %v557, %v553
      %v631 = vpack.c.bf16 %v565, %v561
      %v632 = vpack.c.bf16 %v567, %v563
      %v633 = vpack.c.bf16 %v575, %v571
      %v634 = vpack.c.bf16 %v577, %v573
      %v635 = vpack.c.bf16 %v585, %v581
      %v636 = vpack.c.bf16 %v587, %v583
      %v637 = vpack.c.bf16 %v595, %v591
      %v638 = vpack.c.bf16 %v597, %v593
      %v639 = vpack.c.bf16 %v605, %v601
      %v640 = vpack.c.bf16 %v607, %v603
      %v673 = vunpack.c.l.b16 %v609
      %v674 = vunpack.c.l.b16 %v610
      %v675 = vunpack.c.h.b16 %v609
      %v676 = vunpack.c.h.b16 %v610
      %v677 = vunpack.c.l.b16 %v611
      %v678 = vunpack.c.l.b16 %v612
      %v679 = vunpack.c.h.b16 %v611
      %v680 = vunpack.c.h.b16 %v612
      %v681 = vunpack.c.l.b16 %v613
      %v682 = vunpack.c.l.b16 %v614
      %v683 = vunpack.c.h.b16 %v613
      %v684 = vunpack.c.h.b16 %v614
      %v685 = vunpack.c.l.b16 %v615
      %v686 = vunpack.c.l.b16 %v616
      %v687 = vunpack.c.h.b16 %v615
      %v688 = vunpack.c.h.b16 %v616
      %v689 = vunpack.c.l.b16 %v617
      %v690 = vunpack.c.l.b16 %v618
      %v691 = vunpack.c.h.b16 %v617
      %v692 = vunpack.c.h.b16 %v618
      %v693 = vunpack.c.l.b16 %v619
      %v694 = vunpack.c.l.b16 %v620
      %v695 = vunpack.c.h.b16 %v619
      %v696 = vunpack.c.h.b16 %v620
      %v697 = vunpack.c.l.b16 %v621
      %v698 = vunpack.c.l.b16 %v622
      %v699 = vunpack.c.h.b16 %v621
      %v700 = vunpack.c.h.b16 %v622
      %v701 = vunpack.c.l.b16 %v623
      %v702 = vunpack.c.l.b16 %v624
      %v703 = vunpack.c.h.b16 %v623
      %v704 = vunpack.c.h.b16 %v624
      %v705 = vunpack.c.l.b16 %v625
      %v706 = vunpack.c.l.b16 %v626
      %v707 = vunpack.c.h.b16 %v625
      %v708 = vunpack.c.h.b16 %v626
      %v709 = vunpack.c.l.b16 %v627
      %v710 = vunpack.c.l.b16 %v628
      %v711 = vunpack.c.h.b16 %v627
      %v712 = vunpack.c.h.b16 %v628
      %v713 = vunpack.c.l.b16 %v629
      %v714 = vunpack.c.l.b16 %v630
      %v715 = vunpack.c.h.b16 %v629
      %v716 = vunpack.c.h.b16 %v630
      %v717 = vunpack.c.l.b16 %v631
      %v718 = vunpack.c.l.b16 %v632
      %v719 = vunpack.c.h.b16 %v631
      %v720 = vunpack.c.h.b16 %v632
      %v721 = vunpack.c.l.b16 %v633
      %v722 = vunpack.c.l.b16 %v634
      %v723 = vunpack.c.h.b16 %v633
      %v724 = vunpack.c.h.b16 %v634
      %v725 = vunpack.c.l.b16 %v635
      %v726 = vunpack.c.l.b16 %v636
      %v727 = vunpack.c.h.b16 %v635
      %v728 = vunpack.c.h.b16 %v636
      %v729 = vunpack.c.l.b16 %v637
      %v730 = vunpack.c.l.b16 %v638
      %v731 = vunpack.c.h.b16 %v637
      %v732 = vunpack.c.h.b16 %v638
      %v733 = vunpack.c.l.b16 %v639
      %v734 = vunpack.c.l.b16 %v640
      %v735 = vunpack.c.h.b16 %v639
      %v736 = vunpack.c.h.b16 %v640
      %v737 = vpack.c.b16 %v674, %v673
      %v738 = vpack.c.b16 %v676, %v675
      %v739 = vpack.c.b16 %v678, %v677
      %v740 = vpack.c.b16 %v680, %v679
      %v741 = vpack.c.b16 %v682, %v681
      %v742 = vpack.c.b16 %v684, %v683
      %v743 = vpack.c.b16 %v686, %v685
      %v744 = vpack.c.b16 %v688, %v687
      %v745 = vpack.c.b16 %v690, %v689
      %v746 = vpack.c.b16 %v692, %v691
      %v747 = vpack.c.b16 %v694, %v693
      %v748 = vpack.c.b16 %v696, %v695
      %v749 = vpack.c.b16 %v698, %v697
      %v750 = vpack.c.b16 %v700, %v699
      %v751 = vpack.c.b16 %v702, %v701
      %v752 = vpack.c.b16 %v704, %v703
      %v753 = vpack.c.b16 %v706, %v705
      %v754 = vpack.c.b16 %v708, %v707
      %v755 = vpack.c.b16 %v710, %v709
      %v756 = vpack.c.b16 %v712, %v711
      %v757 = vpack.c.b16 %v714, %v713
      %v758 = vpack.c.b16 %v716, %v715
      %v759 = vpack.c.b16 %v718, %v717
      %v760 = vpack.c.b16 %v720, %v719
      %v761 = vpack.c.b16 %v722, %v721
      %v762 = vpack.c.b16 %v724, %v723
      %v763 = vpack.c.b16 %v726, %v725
      %v764 = vpack.c.b16 %v728, %v727
      %v765 = vpack.c.b16 %v730, %v729
      %v766 = vpack.c.b16 %v732, %v731
      %v767 = vpack.c.b16 %v734, %v733
      %v768 = vpack.c.b16 %v736, %v735
      %801 = vst [vmem:[%s177] sm:$0xff] %v737
      %802 = vst [vmem:[%s177 + $0x8] sm:$0xff] %v738
      %803 = vst [vmem:[%s177 + $0x20] sm:$0xff] %v739
      %804 = vst [vmem:[%s177 + $0x28] sm:$0xff] %v740
      %805 = vst [vmem:[%s177 + $0x40] sm:$0xff] %v741
      %806 = vst [vmem:[%s177 + $0x48] sm:$0xff] %v742
      %807 = vst [vmem:[%s177 + $0x60] sm:$0xff] %v743
      %808 = vst [vmem:[%s177 + $0x68] sm:$0xff] %v744
      %809 = vst [vmem:[%s177 + $0x80] sm:$0xff] %v745
      %810 = vst [vmem:[%s177 + $0x88] sm:$0xff] %v746
      %811 = vst [vmem:[%s177 + $0xa0] sm:$0xff] %v747
      %812 = vst [vmem:[%s177 + $0xa8] sm:$0xff] %v748
      %813 = vst [vmem:[%s177 + $0xc0] sm:$0xff] %v749
      %814 = vst [vmem:[%s177 + $0xc8] sm:$0xff] %v750
      %815 = vst [vmem:[%s177 + $0xe0] sm:$0xff] %v751
      %816 = vst [vmem:[%s177 + $0xe8] sm:$0xff] %v752
      %817 = vst [vmem:[%s177 + $0x100] sm:$0xff] %v753
      %818 = vst [vmem:[%s177 + $0x108] sm:$0xff] %v754
      %819 = vst [vmem:[%s177 + $0x120] sm:$0xff] %v755
      %820 = vst [vmem:[%s177 + $0x128] sm:$0xff] %v756
      %821 = vst [vmem:[%s177 + $0x140] sm:$0xff] %v757
      %822 = vst [vmem:[%s177 + $0x148] sm:$0xff] %v758
      %823 = vst [vmem:[%s177 + $0x160] sm:$0xff] %v759
      %824 = vst [vmem:[%s177 + $0x168] sm:$0xff] %v760
      %825 = vst [vmem:[%s177 + $0x180] sm:$0xff] %v761
      %826 = vst [vmem:[%s177 + $0x188] sm:$0xff] %v762
      %827 = vst [vmem:[%s177 + $0x1a0] sm:$0xff] %v763
      %828 = vst [vmem:[%s177 + $0x1a8] sm:$0xff] %v764
      %829 = vst [vmem:[%s177 + $0x1c0] sm:$0xff] %v765
      %830 = vst [vmem:[%s177 + $0x1c8] sm:$0xff] %v766
      %831 = vst [vmem:[%s177 + $0x1e0] sm:$0xff] %v767
      %832 = vst [vmem:[%s177 + $0x1e8] sm:$0xff] %v768
      %s833 = scalar_lea.vmem %s1, 128
      %v834 = vld [vmem:[%s833] sm:$0xff]
      %v835 = vld [vmem:[%s833 + $0x8] sm:$0xff]
      %v836 = vld [vmem:[%s833 + $0x10] sm:$0xff]
      %v837 = vld [vmem:[%s833 + $0x18] sm:$0xff]
      %v838 = vld [vmem:[%s833 + $0x20] sm:$0xff]
      %v839 = vld [vmem:[%s833 + $0x28] sm:$0xff]
      %v840 = vld [vmem:[%s833 + $0x30] sm:$0xff]
      %v841 = vld [vmem:[%s833 + $0x38] sm:$0xff]
      %v842 = vld [vmem:[%s833 + $0x40] sm:$0xff]
      %v843 = vld [vmem:[%s833 + $0x48] sm:$0xff]
      %v844 = vld [vmem:[%s833 + $0x50] sm:$0xff]
      %v845 = vld [vmem:[%s833 + $0x58] sm:$0xff]
      %v846 = vld [vmem:[%s833 + $0x60] sm:$0xff]
      %v847 = vld [vmem:[%s833 + $0x68] sm:$0xff]
      %v848 = vld [vmem:[%s833 + $0x70] sm:$0xff]
      %v849 = vld [vmem:[%s833 + $0x78] sm:$0xff]
      %v850 = vld [vmem:[%s2] sm:$0x3]
      %v852 = vlaneseq
      %v853 = vshrl.u32 %v852, 7
      %v854 = vsub.s32 0, %v853
      %v855 = vrot.slane %v850, %v854
      %v856 = vlaneseq
      %v857 = vshrl.u32 %v856, 7
      %v858 = vsub.s32 1, %v857
      %v859 = vrot.slane %v850, %v858
      %v878 = vunpack.c.l.b16 %v834
      %v879 = vunpack.c.h.b16 %v834
      %v880 = vunpack.c.l.b16 %v835
      %v881 = vunpack.c.h.b16 %v835
      %v882 = vunpack.c.l.b16 %v836
      %v883 = vunpack.c.h.b16 %v836
      %v884 = vunpack.c.l.b16 %v837
      %v885 = vunpack.c.h.b16 %v837
      %v886 = vunpack.c.l.b16 %v838
      %v887 = vunpack.c.h.b16 %v838
      %v888 = vunpack.c.l.b16 %v839
      %v889 = vunpack.c.h.b16 %v839
      %v890 = vunpack.c.l.b16 %v840
      %v891 = vunpack.c.h.b16 %v840
      %v892 = vunpack.c.l.b16 %v841
      %v893 = vunpack.c.h.b16 %v841
      %v894 = vunpack.c.l.b16 %v842
      %v895 = vunpack.c.h.b16 %v842
      %v896 = vunpack.c.l.b16 %v843
      %v897 = vunpack.c.h.b16 %v843
      %v898 = vunpack.c.l.b16 %v844
      %v899 = vunpack.c.h.b16 %v844
      %v900 = vunpack.c.l.b16 %v845
      %v901 = vunpack.c.h.b16 %v845
      %v902 = vunpack.c.l.b16 %v846
      %v903 = vunpack.c.h.b16 %v846
      %v904 = vunpack.c.l.b16 %v847
      %v905 = vunpack.c.h.b16 %v847
      %v906 = vunpack.c.l.b16 %v848
      %v907 = vunpack.c.h.b16 %v848
      %v908 = vunpack.c.l.b16 %v849
      %v909 = vunpack.c.h.b16 %v849
      %v910 = vpack.c.b16 %v880, %v878
      %v911 = vpack.c.b16 %v881, %v879
      %v912 = vpack.c.b16 %v884, %v882
      %v913 = vpack.c.b16 %v885, %v883
      %v914 = vpack.c.b16 %v888, %v886
      %v915 = vpack.c.b16 %v889, %v887
      %v916 = vpack.c.b16 %v892, %v890
      %v917 = vpack.c.b16 %v893, %v891
      %v918 = vpack.c.b16 %v896, %v894
      %v919 = vpack.c.b16 %v897, %v895
      %v920 = vpack.c.b16 %v900, %v898
      %v921 = vpack.c.b16 %v901, %v899
      %v922 = vpack.c.b16 %v904, %v902
      %v923 = vpack.c.b16 %v905, %v903
      %v924 = vpack.c.b16 %v908, %v906
      %v925 = vpack.c.b16 %v909, %v907
      %942 = vmatprep.subr.bf16.mxu0 %v911
      %943 = vmatpush1.bf16.msra.mxu0 %v910
      %944 = vmatprep.subr.bf16.mxu0 %v913
      %945 = vmatpush1.bf16.msra.mxu0 %v912
      %946 = vmatprep.subr.bf16.mxu0 %v915
      %947 = vmatpush1.bf16.msra.mxu0 %v914
      %948 = vmatprep.subr.bf16.mxu0 %v917
      %949 = vmatpush1.bf16.msra.mxu0 %v916
      %950 = vmatprep.subr.bf16.mxu0 %v919
      %951 = vmatpush1.bf16.msra.mxu0 %v918
      %952 = vmatprep.subr.bf16.mxu0 %v921
      %953 = vmatpush1.bf16.msra.mxu0 %v920
      %954 = vmatprep.subr.bf16.mxu0 %v923
      %955 = vmatpush1.bf16.msra.mxu0 %v922
      %956 = vmatprep.subr.bf16.mxu0 %v925
      %957 = vmatpush1.bf16.msra.mxu0 %v924
      %958 = vmatprep.subr.bf16.mxu0 0
      %959 = vmatpush1.bf16.msra.mxu0 0
      %960 = vmatprep.subr.bf16.mxu0 0
      %961 = vmatpush1.bf16.msra.mxu0 0
      %962 = vmatprep.subr.bf16.mxu0 0
      %963 = vmatpush1.bf16.msra.mxu0 0
      %964 = vmatprep.subr.bf16.mxu0 0
      %965 = vmatpush1.bf16.msra.mxu0 0
      %966 = vmatprep.subr.bf16.mxu0 0
      %967 = vmatpush1.bf16.msra.mxu0 0
      %968 = vmatprep.subr.bf16.mxu0 0
      %969 = vmatpush1.bf16.msra.mxu0 0
      %970 = vmatprep.subr.bf16.mxu0 0
      %971 = vmatpush1.bf16.msra.mxu0 0
      %972 = vmatprep.subr.bf16.mxu0 0
      %973 = vmatpush1.bf16.msra.mxu0 0
      %974 = vmatprep.mubr.bf16.mxu0 0
      %975 = vmatmul.mubr.bf16.gmra.mrb[0].mxu0 %v304
      %v976 = vpop.f32.mrb[0].mxu0
      %v977 = vadd.f32 %v855, %v976
      %v978 = vpop.f32.mrb[0].mxu0
      %v979 = vadd.f32 %v859, %v978
      %v980 = vpop.f32.mrb[0].mxu0
      %v981 = vadd.f32 %v855, %v980
      %v982 = vpop.f32.mrb[0].mxu0
      %v983 = vadd.f32 %v859, %v982
      %984 = vmatprep.mubr.bf16.mxu0 0
      %985 = vmatmul.mubr.bf16.gmra.mrb[0].mxu0 %v305
      %v986 = vpop.f32.mrb[0].mxu0
      %v987 = vadd.f32 %v855, %v986
      %v988 = vpop.f32.mrb[0].mxu0
      %v989 = vadd.f32 %v859, %v988
      %v990 = vpop.f32.mrb[0].mxu0
      %v991 = vadd.f32 %v855, %v990
      %v992 = vpop.f32.mrb[0].mxu0
      %v993 = vadd.f32 %v859, %v992
      %994 = vmatprep.mubr.bf16.mxu0 0
      %995 = vmatmul.mubr.bf16.gmra.mrb[0].mxu0 %v306
      %v996 = vpop.f32.mrb[0].mxu0
      %v997 = vadd.f32 %v855, %v996
      %v998 = vpop.f32.mrb[0].mxu0
      %v999 = vadd.f32 %v859, %v998
      %v1000 = vpop.f32.mrb[0].mxu0
      %v1001 = vadd.f32 %v855, %v1000
      %v1002 = vpop.f32.mrb[0].mxu0
      %v1003 = vadd.f32 %v859, %v1002
      %1004 = vmatprep.mubr.bf16.mxu0 0
      %1005 = vmatmul.mubr.bf16.gmra.mrb[0].mxu0 %v307
      %v1006 = vpop.f32.mrb[0].mxu0
      %v1007 = vadd.f32 %v855, %v1006
      %v1008 = vpop.f32.mrb[0].mxu0
      %v1009 = vadd.f32 %v859, %v1008
      %v1010 = vpop.f32.mrb[0].mxu0
      %v1011 = vadd.f32 %v855, %v1010
      %v1012 = vpop.f32.mrb[0].mxu0
      %v1013 = vadd.f32 %v859, %v1012
      %1014 = vmatprep.mubr.bf16.mxu0 0
      %1015 = vmatmul.mubr.bf16.gmra.mrb[0].mxu0 %v308
      %v1016 = vpop.f32.mrb[0].mxu0
      %v1017 = vadd.f32 %v855, %v1016
      %v1018 = vpop.f32.mrb[0].mxu0
      %v1019 = vadd.f32 %v859, %v1018
      %v1020 = vpop.f32.mrb[0].mxu0
      %v1021 = vadd.f32 %v855, %v1020
      %v1022 = vpop.f32.mrb[0].mxu0
      %v1023 = vadd.f32 %v859, %v1022
      %1024 = vmatprep.mubr.bf16.mxu0 0
      %1025 = vmatmul.mubr.bf16.gmra.mrb[0].mxu0 %v309
      %v1026 = vpop.f32.mrb[0].mxu0
      %v1027 = vadd.f32 %v855, %v1026
      %v1028 = vpop.f32.mrb[0].mxu0
      %v1029 = vadd.f32 %v859, %v1028
      %v1030 = vpop.f32.mrb[0].mxu0
      %v1031 = vadd.f32 %v855, %v1030
      %v1032 = vpop.f32.mrb[0].mxu0
      %v1033 = vadd.f32 %v859, %v1032
      %1034 = vmatprep.mubr.bf16.mxu0 0
      %1035 = vmatmul.mubr.bf16.gmra.mrb[0].mxu0 %v310
      %v1036 = vpop.f32.mrb[0].mxu0
      %v1037 = vadd.f32 %v855, %v1036
      %v1038 = vpop.f32.mrb[0].mxu0
      %v1039 = vadd.f32 %v859, %v1038
      %v1040 = vpop.f32.mrb[0].mxu0
      %v1041 = vadd.f32 %v855, %v1040
      %v1042 = vpop.f32.mrb[0].mxu0
      %v1043 = vadd.f32 %v859, %v1042
      %1044 = vmatprep.mubr.bf16.mxu0 0
      %1045 = vmatmul.mubr.bf16.gmra.mrb[0].mxu0 %v311
      %v1046 = vpop.f32.mrb[0].mxu0
      %v1047 = vadd.f32 %v855, %v1046
      %v1048 = vpop.f32.mrb[0].mxu0
      %v1049 = vadd.f32 %v859, %v1048
      %v1050 = vpop.f32.mrb[0].mxu0
      %v1051 = vadd.f32 %v855, %v1050
      %v1052 = vpop.f32.mrb[0].mxu0
      %v1053 = vadd.f32 %v859, %v1052
      %1054 = vmatprep.mubr.bf16.mxu0 0
      %1055 = vmatmul.mubr.bf16.gmra.mrb[0].mxu0 %v312
      %v1056 = vpop.f32.mrb[0].mxu0
      %v1057 = vadd.f32 %v855, %v1056
      %v1058 = vpop.f32.mrb[0].mxu0
      %v1059 = vadd.f32 %v859, %v1058
      %v1060 = vpop.f32.mrb[0].mxu0
      %v1061 = vadd.f32 %v855, %v1060
      %v1062 = vpop.f32.mrb[0].mxu0
      %v1063 = vadd.f32 %v859, %v1062
      %1064 = vmatprep.mubr.bf16.mxu0 0
      %1065 = vmatmul.mubr.bf16.gmra.mrb[0].mxu0 %v313
      %v1066 = vpop.f32.mrb[0].mxu0
      %v1067 = vadd.f32 %v855, %v1066
      %v1068 = vpop.f32.mrb[0].mxu0
      %v1069 = vadd.f32 %v859, %v1068
      %v1070 = vpop.f32.mrb[0].mxu0
      %v1071 = vadd.f32 %v855, %v1070
      %v1072 = vpop.f32.mrb[0].mxu0
      %v1073 = vadd.f32 %v859, %v1072
      %1074 = vmatprep.mubr.bf16.mxu0 0
      %1075 = vmatmul.mubr.bf16.gmra.mrb[0].mxu0 %v314
      %v1076 = vpop.f32.mrb[0].mxu0
      %v1077 = vadd.f32 %v855, %v1076
      %v1078 = vpop.f32.mrb[0].mxu0
      %v1079 = vadd.f32 %v859, %v1078
      %v1080 = vpop.f32.mrb[0].mxu0
      %v1081 = vadd.f32 %v855, %v1080
      %v1082 = vpop.f32.mrb[0].mxu0
      %v1083 = vadd.f32 %v859, %v1082
      %1084 = vmatprep.mubr.bf16.mxu0 0
      %1085 = vmatmul.mubr.bf16.gmra.mrb[0].mxu0 %v315
      %v1086 = vpop.f32.mrb[0].mxu0
      %v1087 = vadd.f32 %v855, %v1086
      %v1088 = vpop.f32.mrb[0].mxu0
      %v1089 = vadd.f32 %v859, %v1088
      %v1090 = vpop.f32.mrb[0].mxu0
      %v1091 = vadd.f32 %v855, %v1090
      %v1092 = vpop.f32.mrb[0].mxu0
      %v1093 = vadd.f32 %v859, %v1092
      %1094 = vmatprep.mubr.bf16.mxu0 0
      %1095 = vmatmul.mubr.bf16.gmra.mrb[0].mxu0 %v316
      %v1096 = vpop.f32.mrb[0].mxu0
      %v1097 = vadd.f32 %v855, %v1096
      %v1098 = vpop.f32.mrb[0].mxu0
      %v1099 = vadd.f32 %v859, %v1098
      %v1100 = vpop.f32.mrb[0].mxu0
      %v1101 = vadd.f32 %v855, %v1100
      %v1102 = vpop.f32.mrb[0].mxu0
      %v1103 = vadd.f32 %v859, %v1102
      %1104 = vmatprep.mubr.bf16.mxu0 0
      %1105 = vmatmul.mubr.bf16.gmra.mrb[0].mxu0 %v317
      %v1106 = vpop.f32.mrb[0].mxu0
      %v1107 = vadd.f32 %v855, %v1106
      %v1108 = vpop.f32.mrb[0].mxu0
      %v1109 = vadd.f32 %v859, %v1108
      %v1110 = vpop.f32.mrb[0].mxu0
      %v1111 = vadd.f32 %v855, %v1110
      %v1112 = vpop.f32.mrb[0].mxu0
      %v1113 = vadd.f32 %v859, %v1112
      %1114 = vmatprep.mubr.bf16.mxu0 0
      %1115 = vmatmul.mubr.bf16.gmra.mrb[0].mxu0 %v318
      %v1116 = vpop.f32.mrb[0].mxu0
      %v1117 = vadd.f32 %v855, %v1116
      %v1118 = vpop.f32.mrb[0].mxu0
      %v1119 = vadd.f32 %v859, %v1118
      %v1120 = vpop.f32.mrb[0].mxu0
      %v1121 = vadd.f32 %v855, %v1120
      %v1122 = vpop.f32.mrb[0].mxu0
      %v1123 = vadd.f32 %v859, %v1122
      %1124 = vmatprep.mubr.bf16.mxu0 0
      %1125 = vmatmul.mubr.bf16.gmra.mrb[0].mxu0 %v319
      %v1126 = vpop.f32.mrb[0].mxu0
      %v1127 = vadd.f32 %v855, %v1126
      %v1128 = vpop.f32.mrb[0].mxu0
      %v1129 = vadd.f32 %v859, %v1128
      %v1130 = vpop.f32.mrb[0].mxu0
      %v1131 = vadd.f32 %v855, %v1130
      %v1132 = vpop.f32.mrb[0].mxu0
      %v1133 = vadd.f32 %v859, %v1132
      %1134 = vdwg.mxu0
      %v1135 = vpack.c.bf16 %v981, %v977
      %v1136 = vpack.c.bf16 %v983, %v979
      %v1137 = vpack.c.bf16 %v991, %v987
      %v1138 = vpack.c.bf16 %v993, %v989
      %v1139 = vpack.c.bf16 %v1001, %v997
      %v1140 = vpack.c.bf16 %v1003, %v999
      %v1141 = vpack.c.bf16 %v1011, %v1007
      %v1142 = vpack.c.bf16 %v1013, %v1009
      %v1143 = vpack.c.bf16 %v1021, %v1017
      %v1144 = vpack.c.bf16 %v1023, %v1019
      %v1145 = vpack.c.bf16 %v1031, %v1027
      %v1146 = vpack.c.bf16 %v1033, %v1029
      %v1147 = vpack.c.bf16 %v1041, %v1037
      %v1148 = vpack.c.bf16 %v1043, %v1039
      %v1149 = vpack.c.bf16 %v1051, %v1047
      %v1150 = vpack.c.bf16 %v1053, %v1049
      %v1151 = vpack.c.bf16 %v1061, %v1057
      %v1152 = vpack.c.bf16 %v1063, %v1059
      %v1153 = vpack.c.bf16 %v1071, %v1067
      %v1154 = vpack.c.bf16 %v1073, %v1069
      %v1155 = vpack.c.bf16 %v1081, %v1077
      %v1156 = vpack.c.bf16 %v1083, %v1079
      %v1157 = vpack.c.bf16 %v1091, %v1087
      %v1158 = vpack.c.bf16 %v1093, %v1089
      %v1159 = vpack.c.bf16 %v1101, %v1097
      %v1160 = vpack.c.bf16 %v1103, %v1099
      %v1161 = vpack.c.bf16 %v1111, %v1107
      %v1162 = vpack.c.bf16 %v1113, %v1109
      %v1163 = vpack.c.bf16 %v1121, %v1117
      %v1164 = vpack.c.bf16 %v1123, %v1119
      %v1165 = vpack.c.bf16 %v1131, %v1127
      %v1166 = vpack.c.bf16 %v1133, %v1129
      %v1199 = vunpack.c.l.b16 %v1135
      %v1200 = vunpack.c.l.b16 %v1136
      %v1201 = vunpack.c.h.b16 %v1135
      %v1202 = vunpack.c.h.b16 %v1136
      %v1203 = vunpack.c.l.b16 %v1137
      %v1204 = vunpack.c.l.b16 %v1138
      %v1205 = vunpack.c.h.b16 %v1137
      %v1206 = vunpack.c.h.b16 %v1138
      %v1207 = vunpack.c.l.b16 %v1139
      %v1208 = vunpack.c.l.b16 %v1140
      %v1209 = vunpack.c.h.b16 %v1139
      %v1210 = vunpack.c.h.b16 %v1140
      %v1211 = vunpack.c.l.b16 %v1141
      %v1212 = vunpack.c.l.b16 %v1142
      %v1213 = vunpack.c.h.b16 %v1141
      %v1214 = vunpack.c.h.b16 %v1142
      %v1215 = vunpack.c.l.b16 %v1143
      %v1216 = vunpack.c.l.b16 %v1144
      %v1217 = vunpack.c.h.b16 %v1143
      %v1218 = vunpack.c.h.b16 %v1144
      %v1219 = vunpack.c.l.b16 %v1145
      %v1220 = vunpack.c.l.b16 %v1146
      %v1221 = vunpack.c.h.b16 %v1145
      %v1222 = vunpack.c.h.b16 %v1146
      %v1223 = vunpack.c.l.b16 %v1147
      %v1224 = vunpack.c.l.b16 %v1148
      %v1225 = vunpack.c.h.b16 %v1147
      %v1226 = vunpack.c.h.b16 %v1148
      %v1227 = vunpack.c.l.b16 %v1149
      %v1228 = vunpack.c.l.b16 %v1150
      %v1229 = vunpack.c.h.b16 %v1149
      %v1230 = vunpack.c.h.b16 %v1150
      %v1231 = vunpack.c.l.b16 %v1151
      %v1232 = vunpack.c.l.b16 %v1152
      %v1233 = vunpack.c.h.b16 %v1151
      %v1234 = vunpack.c.h.b16 %v1152
      %v1235 = vunpack.c.l.b16 %v1153
      %v1236 = vunpack.c.l.b16 %v1154
      %v1237 = vunpack.c.h.b16 %v1153
      %v1238 = vunpack.c.h.b16 %v1154
      %v1239 = vunpack.c.l.b16 %v1155
      %v1240 = vunpack.c.l.b16 %v1156
      %v1241 = vunpack.c.h.b16 %v1155
      %v1242 = vunpack.c.h.b16 %v1156
      %v1243 = vunpack.c.l.b16 %v1157
      %v1244 = vunpack.c.l.b16 %v1158
      %v1245 = vunpack.c.h.b16 %v1157
      %v1246 = vunpack.c.h.b16 %v1158
      %v1247 = vunpack.c.l.b16 %v1159
      %v1248 = vunpack.c.l.b16 %v1160
      %v1249 = vunpack.c.h.b16 %v1159
      %v1250 = vunpack.c.h.b16 %v1160
      %v1251 = vunpack.c.l.b16 %v1161
      %v1252 = vunpack.c.l.b16 %v1162
      %v1253 = vunpack.c.h.b16 %v1161
      %v1254 = vunpack.c.h.b16 %v1162
      %v1255 = vunpack.c.l.b16 %v1163
      %v1256 = vunpack.c.l.b16 %v1164
      %v1257 = vunpack.c.h.b16 %v1163
      %v1258 = vunpack.c.h.b16 %v1164
      %v1259 = vunpack.c.l.b16 %v1165
      %v1260 = vunpack.c.l.b16 %v1166
      %v1261 = vunpack.c.h.b16 %v1165
      %v1262 = vunpack.c.h.b16 %v1166
      %v1263 = vpack.c.b16 %v1200, %v1199
      %v1264 = vpack.c.b16 %v1202, %v1201
      %v1265 = vpack.c.b16 %v1204, %v1203
      %v1266 = vpack.c.b16 %v1206, %v1205
      %v1267 = vpack.c.b16 %v1208, %v1207
      %v1268 = vpack.c.b16 %v1210, %v1209
      %v1269 = vpack.c.b16 %v1212, %v1211
      %v1270 = vpack.c.b16 %v1214, %v1213
      %v1271 = vpack.c.b16 %v1216, %v1215
      %v1272 = vpack.c.b16 %v1218, %v1217
      %v1273 = vpack.c.b16 %v1220, %v1219
      %v1274 = vpack.c.b16 %v1222, %v1221
      %v1275 = vpack.c.b16 %v1224, %v1223
      %v1276 = vpack.c.b16 %v1226, %v1225
      %v1277 = vpack.c.b16 %v1228, %v1227
      %v1278 = vpack.c.b16 %v1230, %v1229
      %v1279 = vpack.c.b16 %v1232, %v1231
      %v1280 = vpack.c.b16 %v1234, %v1233
      %v1281 = vpack.c.b16 %v1236, %v1235
      %v1282 = vpack.c.b16 %v1238, %v1237
      %v1283 = vpack.c.b16 %v1240, %v1239
      %v1284 = vpack.c.b16 %v1242, %v1241
      %v1285 = vpack.c.b16 %v1244, %v1243
      %v1286 = vpack.c.b16 %v1246, %v1245
      %v1287 = vpack.c.b16 %v1248, %v1247
      %v1288 = vpack.c.b16 %v1250, %v1249
      %v1289 = vpack.c.b16 %v1252, %v1251
      %v1290 = vpack.c.b16 %v1254, %v1253
      %v1291 = vpack.c.b16 %v1256, %v1255
      %v1292 = vpack.c.b16 %v1258, %v1257
      %v1293 = vpack.c.b16 %v1260, %v1259
      %v1294 = vpack.c.b16 %v1262, %v1261
      %s1327 = scalar_lea.vmem %s177, 16
      %1328 = vst [vmem:[%s1327] sm:$0xff] %v1263
      %1329 = vst [vmem:[%s1327 + $0x8] sm:$0xff] %v1264
      %1330 = vst [vmem:[%s1327 + $0x20] sm:$0xff] %v1265
      %1331 = vst [vmem:[%s1327 + $0x28] sm:$0xff] %v1266
      %1332 = vst [vmem:[%s1327 + $0x40] sm:$0xff] %v1267
      %1333 = vst [vmem:[%s1327 + $0x48] sm:$0xff] %v1268
      %1334 = vst [vmem:[%s1327 + $0x60] sm:$0xff] %v1269
      %1335 = vst [vmem:[%s1327 + $0x68] sm:$0xff] %v1270
      %1336 = vst [vmem:[%s1327 + $0x80] sm:$0xff] %v1271
      %1337 = vst [vmem:[%s1327 + $0x88] sm:$0xff] %v1272
      %1338 = vst [vmem:[%s1327 + $0xa0] sm:$0xff] %v1273
      %1339 = vst [vmem:[%s1327 + $0xa8] sm:$0xff] %v1274
      %1340 = vst [vmem:[%s1327 + $0xc0] sm:$0xff] %v1275
      %1341 = vst [vmem:[%s1327 + $0xc8] sm:$0xff] %v1276
      %1342 = vst [vmem:[%s1327 + $0xe0] sm:$0xff] %v1277
      %1343 = vst [vmem:[%s1327 + $0xe8] sm:$0xff] %v1278
      %1344 = vst [vmem:[%s1327 + $0x100] sm:$0xff] %v1279
      %1345 = vst [vmem:[%s1327 + $0x108] sm:$0xff] %v1280
      %1346 = vst [vmem:[%s1327 + $0x120] sm:$0xff] %v1281
      %1347 = vst [vmem:[%s1327 + $0x128] sm:$0xff] %v1282
      %1348 = vst [vmem:[%s1327 + $0x140] sm:$0xff] %v1283
      %1349 = vst [vmem:[%s1327 + $0x148] sm:$0xff] %v1284
      %1350 = vst [vmem:[%s1327 + $0x160] sm:$0xff] %v1285
      %1351 = vst [vmem:[%s1327 + $0x168] sm:$0xff] %v1286
      %1352 = vst [vmem:[%s1327 + $0x180] sm:$0xff] %v1287
      %1353 = vst [vmem:[%s1327 + $0x188] sm:$0xff] %v1288
      %1354 = vst [vmem:[%s1327 + $0x1a0] sm:$0xff] %v1289
      %1355 = vst [vmem:[%s1327 + $0x1a8] sm:$0xff] %v1290
      %1356 = vst [vmem:[%s1327 + $0x1c0] sm:$0xff] %v1291
      %1357 = vst [vmem:[%s1327 + $0x1c8] sm:$0xff] %v1292
      %1358 = vst [vmem:[%s1327 + $0x1e0] sm:$0xff] %v1293
      %1359 = vst [vmem:[%s1327 + $0x1e8] sm:$0xff] %v1294
      %s1360 = smul.u32 16, %s14
      %p1361 = scmp.lt.s32.totalorder %s1360, 31
      %s1362 = scalar_select %p1361, %s1360, 31
      %s1363 = smul.addr %s1362, 8
      %s1364 = smul.addr %s1363, 4
      %s1365 = scalar_lea.vmem %s3, %s1364
      // Predicated region
      $region33: #{decoder_block_forward.4} parent=31 // pred_check
        %p1366 = pneg %p100
      $region34: #{decoder_block_forward.4} parent=31 // pred_check_branch
        %1368 = sbr.rel (%p1366) target = $region36
      $region35: #{decoder_block_forward.4} parent=31 // pred_region
        %s1369 = smul.u32 16, %s14
      $region36: #{decoder_block_forward.4} parent=31 // pred_fallthru
        _
    $region32: #{decoder_block_forward.4} parent=5 // pred_fallthru
      _
    %p1370 = scmp.le.s32.totalorder 2, %s9
    // Predicated region
    $region37: #{decoder_block_forward.4} parent=5 // pred_check
      %p1371 = pneg %p1370
    $region38: #{decoder_block_forward.4} parent=5 // pred_check_branch
      %1373 = sbr.rel (%p1371) target = $region40
    $region39: #{decoder_block_forward.4} parent=5 // pred_region
      %s1374 = ssub.s32 %s9, 2
      // Predicated region
      $region41: #{decoder_block_forward.4} parent=39 // pred_check
        %p1375 = pneg %p106
      $region42: #{decoder_block_forward.4} parent=39 // pred_check_branch
        %1377 = sbr.rel (%p1375) target = $region44
      $region43: #{decoder_block_forward.4} parent=39 // pred_region
        %s1378 = smul.u32 16, %s15
        %p1379 = scmp.lt.s32.totalorder %s1378, 31
        %s1380 = scalar_select %p1379, %s1378, 31
        %s1381 = smul.addr %s1380, 8
        %s1382 = smul.addr %s1381, 4
        %s1383 = scalar_lea.vmem %s3, %s1382
      $region44: #{decoder_block_forward.4} parent=39 // pred_fallthru
        _
    $region40: #{decoder_block_forward.4} parent=5 // pred_fallthru
      _
  $region6: #{decoder_block_forward.4} parent=0 // loop_footer
    %s13 = sadd.s32 1, %s9
  $region7: #{decoder_block_forward.4} parent=0 // loop_footer_branch
    %8 = sbr.rel target = $region3
  $region8: #{decoder_block_forward.4} parent=0 // loop_exit
    _

// kernel: decoder_block_forward.5
$region0: #{decoder_block_forward.5}
  #allocation0 [shape = 'u32[]', space=smem, size = 0x4, offset = 0x4, fixed_abs, tag = 'smem constant byte address 0x4 - core index']
  #allocation1 [shape = 'u32[144,128]{1,0:T(1,128)}', space=vmem, size = 0x12000, scoped, tag = 'internal scratch']
  #allocation2 [shape = 'bf16[10,32,128]{2,1,0:T(16,128)(2,1)}', space=vmem, size = 0x14000, scoped, tag = 'scratch operand']
  %s0 = inlined_call_operand.vmem [shape: bf16[2,32,32,128], index: 0, kind: input, shape index: {}, may-alias: {0,1,2}]
  %s1 = inlined_call_operand.vmem [shape: bf16[2,32,32,128], index: 1, kind: input, shape index: {}, may-alias: {0,1,2}]
  %s2 = inlined_call_operand.vmem [shape: bf16[2,32,32,128], index: 2, kind: input, shape index: {}, may-alias: {0,1,2}]
  %s3 = inlined_call_operand.vmem [shape: bf16[9,128,128], index: 3, kind: input, shape index: {}]
  %s4 = inlined_call_operand.vmem [shape: f32[1,128], index: 4, kind: input, shape index: {}]
  %s5 = inlined_call_operand.vmem [shape: f32[1,128], index: 5, kind: input, shape index: {}]
  %s6 = inlined_call_operand.vmem [shape: bf16[2,32,32,128], index: 6, kind: output, shape index: {}]
  %s7 = sld [smem:[#allocation0]]
  $region73: #{decoder_block_forward.5} parent=0
    _
  %s9 = ssub.s32 1, %s7
  %s10 = scalar_select 0, %s9, %s7
  loop: start=0, step=1, limit=10
  $region2: #{decoder_block_forward.5} parent=0 // loop_pre_header
    _
  $region3: #{decoder_block_forward.5} parent=0 // loop_header
    %s12 = sphi 0, %s16
    %p13 = scmp.ge.s32.totalorder %s12, 10
    %s19 = sphi 0, %s31
    %s20 = sphi 0, %s27
    %s21 = sphi 0, %s19
    %s22 = sphi 0, %s20
    %s23 = sphi 0, %s21
    %s24 = sphi 0, %s22
    %s44 = sphi 0, %s46
    %s47 = sphi 0, %s44
    %s48 = sphi 0, %s47
    %s64 = sphi 0, %s48
    %s72 = sphi 0, %s74
    %s75 = sphi 0, %s72
    %s76 = sphi 0, %s75
    %s92 = sphi 0, %s76
    %s108 = sphi 0, %s110
    %s111 = sphi 0, %s108
    %s112 = sphi 0, %s111
    %s128 = sphi 0, %s112
    %s132 = sphi 0, %s132
    %s134 = sphi 0, %s132
    %s135 = sphi 0, %s134
    %s149 = sphi 0, %s135
    %s153 = sphi 0, %s153
    %s155 = sphi 0, %s153
    %s156 = sphi 0, %s155
    %s170 = sphi 0, %s156
    %s174 = sphi 0, %s174
    %s176 = sphi 0, %s174
    %s177 = sphi 0, %s176
    %s191 = sphi 0, %s177
    %s199 = sphi 0, %s201
    %s202 = sphi 0, %s199
    %s203 = sphi 0, %s202
    %s219 = sphi 0, %s203
  $region4: #{decoder_block_forward.5} parent=0 // loop_header_branch
    %15 = sbr.rel (%p13) target = $region8
  $region5: #{decoder_block_forward.5} parent=0 // loop_body
    %s17 = ssub.s32 %s12, 1
    %s18 = ssub.s32 %s12, 2
    %s25 = sadd.s32 1, %s20
    %p26 = scmp.ge.s32.totalorder %s25, 4
    %s27 = scalar_select %p26, 0, %s25
    %s28 = sadd.s32 1, %s19
    %s29 = scalar_select %p26, %s28, %s19
    %p30 = scmp.ge.s32.totalorder %s29, 2
    %s31 = scalar_select %p30, 0, %s29
    %s32 = smul.u32 %s20, 8
    %s33 = ssub.s32 %s32, 1
    %p34 = scmp.gt.s32.totalorder %s33, 0
    %s35 = scalar_select %p34, %s33, 0
    %s36 = smul.u32 %s27, 8
    %s37 = ssub.s32 %s36, 1
    %p38 = scmp.gt.s32.totalorder %s37, 0
    %s39 = scalar_select %p38, %s37, 0
    %s40 = ssub.s32 %s19, %s31
    %s41 = ssub.s32 %s35, %s39
    %s42 = sor.u32 %s40, %s41
    %p43 = scmp.eq.s32.totalorder %s42, 0
    %s45 = sadd.s32 %s44, 1
    %s46 = scalar_select %p43, %s44, %s45
    %p49 = pneg %p43
    %p50 = scmp.eq.s32.totalorder %s12, 7
    %p51 = por %p49, %p50
    %p52 = scmp.ne.s32.totalorder %s44, %s47
    %p53 = scmp.eq.s32.totalorder %s12, 0
    %p54 = por %p52, %p53
    %p55 = scmp.ne.s32.totalorder %s44, %s47
    %p56 = scmp.eq.s32.totalorder %s17, 7
    %p57 = por %p55, %p56
    %p58 = scmp.ne.s32.totalorder %s47, %s48
    %p59 = scmp.eq.s32.totalorder %s17, 0
    %p60 = por %p58, %p59
    %p61 = scmp.ne.s32.totalorder %s47, %s48
    %p62 = scmp.eq.s32.totalorder %s18, 7
    %p63 = por %p61, %p62
    %p65 = scmp.ne.s32.totalorder %s48, %s64
    %p66 = scmp.eq.s32.totalorder %s18, 0
    %p67 = por %p65, %p66
    %s68 = ssub.s32 %s19, %s31
    %s69 = ssub.s32 %s20, %s27
    %s70 = sor.u32 %s68, %s69
    %p71 = scmp.eq.s32.totalorder %s70, 0
    %s73 = sadd.s32 %s72, 1
    %s74 = scalar_select %p71, %s72, %s73
    %p77 = pneg %p71
    %p78 = scmp.eq.s32.totalorder %s12, 7
    %p79 = por %p77, %p78
    %p80 = scmp.ne.s32.totalorder %s72, %s75
    %p81 = scmp.eq.s32.totalorder %s12, 0
    %p82 = por %p80, %p81
    %p83 = scmp.ne.s32.totalorder %s72, %s75
    %p84 = scmp.eq.s32.totalorder %s17, 7
    %p85 = por %p83, %p84
    %p86 = scmp.ne.s32.totalorder %s75, %s76
    %p87 = scmp.eq.s32.totalorder %s17, 0
    %p88 = por %p86, %p87
    %p89 = scmp.ne.s32.totalorder %s75, %s76
    %p90 = scmp.eq.s32.totalorder %s18, 7
    %p91 = por %p89, %p90
    %p93 = scmp.ne.s32.totalorder %s76, %s92
    %p94 = scmp.eq.s32.totalorder %s18, 0
    %p95 = por %p93, %p94
    %s96 = smul.u32 %s20, 8
    %s97 = sadd.s32 %s96, 8
    %p98 = scmp.lt.s32.totalorder %s97, 31
    %s99 = scalar_select %p98, %s97, 31
    %s100 = smul.u32 %s27, 8
    %s101 = sadd.s32 %s100, 8
    %p102 = scmp.lt.s32.totalorder %s101, 31
    %s103 = scalar_select %p102, %s101, 31
    %s104 = ssub.s32 %s19, %s31
    %s105 = ssub.s32 %s99, %s103
    %s106 = sor.u32 %s104, %s105
    %p107 = scmp.eq.s32.totalorder %s106, 0
    %s109 = sadd.s32 %s108, 1
    %s110 = scalar_select %p107, %s108, %s109
    %p113 = pneg %p107
    %p114 = scmp.eq.s32.totalorder %s12, 7
    %p115 = por %p113, %p114
    %p116 = scmp.ne.s32.totalorder %s108, %s111
    %p117 = scmp.eq.s32.totalorder %s12, 0
    %p118 = por %p116, %p117
    %p119 = scmp.ne.s32.totalorder %s108, %s111
    %p120 = scmp.eq.s32.totalorder %s17, 7
    %p121 = por %p119, %p120
    %p122 = scmp.ne.s32.totalorder %s111, %s112
    %p123 = scmp.eq.s32.totalorder %s17, 0
    %p124 = por %p122, %p123
    %p125 = scmp.ne.s32.totalorder %s111, %s112
    %p126 = scmp.eq.s32.totalorder %s18, 7
    %p127 = por %p125, %p126
    %p129 = scmp.ne.s32.totalorder %s112, %s128
    %p130 = scmp.eq.s32.totalorder %s18, 0
    %p131 = por %p129, %p130
    %s133 = sadd.s32 %s132, 1
    %p136 = scmp.eq.s32.totalorder %s12, 7
    %p137 = scmp.ne.s32.totalorder %s132, %s134
    %p138 = scmp.eq.s32.totalorder %s12, 0
    %p139 = por %p137, %p138
    %p140 = scmp.ne.s32.totalorder %s132, %s134
    %p141 = scmp.eq.s32.totalorder %s17, 7
    %p142 = por %p140, %p141
    %p143 = scmp.ne.s32.totalorder %s134, %s135
    %p144 = scmp.eq.s32.totalorder %s17, 0
    %p145 = por %p143, %p144
    %p146 = scmp.ne.s32.totalorder %s134, %s135
    %p147 = scmp.eq.s32.totalorder %s18, 7
    %p148 = por %p146, %p147
    %p150 = scmp.ne.s32.totalorder %s135, %s149
    %p151 = scmp.eq.s32.totalorder %s18, 0
    %p152 = por %p150, %p151
    %s154 = sadd.s32 %s153, 1
    %p157 = scmp.eq.s32.totalorder %s12, 7
    %p158 = scmp.ne.s32.totalorder %s153, %s155
    %p159 = scmp.eq.s32.totalorder %s12, 0
    %p160 = por %p158, %p159
    %p161 = scmp.ne.s32.totalorder %s153, %s155
    %p162 = scmp.eq.s32.totalorder %s17, 7
    %p163 = por %p161, %p162
    %p164 = scmp.ne.s32.totalorder %s155, %s156
    %p165 = scmp.eq.s32.totalorder %s17, 0
    %p166 = por %p164, %p165
    %p167 = scmp.ne.s32.totalorder %s155, %s156
    %p168 = scmp.eq.s32.totalorder %s18, 7
    %p169 = por %p167, %p168
    %p171 = scmp.ne.s32.totalorder %s156, %s170
    %p172 = scmp.eq.s32.totalorder %s18, 0
    %p173 = por %p171, %p172
    %s175 = sadd.s32 %s174, 1
    %p178 = scmp.eq.s32.totalorder %s12, 7
    %p179 = scmp.ne.s32.totalorder %s174, %s176
    %p180 = scmp.eq.s32.totalorder %s12, 0
    %p181 = por %p179, %p180
    %p182 = scmp.ne.s32.totalorder %s174, %s176
    %p183 = scmp.eq.s32.totalorder %s17, 7
    %p184 = por %p182, %p183
    %p185 = scmp.ne.s32.totalorder %s176, %s177
    %p186 = scmp.eq.s32.totalorder %s17, 0
    %p187 = por %p185, %p186
    %p188 = scmp.ne.s32.totalorder %s176, %s177
    %p189 = scmp.eq.s32.totalorder %s18, 7
    %p190 = por %p188, %p189
    %p192 = scmp.ne.s32.totalorder %s177, %s191
    %p193 = scmp.eq.s32.totalorder %s18, 0
    %p194 = por %p192, %p193
    %s195 = ssub.s32 %s19, %s31
    %s196 = ssub.s32 %s20, %s27
    %s197 = sor.u32 %s195, %s196
    %p198 = scmp.eq.s32.totalorder %s197, 0
    %s200 = sadd.s32 %s199, 1
    %s201 = scalar_select %p198, %s199, %s200
    %p204 = pneg %p198
    %p205 = scmp.eq.s32.totalorder %s12, 7
    %p206 = por %p204, %p205
    %p207 = scmp.ne.s32.totalorder %s199, %s202
    %p208 = scmp.eq.s32.totalorder %s12, 0
    %p209 = por %p207, %p208
    %p210 = scmp.ne.s32.totalorder %s199, %s202
    %p211 = scmp.eq.s32.totalorder %s17, 7
    %p212 = por %p210, %p211
    %p213 = scmp.ne.s32.totalorder %s202, %s203
    %p214 = scmp.eq.s32.totalorder %s17, 0
    %p215 = por %p213, %p214
    %p216 = scmp.ne.s32.totalorder %s202, %s203
    %p217 = scmp.eq.s32.totalorder %s18, 7
    %p218 = por %p216, %p217
    %p220 = scmp.ne.s32.totalorder %s203, %s219
    %p221 = scmp.eq.s32.totalorder %s18, 0
    %p222 = por %p220, %p221
    %p223 = scmp.le.s32.totalorder 1, %s12
    %p224 = scmp.lt.s32.totalorder %s12, 9
    %p225 = pnand %p223, %p224
    %p226 = pneg %p225
    // Predicated region
    $region9: #{decoder_block_forward.5} parent=5 // pred_check
      _
    $region10: #{decoder_block_forward.5} parent=5 // pred_check_branch
      %228 = sbr.rel (%p225) target = $region12
    $region11: #{decoder_block_forward.5} parent=5 // pred_region
      %s229 = ssub.s32 %s12, 1
      // Predicated region
      $region13: #{decoder_block_forward.5} parent=11 // pred_check
        %p230 = pneg %p145
      $region14: #{decoder_block_forward.5} parent=11 // pred_check_branch
        %232 = sbr.rel (%p230) target = $region16
      $region15: #{decoder_block_forward.5} parent=11 // pred_region
        _
      $region16: #{decoder_block_forward.5} parent=11 // pred_fallthru
        _
      // Predicated region
      $region17: #{decoder_block_forward.5} parent=11 // pred_check
        %p233 = pneg %p166
      $region18: #{decoder_block_forward.5} parent=11 // pred_check_branch
        %235 = sbr.rel (%p233) target = $region20
      $region19: #{decoder_block_forward.5} parent=11 // pred_region
        _
      $region20: #{decoder_block_forward.5} parent=11 // pred_fallthru
        _
      // Predicated region
      $region21: #{decoder_block_forward.5} parent=11 // pred_check
        %p236 = pneg %p187
      $region22: #{decoder_block_forward.5} parent=11 // pred_check_branch
        %238 = sbr.rel (%p236) target = $region24
      $region23: #{decoder_block_forward.5} parent=11 // pred_region
        _
      $region24: #{decoder_block_forward.5} parent=11 // pred_fallthru
        _
    $region12: #{decoder_block_forward.5} parent=5 // pred_fallthru
      _
    %p239 = scmp.lt.s32.totalorder %s12, 8
    // Predicated region
    $region25: #{decoder_block_forward.5} parent=5 // pred_check
      %p240 = pneg %p239
    $region26: #{decoder_block_forward.5} parent=5 // pred_check_branch
      %242 = sbr.rel (%p240) target = $region28
    $region27: #{decoder_block_forward.5} parent=5 // pred_region
      // Predicated region
      $region29: #{decoder_block_forward.5} parent=27 // pred_check
        %p243 = pneg %p54
      $region30: #{decoder_block_forward.5} parent=27 // pred_check_branch
        %245 = sbr.rel (%p243) target = $region32
      $region31: #{decoder_block_forward.5} parent=27 // pred_region
        %s246 = smul.u32 %s20, 8
        %s247 = ssub.s32 %s246, 1
        %p248 = scmp.gt.s32.totalorder %s247, 0
        %s249 = scalar_select %p248, %s247, 0
        %p250 = scmp.lt.s32.totalorder %s19, 1
        %s251 = scalar_select %p250, %s19, 1
        %p252 = scmp.lt.s32.totalorder %s249, 31
        %s253 = scalar_select %p252, %s249, 31
        %s254 = smul.addr %s253, 4
        %s255 = smul.addr %s251, 128
        %s256 = sadd.s32 %s254, %s255
        %s257 = smul.addr %s256, 4
        %s258 = scalar_lea.vmem %s0, %s257
        %s259 = smul.u32 %s20, 8
        %s260 = ssub.s32 %s259, 1
        %p261 = scmp.gt.s32.totalorder %s260, 0
        %s262 = scalar_select %p261, %s260, 0
      $region32: #{decoder_block_forward.5} parent=27 // pred_fallthru
        _
      // Predicated region
      $region33: #{decoder_block_forward.5} parent=27 // pred_check
        %p263 = pneg %p82
      $region34: #{decoder_block_forward.5} parent=27 // pred_check_branch
        %265 = sbr.rel (%p263) target = $region36
      $region35: #{decoder_block_forward.5} parent=27 // pred_region
        %s266 = smul.u32 8, %s20
        %p267 = scmp.lt.s32.totalorder %s19, 1
        %s268 = scalar_select %p267, %s19, 1
        %p269 = scmp.lt.s32.totalorder %s266, 31
        %s270 = scalar_select %p269, %s266, 31
        %s271 = smul.addr %s270, 4
        %s272 = smul.addr %s268, 128
        %s273 = sadd.s32 %s271, %s272
        %s274 = smul.addr %s273, 4
        %s275 = scalar_lea.vmem %s1, %s274
        %s276 = smul.u32 8, %s20
      $region36: #{decoder_block_forward.5} parent=27 // pred_fallthru
        _
      // Predicated region
      $region37: #{decoder_block_forward.5} parent=27 // pred_check
        %p277 = pneg %p118
      $region38: #{decoder_block_forward.5} parent=27 // pred_check_branch
        %279 = sbr.rel (%p277) target = $region40
      $region39: #{decoder_block_forward.5} parent=27 // pred_region
        %s280 = smul.u32 %s20, 8
        %s281 = sadd.s32 %s280, 8
        %p282 = scmp.lt.s32.totalorder %s281, 31
        %s283 = scalar_select %p282, %s281, 31
        %p284 = scmp.lt.s32.totalorder %s19, 1
        %s285 = scalar_select %p284, %s19, 1
        %p286 = scmp.lt.s32.totalorder %s283, 31
        %s287 = scalar_select %p286, %s283, 31
        %s288 = smul.addr %s287, 4
        %s289 = smul.addr %s285, 128
        %s290 = sadd.s32 %s288, %s289
        %s291 = smul.addr %s290, 4
        %s292 = scalar_lea.vmem %s2, %s291
        %s293 = smul.u32 %s20, 8
        %s294 = sadd.s32 %s293, 8
        %p295 = scmp.lt.s32.totalorder %s294, 31
        %s296 = scalar_select %p295, %s294, 31
      $region40: #{decoder_block_forward.5} parent=27 // pred_fallthru
        _
    $region28: #{decoder_block_forward.5} parent=5 // pred_fallthru
      _
    %p297 = scmp.le.s32.totalorder 1, %s12
    %p298 = scmp.lt.s32.totalorder %s12, 9
    %p299 = pnand %p297, %p298
    %p300 = pneg %p299
    // Predicated region
    $region41: #{decoder_block_forward.5} parent=5 // pred_check
      _
    $region42: #{decoder_block_forward.5} parent=5 // pred_check_branch
      %302 = sbr.rel (%p299) target = $region44
    $region43: #{decoder_block_forward.5} parent=5 // pred_region
      %s303 = ssub.s32 %s12, 1
      %s304 = smul.u32 %s22, 8
      %s305 = ssub.s32 %s304, 1
      %p306 = scmp.gt.s32.totalorder %s305, 0
      %s307 = scalar_select %p306, %s305, 0
      %p308 = scmp.lt.s32.totalorder %s21, 1
      %s309 = scalar_select %p308, %s21, 1
      %p310 = scmp.lt.s32.totalorder %s307, 31
      %s311 = scalar_select %p310, %s307, 31
      %s312 = smul.addr %s311, 4
      %s313 = smul.addr %s309, 128
      %s314 = sadd.s32 %s312, %s313
      %s315 = smul.addr %s314, 4
      %s316 = scalar_lea.vmem %s0, %s315
      %p317 = pneg %p60
      %p318 = pneg %p57
      %s319 = smul.u32 8, %s22
      %p320 = scmp.lt.s32.totalorder %s21, 1
      %s321 = scalar_select %p320, %s21, 1
      %p322 = scmp.lt.s32.totalorder %s319, 31
      %s323 = scalar_select %p322, %s319, 31
      %s324 = smul.addr %s323, 4
      %s325 = smul.addr %s321, 128
      %s326 = sadd.s32 %s324, %s325
      %s327 = smul.addr %s326, 4
      %s328 = scalar_lea.vmem %s1, %s327
      %p329 = pneg %p88
      %p330 = pneg %p85
      %s331 = smul.u32 %s22, 8
      %s332 = sadd.s32 %s331, 8
      %p333 = scmp.lt.s32.totalorder %s332, 31
      %s334 = scalar_select %p333, %s332, 31
      %p335 = scmp.lt.s32.totalorder %s21, 1
      %s336 = scalar_select %p335, %s21, 1
      %p337 = scmp.lt.s32.totalorder %s334, 31
      %s338 = scalar_select %p337, %s334, 31
      %s339 = smul.addr %s338, 4
      %s340 = smul.addr %s336, 128
      %s341 = sadd.s32 %s339, %s340
      %s342 = smul.addr %s341, 4
      %s343 = scalar_lea.vmem %s2, %s342
      %p344 = pneg %p124
      %p345 = pneg %p121
      %p346 = pneg %p145
      %p347 = pneg %p142
      %p348 = pneg %p166
      %p349 = pneg %p163
      %p350 = pneg %p187
      %p351 = pneg %p184
      %p352 = pneg %p215
      %p353 = pneg %p212
      %s354 = smul.u32 8, %s22
      %p355 = scmp.lt.s32.totalorder %s21, 1
      %s356 = scalar_select %p355, %s21, 1
      %p357 = scmp.lt.s32.totalorder %s354, 31
      %s358 = scalar_select %p357, %s354, 31
      %s359 = smul.addr %s358, 4
      %s360 = smul.addr %s356, 128
      %s361 = sadd.s32 %s359, %s360
      %s362 = smul.addr %s361, 4
      %s363 = scalar_lea.vmem %s6, %s362
      %s364 = smul.u32 %s22, 8
      %s365 = ssub.s32 %s364, 1
      %p366 = scmp.gt.s32.totalorder %s365, 0
      %s367 = scalar_select %p366, %s365, 0
      %p368 = scmp.lt.s32.totalorder %s21, 1
      %s369 = scalar_select %p368, %s21, 1
      %p370 = scmp.lt.s32.totalorder %s367, 31
      %s371 = scalar_select %p370, %s367, 31
      %s372 = smul.addr %s371, 4
      %s373 = smul.addr %s369, 128
      %s374 = sadd.s32 %s372, %s373
      %s375 = smul.addr %s374, 4
      %s376 = scalar_lea.vmem %s0, %s375
      %s377 = smul.u32 %s22, 8
      %s378 = ssub.s32 %s377, 1
      %p379 = scmp.gt.s32.totalorder %s378, 0
      %s380 = scalar_select %p379, %s378, 0
      %s381 = smul.u32 8, %s22
      %p382 = scmp.lt.s32.totalorder %s21, 1
      %s383 = scalar_select %p382, %s21, 1
      %p384 = scmp.lt.s32.totalorder %s381, 31
      %s385 = scalar_select %p384, %s381, 31
      %s386 = smul.addr %s385, 4
      %s387 = smul.addr %s383, 128
      %s388 = sadd.s32 %s386, %s387
      %s389 = smul.addr %s388, 4
      %s390 = scalar_lea.vmem %s1, %s389
      %s391 = smul.u32 8, %s22
      %s392 = smul.u32 %s22, 8
      %s393 = sadd.s32 %s392, 8
      %p394 = scmp.lt.s32.totalorder %s393, 31
      %s395 = scalar_select %p394, %s393, 31
      %p396 = scmp.lt.s32.totalorder %s21, 1
      %s397 = scalar_select %p396, %s21, 1
      %p398 = scmp.lt.s32.totalorder %s395, 31
      %s399 = scalar_select %p398, %s395, 31
      %s400 = smul.addr %s399, 4
      %s401 = smul.addr %s397, 128
      %s402 = sadd.s32 %s400, %s401
      %s403 = smul.addr %s402, 4
      %s404 = scalar_lea.vmem %s2, %s403
      %s405 = smul.u32 %s22, 8
      %s406 = sadd.s32 %s405, 8
      %p407 = scmp.lt.s32.totalorder %s406, 31
      %s408 = scalar_select %p407, %s406, 31
      %s409 = smul.u32 8, %s22
      %p410 = scmp.lt.s32.totalorder %s21, 1
      %s411 = scalar_select %p410, %s21, 1
      %p412 = scmp.lt.s32.totalorder %s409, 31
      %s413 = scalar_select %p412, %s409, 31
      %s414 = smul.addr %s413, 4
      %s415 = smul.addr %s411, 128
      %s416 = sadd.s32 %s414, %s415
      %s417 = smul.addr %s416, 4
      %s418 = scalar_lea.vmem %s6, %s417
      %s419 = smul.u32 8, %s22
      %v421 = vld [vmem:[%s390] sm:$0xf]
      %v422 = vld [vmem:[%s390 + $0x4] sm:$0xf]
      %v423 = vld [vmem:[%s390 + $0x8] sm:$0xf]
      %v424 = vld [vmem:[%s390 + $0xc] sm:$0xf]
      %v425 = vld [vmem:[%s390 + $0x10] sm:$0xf]
      %v426 = vld [vmem:[%s390 + $0x14] sm:$0xf]
      %v427 = vld [vmem:[%s390 + $0x18] sm:$0xf]
      %v428 = vld [vmem:[%s390 + $0x1c] sm:$0xf]
      %v429 = vld [vmem:[%s390 + $0x20] sm:$0xf]
      %v430 = vld [vmem:[%s390 + $0x24] sm:$0xf]
      %v431 = vld [vmem:[%s390 + $0x28] sm:$0xf]
      %v432 = vld [vmem:[%s390 + $0x2c] sm:$0xf]
      %v433 = vld [vmem:[%s390 + $0x30] sm:$0xf]
      %v434 = vld [vmem:[%s390 + $0x34] sm:$0xf]
      %v435 = vld [vmem:[%s390 + $0x38] sm:$0xf]
      %v436 = vld [vmem:[%s390 + $0x3c] sm:$0xf]
      %v437 = vld [vmem:[%s390 + $0x40] sm:$0xf]
      %v438 = vld [vmem:[%s390 + $0x44] sm:$0xf]
      %v439 = vld [vmem:[%s390 + $0x48] sm:$0xf]
      %v440 = vld [vmem:[%s390 + $0x4c] sm:$0xf]
      %v441 = vld [vmem:[%s390 + $0x50] sm:$0xf]
      %v442 = vld [vmem:[%s390 + $0x54] sm:$0xf]
      %v443 = vld [vmem:[%s390 + $0x58] sm:$0xf]
      %v444 = vld [vmem:[%s390 + $0x5c] sm:$0xf]
      %v445 = vld [vmem:[%s390 + $0x60] sm:$0xf]
      %v446 = vld [vmem:[%s390 + $0x64] sm:$0xf]
      %v447 = vld [vmem:[%s390 + $0x68] sm:$0xf]
      %v448 = vld [vmem:[%s390 + $0x6c] sm:$0xf]
      %v449 = vld [vmem:[%s390 + $0x70] sm:$0xf]
      %v450 = vld [vmem:[%s390 + $0x74] sm:$0xf]
      %v451 = vld [vmem:[%s390 + $0x78] sm:$0xf]
      %v452 = vld [vmem:[%s390 + $0x7c] sm:$0xf]
      %v485 = vunpack.c.l.b16 %v421
      %v486 = vunpack.c.l.b16 %v422
      %v487 = vunpack.c.l.b16 %v423
      %v488 = vunpack.c.l.b16 %v424
      %v489 = vunpack.c.l.b16 %v425
      %v490 = vunpack.c.l.b16 %v426
      %v491 = vunpack.c.l.b16 %v427
      %v492 = vunpack.c.l.b16 %v428
      %v493 = vunpack.c.l.b16 %v429
      %v494 = vunpack.c.l.b16 %v430
      %v495 = vunpack.c.l.b16 %v431
      %v496 = vunpack.c.l.b16 %v432
      %v497 = vunpack.c.l.b16 %v433
      %v498 = vunpack.c.l.b16 %v434
      %v499 = vunpack.c.l.b16 %v435
      %v500 = vunpack.c.l.b16 %v436
      %v501 = vunpack.c.l.b16 %v437
      %v502 = vunpack.c.l.b16 %v438
      %v503 = vunpack.c.l.b16 %v439
      %v504 = vunpack.c.l.b16 %v440
      %v505 = vunpack.c.l.b16 %v441
      %v506 = vunpack.c.l.b16 %v442
      %v507 = vunpack.c.l.b16 %v443
      %v508 = vunpack.c.l.b16 %v444
      %v509 = vunpack.c.l.b16 %v445
      %v510 = vunpack.c.l.b16 %v446
      %v511 = vunpack.c.l.b16 %v447
      %v512 = vunpack.c.l.b16 %v448
      %v513 = vunpack.c.l.b16 %v449
      %v514 = vunpack.c.l.b16 %v450
      %v515 = vunpack.c.l.b16 %v451
      %v516 = vunpack.c.l.b16 %v452
      %v517 = vpack.c.b16 %v486, %v485
      %v518 = vpack.c.b16 %v488, %v487
      %v519 = vpack.c.b16 %v490, %v489
      %v520 = vpack.c.b16 %v492, %v491
      %v521 = vpack.c.b16 %v494, %v493
      %v522 = vpack.c.b16 %v496, %v495
      %v523 = vpack.c.b16 %v498, %v497
      %v524 = vpack.c.b16 %v500, %v499
      %v525 = vpack.c.b16 %v502, %v501
      %v526 = vpack.c.b16 %v504, %v503
      %v527 = vpack.c.b16 %v506, %v505
      %v528 = vpack.c.b16 %v508, %v507
      %v529 = vpack.c.b16 %v510, %v509
      %v530 = vpack.c.b16 %v512, %v511
      %v531 = vpack.c.b16 %v514, %v513
      %v532 = vpack.c.b16 %v516, %v515
      %s549 = scalar_lea.vmem [#allocation2], 16
      %550 = vst [vmem:[%s549] sm:$0xff] %v517
      %551 = vst [vmem:[%s549 + $0x8] sm:$0xff] %v518
      %552 = vst [vmem:[%s549 + $0x10] sm:$0xff] %v519
      %553 = vst [vmem:[%s549 + $0x18] sm:$0xff] %v520
      %554 = vst [vmem:[%s549 + $0x20] sm:$0xff] %v521
      %555 = vst [vmem:[%s549 + $0x28] sm:$0xff] %v522
      %556 = vst [vmem:[%s549 + $0x30] sm:$0xff] %v523
      %557 = vst [vmem:[%s549 + $0x38] sm:$0xff] %v524
      %558 = vst [vmem:[%s549 + $0x40] sm:$0xff] %v525
      %559 = vst [vmem:[%s549 + $0x48] sm:$0xff] %v526
      %560 = vst [vmem:[%s549 + $0x50] sm:$0xff] %v527
      %561 = vst [vmem:[%s549 + $0x58] sm:$0xff] %v528
      %562 = vst [vmem:[%s549 + $0x60] sm:$0xff] %v529
      %563 = vst [vmem:[%s549 + $0x68] sm:$0xff] %v530
      %564 = vst [vmem:[%s549 + $0x70] sm:$0xff] %v531
      %565 = vst [vmem:[%s549 + $0x78] sm:$0xff] %v532
      %p566 = scmp.eq.s32.totalorder %s22, 0
      // Predicated region
      $region45: #{decoder_block_forward.5} parent=43 // pred_check
        %p567 = pneg %p566
      $region46: #{decoder_block_forward.5} parent=43 // pred_check_branch
        %569 = sbr.rel (%p567) target = $region48
      $region47: #{decoder_block_forward.5} parent=43 // pred_region
        %570 = vst [vmem:[#allocation2] sm:$0xff] 0
        %571 = vst [vmem:[#allocation2 + $0x8] sm:$0xff] 0
      $region48: #{decoder_block_forward.5} parent=43 // pred_fallthru
        _
      %p572 = scmp.gt.s32.totalorder %s22, 0
      // Predicated region
      $region49: #{decoder_block_forward.5} parent=43 // pred_check
        %p573 = pneg %p572
      $region50: #{decoder_block_forward.5} parent=43 // pred_check_branch
        %575 = sbr.rel (%p573) target = $region52
      $region51: #{decoder_block_forward.5} parent=43 // pred_region
        %v576 = vld [vmem:[%s376] sm:$0xf]
        %v577 = vld [vmem:[%s376 + $0x4] sm:$0xf]
        %v578 = vld [vmem:[%s376 + $0x8] sm:$0xf]
        %v579 = vld [vmem:[%s376 + $0xc] sm:$0xf]
        %v584 = vunpack.c.l.b16 %v576
        %v585 = vunpack.c.l.b16 %v577
        %v586 = vunpack.c.l.b16 %v578
        %v587 = vunpack.c.l.b16 %v579
        %v588 = vpack.c.b16 %v585, %v584
        %v589 = vpack.c.b16 %v587, %v586
        %592 = vst [vmem:[#allocation2] sm:$0xff] %v588
        %593 = vst [vmem:[#allocation2 + $0x8] sm:$0xff] %v589
      $region52: #{decoder_block_forward.5} parent=43 // pred_fallthru
        _
      %p594 = scmp.eq.s32.totalorder %s22, 3
      // Predicated region
      $region53: #{decoder_block_forward.5} parent=43 // pred_check
        %p595 = pneg %p594
      $region54: #{decoder_block_forward.5} parent=43 // pred_check_branch
        %597 = sbr.rel (%p595) target = $region56
      $region55: #{decoder_block_forward.5} parent=43 // pred_region
        %s598 = scalar_lea.vmem [#allocation2], 144
        %599 = vst [vmem:[%s598] sm:$0xff] 0
        %600 = vst [vmem:[%s598 + $0x8] sm:$0xff] 0
      $region56: #{decoder_block_forward.5} parent=43 // pred_fallthru
        _
      %p601 = scmp.lt.s32.totalorder %s22, 3
      // Predicated region
      $region57: #{decoder_block_forward.5} parent=43 // pred_check
        %p602 = pneg %p601
      $region58: #{decoder_block_forward.5} parent=43 // pred_check_branch
        %604 = sbr.rel (%p602) target = $region60
      $region59: #{decoder_block_forward.5} parent=43 // pred_region
        %v605 = vld [vmem:[%s404] sm:$0xf]
        %v606 = vld [vmem:[%s404 + $0x4] sm:$0xf]
        %v607 = vld [vmem:[%s404 + $0x8] sm:$0xf]
        %v608 = vld [vmem:[%s404 + $0xc] sm:$0xf]
        %v613 = vunpack.c.l.b16 %v605
        %v614 = vunpack.c.l.b16 %v606
        %v615 = vunpack.c.l.b16 %v607
        %v616 = vunpack.c.l.b16 %v608
        %v617 = vpack.c.b16 %v614, %v613
        %v618 = vpack.c.b16 %v616, %v615
        %s621 = scalar_lea.vmem [#allocation2], 144
        %622 = vst [vmem:[%s621] sm:$0xff] %v617
        %623 = vst [vmem:[%s621 + $0x8] sm:$0xff] %v618
      $region60: #{decoder_block_forward.5} parent=43 // pred_fallthru
        _
      %v624 = vld [vmem:[#allocation2] sm:$0xff]
      %v625 = vld [vmem:[#allocation2 + $0x8] sm:$0xff]
      %v626 = vld [vmem:[#allocation2 + $0x10] sm:$0xff]
      %v627 = vld [vmem:[#allocation2 + $0x18] sm:$0xff]
      %v628 = vld [vmem:[#allocation2 + $0x20] sm:$0xff]
      %v629 = vld [vmem:[#allocation2 + $0x28] sm:$0xff]
      %v630 = vld [vmem:[#allocation2 + $0x30] sm:$0xff]
      %v631 = vld [vmem:[#allocation2 + $0x38] sm:$0xff]
      %v632 = vld [vmem:[#allocation2 + $0x40] sm:$0xff]
      %v633 = vld [vmem:[#allocation2 + $0x48] sm:$0xff]
      %v634 = vld [vmem:[#allocation2 + $0x50] sm:$0xff]
      %v635 = vld [vmem:[#allocation2 + $0x58] sm:$0xff]
      %v636 = vld [vmem:[#allocation2 + $0x60] sm:$0xff]
      %v637 = vld [vmem:[#allocation2 + $0x68] sm:$0xff]
      %v638 = vld [vmem:[#allocation2 + $0x70] sm:$0xff]
      %v639 = vld [vmem:[#allocation2 + $0x78] sm:$0xff]
      %v640 = vld [vmem:[#allocation2 + $0x80] sm:$0xff]
      %v641 = vld [vmem:[#allocation2 + $0x88] sm:$0xff]
      %v642 = vld [vmem:[#allocation2 + $0x90] sm:$0xff]
      %v643 = vld [vmem:[#allocation2 + $0x98] sm:$0xff]
      %vm644 = vsmask.f32 256
      %v646 = vshrl.u32 %v624, 16
      %v648 = vrot.slane %v646, 7
      %v649 = vshll.u32 %v624, 16
      %v651 = vor.u32 %v648, %v649
      %v653 = vshrl.u32 %v625, 16
      %v655 = vrot.slane %v653, 7
      %v656 = vshll.u32 %v625, 16
      %v658 = vor.u32 %v655, %v656
      %v659 = vsel %vm644, %v648, %v658
      %v661 = vshrl.u32 %v626, 16
      %v663 = vrot.slane %v661, 7
      %v664 = vshll.u32 %v626, 16
      %v666 = vor.u32 %v663, %v664
      %v668 = vshrl.u32 %v627, 16
      %v670 = vrot.slane %v668, 7
      %v671 = vshll.u32 %v627, 16
      %v673 = vor.u32 %v670, %v671
      %v674 = vsel %vm644, %v663, %v673
      %v676 = vshrl.u32 %v628, 16
      %v678 = vrot.slane %v676, 7
      %v679 = vshll.u32 %v628, 16
      %v681 = vor.u32 %v678, %v679
      %v683 = vshrl.u32 %v629, 16
      %v685 = vrot.slane %v683, 7
      %v686 = vshll.u32 %v629, 16
      %v688 = vor.u32 %v685, %v686
      %v689 = vsel %vm644, %v678, %v688
      %v691 = vshrl.u32 %v630, 16
      %v693 = vrot.slane %v691, 7
      %v694 = vshll.u32 %v630, 16
      %v696 = vor.u32 %v693, %v694
      %v698 = vshrl.u32 %v631, 16
      %v700 = vrot.slane %v698, 7
      %v701 = vshll.u32 %v631, 16
      %v703 = vor.u32 %v700, %v701
      %v704 = vsel %vm644, %v693, %v703
      %v706 = vshrl.u32 %v632, 16
      %v708 = vrot.slane %v706, 7
      %v709 = vshll.u32 %v632, 16
      %v711 = vor.u32 %v708, %v709
      %v713 = vshrl.u32 %v633, 16
      %v715 = vrot.slane %v713, 7
      %v716 = vshll.u32 %v633, 16
      %v718 = vor.u32 %v715, %v716
      %v719 = vsel %vm644, %v708, %v718
      %v721 = vshrl.u32 %v634, 16
      %v723 = vrot.slane %v721, 7
      %v724 = vshll.u32 %v634, 16
      %v726 = vor.u32 %v723, %v724
      %v728 = vshrl.u32 %v635, 16
      %v730 = vrot.slane %v728, 7
      %v731 = vshll.u32 %v635, 16
      %v733 = vor.u32 %v730, %v731
      %v734 = vsel %vm644, %v723, %v733
      %v736 = vshrl.u32 %v636, 16
      %v738 = vrot.slane %v736, 7
      %v739 = vshll.u32 %v636, 16
      %v741 = vor.u32 %v738, %v739
      %v743 = vshrl.u32 %v637, 16
      %v745 = vrot.slane %v743, 7
      %v746 = vshll.u32 %v637, 16
      %v748 = vor.u32 %v745, %v746
      %v749 = vsel %vm644, %v738, %v748
      %v751 = vshrl.u32 %v638, 16
      %v753 = vrot.slane %v751, 7
      %v754 = vshll.u32 %v638, 16
      %v756 = vor.u32 %v753, %v754
      %v758 = vshrl.u32 %v639, 16
      %v760 = vrot.slane %v758, 7
      %v761 = vshll.u32 %v639, 16
      %v763 = vor.u32 %v760, %v761
      %v764 = vsel %vm644, %v753, %v763
      %v766 = vshrl.u32 %v640, 16
      %v768 = vrot.slane %v766, 7
      %v769 = vshll.u32 %v640, 16
      %v771 = vor.u32 %v768, %v769
      %v773 = vshrl.u32 %v641, 16
      %v775 = vrot.slane %v773, 7
      %v776 = vshll.u32 %v641, 16
      %v778 = vor.u32 %v775, %v776
      %v779 = vsel %vm644, %v768, %v778
      %v781 = vshrl.u32 %v642, 16
      %v783 = vrot.slane %v781, 7
      %v784 = vshll.u32 %v642, 16
      %v786 = vor.u32 %v783, %v784
      %v788 = vshrl.u32 %v643, 16
      %v790 = vrot.slane %v788, 7
      %v791 = vshll.u32 %v643, 16
      %v793 = vor.u32 %v790, %v791
      %v794 = vsel %vm644, %v783, %v793
      %vm815 = vcmask 1040384
      %vm816 = vmand %vm815, %vm644
      %v817 = vsel %vm816, 0, %v651
      %v818 = vsel %vm816, 0, %v666
      %v819 = vsel %vm816, 0, %v681
      %v820 = vsel %vm816, 0, %v696
      %v821 = vsel %vm816, 0, %v711
      %v822 = vsel %vm816, 0, %v726
      %v823 = vsel %vm816, 0, %v741
      %v824 = vsel %vm816, 0, %v756
      %v825 = vsel %vm816, 0, %v771
      %v826 = vsel %vm816, 0, %v786
      %v827 = vld [vmem:[%s3] sm:$0xf]
      %v828 = vld [vmem:[%s3 + $0x4] sm:$0xf]
      %v829 = vld [vmem:[%s3 + $0x8] sm:$0xf]
      %v830 = vld [vmem:[%s3 + $0xc] sm:$0xf]
      %v831 = vld [vmem:[%s3 + $0x10] sm:$0xf]
      %v832 = vld [vmem:[%s3 + $0x14] sm:$0xf]
      %v833 = vld [vmem:[%s3 + $0x18] sm:$0xf]
      %v834 = vld [vmem:[%s3 + $0x1c] sm:$0xf]
      %v835 = vld [vmem:[%s3 + $0x20] sm:$0xf]
      %v836 = vld [vmem:[%s3 + $0x24] sm:$0xf]
      %v837 = vld [vmem:[%s3 + $0x28] sm:$0xf]
      %v838 = vld [vmem:[%s3 + $0x2c] sm:$0xf]
      %v839 = vld [vmem:[%s3 + $0x30] sm:$0xf]
      %v840 = vld [vmem:[%s3 + $0x34] sm:$0xf]
      %v841 = vld [vmem:[%s3 + $0x38] sm:$0xf]
      %v842 = vld [vmem:[%s3 + $0x3c] sm:$0xf]
      %s843 = scalar_lea.vmem %s3, 64
      %v844 = vld [vmem:[%s843] sm:$0xf]
      %v845 = vld [vmem:[%s843 + $0x4] sm:$0xf]
      %v846 = vld [vmem:[%s843 + $0x8] sm:$0xf]
      %v847 = vld [vmem:[%s843 + $0xc] sm:$0xf]
      %v848 = vld [vmem:[%s843 + $0x10] sm:$0xf]
      %v849 = vld [vmem:[%s843 + $0x14] sm:$0xf]
      %v850 = vld [vmem:[%s843 + $0x18] sm:$0xf]
      %v851 = vld [vmem:[%s843 + $0x1c] sm:$0xf]
      %v852 = vld [vmem:[%s843 + $0x20] sm:$0xf]
      %v853 = vld [vmem:[%s843 + $0x24] sm:$0xf]
      %v854 = vld [vmem:[%s843 + $0x28] sm:$0xf]
      %v855 = vld [vmem:[%s843 + $0x2c] sm:$0xf]
      %v856 = vld [vmem:[%s843 + $0x30] sm:$0xf]
      %v857 = vld [vmem:[%s843 + $0x34] sm:$0xf]
      %v858 = vld [vmem:[%s843 + $0x38] sm:$0xf]
      %v859 = vld [vmem:[%s843 + $0x3c] sm:$0xf]
      %v876 = vunpack.c.l.b16 %v844
      %v877 = vunpack.c.l.b16 %v845
      %v878 = vunpack.c.l.b16 %v846
      %v879 = vunpack.c.l.b16 %v847
      %v880 = vunpack.c.l.b16 %v848
      %v881 = vunpack.c.l.b16 %v849
      %v882 = vunpack.c.l.b16 %v850
      %v883 = vunpack.c.l.b16 %v851
      %v884 = vunpack.c.l.b16 %v852
      %v885 = vunpack.c.l.b16 %v853
      %v886 = vunpack.c.l.b16 %v854
      %v887 = vunpack.c.l.b16 %v855
      %v888 = vunpack.c.l.b16 %v856
      %v889 = vunpack.c.l.b16 %v857
      %v890 = vunpack.c.l.b16 %v858
      %v891 = vunpack.c.l.b16 %v859
      %v892 = vpack.c.b16 %v877, %v876
      %v893 = vpack.c.b16 %v879, %v878
      %v894 = vpack.c.b16 %v881, %v880
      %v895 = vpack.c.b16 %v883, %v882
      %v896 = vpack.c.b16 %v885, %v884
      %v897 = vpack.c.b16 %v887, %v886
      %v898 = vpack.c.b16 %v889, %v888
      %v899 = vpack.c.b16 %v891, %v890
      %908 = vmatprep.subr.bf16.mxu0 0
      %909 = vmatpush1.bf16.msra.mxu0 %v892
      %910 = vmatprep.subr.bf16.mxu0 0
      %911 = vmatpush1.bf16.msra.mxu0 %v893
      %912 = vmatprep.subr.bf16.mxu0 0
      %913 = vmatpush1.bf16.msra.mxu0 %v894
      %914 = vmatprep.subr.bf16.mxu0 0
      %915 = vmatpush1.bf16.msra.mxu0 %v895
      %916 = vmatprep.subr.bf16.mxu0 0
      %917 = vmatpush1.bf16.msra.mxu0 %v896
      %918 = vmatprep.subr.bf16.mxu0 0
      %919 = vmatpush1.bf16.msra.mxu0 %v897
      %920 = vmatprep.subr.bf16.mxu0 0
      %921 = vmatpush1.bf16.msra.mxu0 %v898
      %922 = vmatprep.subr.bf16.mxu0 0
      %923 = vmatpush1.bf16.msra.mxu0 %v899
      %924 = vmatprep.subr.bf16.mxu0 0
      %925 = vmatpush1.bf16.msra.mxu0 0
      %926 = vmatprep.subr.bf16.mxu0 0
      %927 = vmatpush1.bf16.msra.mxu0 0
      %928 = vmatprep.subr.bf16.mxu0 0
      %929 = vmatpush1.bf16.msra.mxu0 0
      %930 = vmatprep.subr.bf16.mxu0 0
      %931 = vmatpush1.bf16.msra.mxu0 0
      %932 = vmatprep.subr.bf16.mxu0 0
      %933 = vmatpush1.bf16.msra.mxu0 0
      %934 = vmatprep.subr.bf16.mxu0 0
      %935 = vmatpush1.bf16.msra.mxu0 0
      %936 = vmatprep.subr.bf16.mxu0 0
      %937 = vmatpush1.bf16.msra.mxu0 0
      %938 = vmatprep.subr.bf16.mxu0 0
      %939 = vmatpush1.bf16.msra.mxu0 0
      %940 = vmatprep.mubr.bf16.mxu0 0
      %941 = vmatmul.mubr.bf16.gmra.mrb[0].mxu0 %v818
      %v942 = vpop.f32.mrb[0].mxu0
      %v943 = vadd.f32 0.0, %v942
      %v944 = vpop.f32.mrb[0].mxu0
      %v945 = vpop.f32.mrb[0].mxu0
      %v946 = vadd.f32 0.0, %v945
      %v947 = vpop.f32.mrb[0].mxu0
      %948 = vmatprep.mubr.bf16.mxu0 0
      %949 = vmatmul.mubr.bf16.gmra.mrb[0].mxu0 %v674
      %v950 = vpop.f32.mrb[0].mxu0
      %v951 = vadd.f32 0.0, %v950
      %v952 = vpop.f32.mrb[0].mxu0
      %v953 = vpop.f32.mrb[0].mxu0
      %v954 = vadd.f32 0.0, %v953
      %v955 = vpop.f32.mrb[0].mxu0
      %956 = vmatprep.mubr.bf16.mxu0 0
      %957 = vmatmul.mubr.bf16.gmra.mrb[0].mxu0 %v819
      %v958 = vpop.f32.mrb[0].mxu0
      %v959 = vadd.f32 0.0, %v958
      %v960 = vpop.f32.mrb[0].mxu0
      %v961 = vpop.f32.mrb[0].mxu0
      %v962 = vadd.f32 0.0, %v961
      %v963 = vpop.f32.mrb[0].mxu0
      %964 = vmatprep.mubr.bf16.mxu0 0
      %965 = vmatmul.mubr.bf16.gmra.mrb[0].mxu0 %v689
      %v966 = vpop.f32.mrb[0].mxu0
      %v967 = vadd.f32 0.0, %v966
      %v968 = vpop.f32.mrb[0].mxu0
      %v969 = vpop.f32.mrb[0].mxu0
      %v970 = vadd.f32 0.0, %v969
      %v971 = vpop.f32.mrb[0].mxu0
      %972 = vmatprep.mubr.bf16.mxu0 0
      %973 = vmatmul.mubr.bf16.gmra.mrb[0].mxu0 %v820
      %v974 = vpop.f32.mrb[0].mxu0
      %v975 = vadd.f32 0.0, %v974
      %v976 = vpop.f32.mrb[0].mxu0
      %v977 = vpop.f32.mrb[0].mxu0
      %v978 = vadd.f32 0.0, %v977
      %v979 = vpop.f32.mrb[0].mxu0
      %980 = vmatprep.mubr.bf16.mxu0 0
      %981 = vmatmul.mubr.bf16.gmra.mrb[0].mxu0 %v704
      %v982 = vpop.f32.mrb[0].mxu0
      %v983 = vadd.f32 0.0, %v982
      %v984 = vpop.f32.mrb[0].mxu0
      %v985 = vpop.f32.mrb[0].mxu0
      %v986 = vadd.f32 0.0, %v985
      %v987 = vpop.f32.mrb[0].mxu0
      %988 = vmatprep.mubr.bf16.mxu0 0
      %989 = vmatmul.mubr.bf16.gmra.mrb[0].mxu0 %v821
      %v990 = vpop.f32.mrb[0].mxu0
      %v991 = vadd.f32 0.0, %v990
      %v992 = vpop.f32.mrb[0].mxu0
      %v993 = vpop.f32.mrb[0].mxu0
      %v994 = vadd.f32 0.0, %v993
      %v995 = vpop.f32.mrb[0].mxu0
      %996 = vmatprep.mubr.bf16.mxu0 0
      %997 = vmatmul.mubr.bf16.gmra.mrb[0].mxu0 %v719
      %v998 = vpop.f32.mrb[0].mxu0
      %v999 = vadd.f32 0.0, %v998
      %v1000 = vpop.f32.mrb[0].mxu0
      %v1001 = vpop.f32.mrb[0].mxu0
      %v1002 = vadd.f32 0.0, %v1001
      %v1003 = vpop.f32.mrb[0].mxu0
      %1004 = vmatprep.mubr.bf16.mxu0 0
      %1005 = vmatmul.mubr.bf16.gmra.mrb[0].mxu0 %v822
      %v1006 = vpop.f32.mrb[0].mxu0
      %v1007 = vadd.f32 0.0, %v1006
      %v1008 = vpop.f32.mrb[0].mxu0
      %v1009 = vpop.f32.mrb[0].mxu0
      %v1010 = vadd.f32 0.0, %v1009
      %v1011 = vpop.f32.mrb[0].mxu0
      %1012 = vmatprep.mubr.bf16.mxu0 0
      %1013 = vmatmul.mubr.bf16.gmra.mrb[0].mxu0 %v734
      %v1014 = vpop.f32.mrb[0].mxu0
      %v1015 = vadd.f32 0.0, %v1014
      %v1016 = vpop.f32.mrb[0].mxu0
      %v1017 = vpop.f32.mrb[0].mxu0
      %v1018 = vadd.f32 0.0, %v1017
      %v1019 = vpop.f32.mrb[0].mxu0
      %1020 = vmatprep.mubr.bf16.mxu0 0
      %1021 = vmatmul.mubr.bf16.gmra.mrb[0].mxu0 %v823
      %v1022 = vpop.f32.mrb[0].mxu0
      %v1023 = vadd.f32 0.0, %v1022
      %v1024 = vpop.f32.mrb[0].mxu0
      %v1025 = vpop.f32.mrb[0].mxu0
      %v1026 = vadd.f32 0.0, %v1025
      %v1027 = vpop.f32.mrb[0].mxu0
      %1028 = vmatprep.mubr.bf16.mxu0 0
      %1029 = vmatmul.mubr.bf16.gmra.mrb[0].mxu0 %v749
      %v1030 = vpop.f32.mrb[0].mxu0
      %v1031 = vadd.f32 0.0, %v1030
      %v1032 = vpop.f32.mrb[0].mxu0
      %v1033 = vpop.f32.mrb[0].mxu0
      %v1034 = vadd.f32 0.0, %v1033
      %v1035 = vpop.f32.mrb[0].mxu0
      %1036 = vmatprep.mubr.bf16.mxu0 0
      %1037 = vmatmul.mubr.bf16.gmra.mrb[0].mxu0 %v824
      %v1038 = vpop.f32.mrb[0].mxu0
      %v1039 = vadd.f32 0.0, %v1038
      %v1040 = vpop.f32.mrb[0].mxu0
      %v1041 = vpop.f32.mrb[0].mxu0
      %v1042 = vadd.f32 0.0, %v1041
      %v1043 = vpop.f32.mrb[0].mxu0
      %1044 = vmatprep.mubr.bf16.mxu0 0
      %1045 = vmatmul.mubr.bf16.gmra.mrb[0].mxu0 %v764
      %v1046 = vpop.f32.mrb[0].mxu0
      %v1047 = vadd.f32 0.0, %v1046
      %v1048 = vpop.f32.mrb[0].mxu0
      %v1049 = vpop.f32.mrb[0].mxu0
      %v1050 = vadd.f32 0.0, %v1049
      %v1051 = vpop.f32.mrb[0].mxu0
      %1052 = vmatprep.mubr.bf16.mxu0 0
      %1053 = vmatmul.mubr.bf16.gmra.mrb[0].mxu0 %v825
      %v1054 = vpop.f32.mrb[0].mxu0
      %v1055 = vadd.f32 0.0, %v1054
      %v1056 = vpop.f32.mrb[0].mxu0
      %v1057 = vpop.f32.mrb[0].mxu0
      %v1058 = vadd.f32 0.0, %v1057
      %v1059 = vpop.f32.mrb[0].mxu0
      %1060 = vmatprep.mubr.bf16.mxu0 0
      %1061 = vmatmul.mubr.bf16.gmra.mrb[0].mxu0 %v779
      %v1062 = vpop.f32.mrb[0].mxu0
      %v1063 = vadd.f32 0.0, %v1062
      %v1064 = vpop.f32.mrb[0].mxu0
      %v1065 = vpop.f32.mrb[0].mxu0
      %v1066 = vadd.f32 0.0, %v1065
      %v1067 = vpop.f32.mrb[0].mxu0
      %1068 = vdwg.mxu0
      %v1085 = vunpack.c.l.b16 %v827
      %v1086 = vunpack.c.l.b16 %v828
      %v1087 = vunpack.c.l.b16 %v829
      %v1088 = vunpack.c.l.b16 %v830
      %v1089 = vunpack.c.l.b16 %v831
      %v1090 = vunpack.c.l.b16 %v832
      %v1091 = vunpack.c.l.b16 %v833
      %v1092 = vunpack.c.l.b16 %v834
      %v1093 = vunpack.c.l.b16 %v835
      %v1094 = vunpack.c.l.b16 %v836
      %v1095 = vunpack.c.l.b16 %v837
      %v1096 = vunpack.c.l.b16 %v838
      %v1097 = vunpack.c.l.b16 %v839
      %v1098 = vunpack.c.l.b16 %v840
      %v1099 = vunpack.c.l.b16 %v841
      %v1100 = vunpack.c.l.b16 %v842
      %v1101 = vpack.c.b16 %v1086, %v1085
      %v1102 = vpack.c.b16 %v1088, %v1087
      %v1103 = vpack.c.b16 %v1090, %v1089
      %v1104 = vpack.c.b16 %v1092, %v1091
      %v1105 = vpack.c.b16 %v1094, %v1093
      %v1106 = vpack.c.b16 %v1096, %v1095
      %v1107 = vpack.c.b16 %v1098, %v1097
      %v1108 = vpack.c.b16 %v1100, %v1099
      %1117 = vmatprep.subr.bf16.mxu0 0
      %1118 = vmatpush1.bf16.msra.mxu0 %v1101
      %1119 = vmatprep.subr.bf16.mxu0 0
      %1120 = vmatpush1.bf16.msra.mxu0 %v1102
      %1121 = vmatprep.subr.bf16.mxu0 0
      %1122 = vmatpush1.bf16.msra.mxu0 %v1103
      %1123 = vmatprep.subr.bf16.mxu0 0
      %1124 = vmatpush1.bf16.msra.mxu0 %v1104
      %1125 = vmatprep.subr.bf16.mxu0 0
      %1126 = vmatpush1.bf16.msra.mxu0 %v1105
      %1127 = vmatprep.subr.bf16.mxu0 0
      %1128 = vmatpush1.bf16.msra.mxu0 %v1106
      %1129 = vmatprep.subr.bf16.mxu0 0
      %1130 = vmatpush1.bf16.msra.mxu0 %v1107
      %1131 = vmatprep.subr.bf16.mxu0 0
      %1132 = vmatpush1.bf16.msra.mxu0 %v1108
      %1133 = vmatprep.subr.bf16.mxu0 0
      %1134 = vmatpush1.bf16.msra.mxu0 0
      %1135 = vmatprep.subr.bf16.mxu0 0
      %1136 = vmatpush1.bf16.msra.mxu0 0
      %1137 = vmatprep.subr.bf16.mxu0 0
      %1138 = vmatpush1.bf16.msra.mxu0 0
      %1139 = vmatprep.subr.bf16.mxu0 0
      %1140 = vmatpush1.bf16.msra.mxu0 0
      %1141 = vmatprep.subr.bf16.mxu0 0
      %1142 = vmatpush1.bf16.msra.mxu0 0
      %1143 = vmatprep.subr.bf16.mxu0 0
      %1144 = vmatpush1.bf16.msra.mxu0 0
      %1145 = vmatprep.subr.bf16.mxu0 0
      %1146 = vmatpush1.bf16.msra.mxu0 0
      %1147 = vmatprep.subr.bf16.mxu0 0
      %1148 = vmatpush1.bf16.msra.mxu0 0
      %1149 = vmatprep.mubr.bf16.mxu0 0
      %1150 = vmatmul.mubr.bf16.gmra.mrb[0].mxu0 %v817
      %v1151 = vpop.f32.mrb[0].mxu0
      %v1152 = vadd.f32 %v943, %v1151
      %v1153 = vpop.f32.mrb[0].mxu0
      %v1154 = vpop.f32.mrb[0].mxu0
      %v1155 = vadd.f32 %v946, %v1154
      %v1156 = vpop.f32.mrb[0].mxu0
      %1157 = vmatprep.mubr.bf16.mxu0 0
      %1158 = vmatmul.mubr.bf16.gmra.mrb[0].mxu0 %v659
      %v1159 = vpop.f32.mrb[0].mxu0
      %v1160 = vadd.f32 %v951, %v1159
      %v1161 = vpop.f32.mrb[0].mxu0
      %v1162 = vpop.f32.mrb[0].mxu0
      %v1163 = vadd.f32 %v954, %v1162
      %v1164 = vpop.f32.mrb[0].mxu0
      %1165 = vmatprep.mubr.bf16.mxu0 0
      %1166 = vmatmul.mubr.bf16.gmra.mrb[0].mxu0 %v818
      %v1167 = vpop.f32.mrb[0].mxu0
      %v1168 = vadd.f32 %v959, %v1167
      %v1169 = vpop.f32.mrb[0].mxu0
      %v1170 = vpop.f32.mrb[0].mxu0
      %v1171 = vadd.f32 %v962, %v1170
      %v1172 = vpop.f32.mrb[0].mxu0
      %1173 = vmatprep.mubr.bf16.mxu0 0
      %1174 = vmatmul.mubr.bf16.gmra.mrb[0].mxu0 %v674
      %v1175 = vpop.f32.mrb[0].mxu0
      %v1176 = vadd.f32 %v967, %v1175
      %v1177 = vpop.f32.mrb[0].mxu0
      %v1178 = vpop.f32.mrb[0].mxu0
      %v1179 = vadd.f32 %v970, %v1178
      %v1180 = vpop.f32.mrb[0].mxu0
      %1181 = vmatprep.mubr.bf16.mxu0 0
      %1182 = vmatmul.mubr.bf16.gmra.mrb[0].mxu0 %v819
      %v1183 = vpop.f32.mrb[0].mxu0
      %v1184 = vadd.f32 %v975, %v1183
      %v1185 = vpop.f32.mrb[0].mxu0
      %v1186 = vpop.f32.mrb[0].mxu0
      %v1187 = vadd.f32 %v978, %v1186
      %v1188 = vpop.f32.mrb[0].mxu0
      %1189 = vmatprep.mubr.bf16.mxu0 0
      %1190 = vmatmul.mubr.bf16.gmra.mrb[0].mxu0 %v689
      %v1191 = vpop.f32.mrb[0].mxu0
      %v1192 = vadd.f32 %v983, %v1191
      %v1193 = vpop.f32.mrb[0].mxu0
      %v1194 = vpop.f32.mrb[0].mxu0
      %v1195 = vadd.f32 %v986, %v1194
      %v1196 = vpop.f32.mrb[0].mxu0
      %1197 = vmatprep.mubr.bf16.mxu0 0
      %1198 = vmatmul.mubr.bf16.gmra.mrb[0].mxu0 %v820
      %v1199 = vpop.f32.mrb[0].mxu0
      %v1200 = vadd.f32 %v991, %v1199
      %v1201 = vpop.f32.mrb[0].mxu0
      %v1202 = vpop.f32.mrb[0].mxu0
      %v1203 = vadd.f32 %v994, %v1202
      %v1204 = vpop.f32.mrb[0].mxu0
      %1205 = vmatprep.mubr.bf16.mxu0 0
      %1206 = vmatmul.mubr.bf16.gmra.mrb[0].mxu0 %v704
      %v1207 = vpop.f32.mrb[0].mxu0
      %v1208 = vadd.f32 %v999, %v1207
      %v1209 = vpop.f32.mrb[0].mxu0
      %v1210 = vpop.f32.mrb[0].mxu0
      %v1211 = vadd.f32 %v1002, %v1210
      %v1212 = vpop.f32.mrb[0].mxu0
      %1213 = vmatprep.mubr.bf16.mxu0 0
      %1214 = vmatmul.mubr.bf16.gmra.mrb[0].mxu0 %v821
      %v1215 = vpop.f32.mrb[0].mxu0
      %v1216 = vadd.f32 %v1007, %v1215
      %v1217 = vpop.f32.mrb[0].mxu0
      %v1218 = vpop.f32.mrb[0].mxu0
      %v1219 = vadd.f32 %v1010, %v1218
      %v1220 = vpop.f32.mrb[0].mxu0
      %1221 = vmatprep.mubr.bf16.mxu0 0
      %1222 = vmatmul.mubr.bf16.gmra.mrb[0].mxu0 %v719
      %v1223 = vpop.f32.mrb[0].mxu0
      %v1224 = vadd.f32 %v1015, %v1223
      %v1225 = vpop.f32.mrb[0].mxu0
      %v1226 = vpop.f32.mrb[0].mxu0
      %v1227 = vadd.f32 %v1018, %v1226
      %v1228 = vpop.f32.mrb[0].mxu0
      %1229 = vmatprep.mubr.bf16.mxu0 0
      %1230 = vmatmul.mubr.bf16.gmra.mrb[0].mxu0 %v822
      %v1231 = vpop.f32.mrb[0].mxu0
      %v1232 = vadd.f32 %v1023, %v1231
      %v1233 = vpop.f32.mrb[0].mxu0
      %v1234 = vpop.f32.mrb[0].mxu0
      %v1235 = vadd.f32 %v1026, %v1234
      %v1236 = vpop.f32.mrb[0].mxu0
      %1237 = vmatprep.mubr.bf16.mxu0 0
      %1238 = vmatmul.mubr.bf16.gmra.mrb[0].mxu0 %v734
      %v1239 = vpop.f32.mrb[0].mxu0
      %v1240 = vadd.f32 %v1031, %v1239
      %v1241 = vpop.f32.mrb[0].mxu0
      %v1242 = vpop.f32.mrb[0].mxu0
      %v1243 = vadd.f32 %v1034, %v1242
      %v1244 = vpop.f32.mrb[0].mxu0
      %1245 = vmatprep.mubr.bf16.mxu0 0
      %1246 = vmatmul.mubr.bf16.gmra.mrb[0].mxu0 %v823
      %v1247 = vpop.f32.mrb[0].mxu0
      %v1248 = vadd.f32 %v1039, %v1247
      %v1249 = vpop.f32.mrb[0].mxu0
      %v1250 = vpop.f32.mrb[0].mxu0
      %v1251 = vadd.f32 %v1042, %v1250
      %v1252 = vpop.f32.mrb[0].mxu0
      %1253 = vmatprep.mubr.bf16.mxu0 0
      %1254 = vmatmul.mubr.bf16.gmra.mrb[0].mxu0 %v749
      %v1255 = vpop.f32.mrb[0].mxu0
      %v1256 = vadd.f32 %v1047, %v1255
      %v1257 = vpop.f32.mrb[0].mxu0
      %v1258 = vpop.f32.mrb[0].mxu0
      %v1259 = vadd.f32 %v1050, %v1258
      %v1260 = vpop.f32.mrb[0].mxu0
      %1261 = vmatprep.mubr.bf16.mxu0 0
      %1262 = vmatmul.mubr.bf16.gmra.mrb[0].mxu0 %v824
      %v1263 = vpop.f32.mrb[0].mxu0
      %v1264 = vadd.f32 %v1055, %v1263
      %v1265 = vpop.f32.mrb[0].mxu0
      %v1266 = vpop.f32.mrb[0].mxu0
      %v1267 = vadd.f32 %v1058, %v1266
      %v1268 = vpop.f32.mrb[0].mxu0
      %1269 = vmatprep.mubr.bf16.mxu0 0
      %1270 = vmatmul.mubr.bf16.gmra.mrb[0].mxu0 %v764
      %v1271 = vpop.f32.mrb[0].mxu0
      %v1272 = vadd.f32 %v1063, %v1271
      %v1273 = vpop.f32.mrb[0].mxu0
      %v1274 = vpop.f32.mrb[0].mxu0
      %v1275 = vadd.f32 %v1066, %v1274
      %v1276 = vpop.f32.mrb[0].mxu0
      %1277 = vdwg.mxu0
      %s1278 = scalar_lea.vmem %s3, 128
      %v1279 = vld [vmem:[%s1278] sm:$0xf]
      %v1280 = vld [vmem:[%s1278 + $0x4] sm:$0xf]
      %v1281 = vld [vmem:[%s1278 + $0x8] sm:$0xf]
      %v1282 = vld [vmem:[%s1278 + $0xc] sm:$0xf]
      %v1283 = vld [vmem:[%s1278 + $0x10] sm:$0xf]
      %v1284 = vld [vmem:[%s1278 + $0x14] sm:$0xf]
      %v1285 = vld [vmem:[%s1278 + $0x18] sm:$0xf]
      %v1286 = vld [vmem:[%s1278 + $0x1c] sm:$0xf]
      %v1287 = vld [vmem:[%s1278 + $0x20] sm:$0xf]
      %v1288 = vld [vmem:[%s1278 + $0x24] sm:$0xf]
      %v1289 = vld [vmem:[%s1278 + $0x28] sm:$0xf]
      %v1290 = vld [vmem:[%s1278 + $0x2c] sm:$0xf]
      %v1291 = vld [vmem:[%s1278 + $0x30] sm:$0xf]
      %v1292 = vld [vmem:[%s1278 + $0x34] sm:$0xf]
      %v1293 = vld [vmem:[%s1278 + $0x38] sm:$0xf]
      %v1294 = vld [vmem:[%s1278 + $0x3c] sm:$0xf]
      %v1311 = vunpack.c.l.b16 %v1279
      %v1312 = vunpack.c.l.b16 %v1280
      %v1313 = vunpack.c.l.b16 %v1281
      %v1314 = vunpack.c.l.b16 %v1282
      %v1315 = vunpack.c.l.b16 %v1283
      %v1316 = vunpack.c.l.b16 %v1284
      %v1317 = vunpack.c.l.b16 %v1285
      %v1318 = vunpack.c.l.b16 %v1286
      %v1319 = vunpack.c.l.b16 %v1287
      %v1320 = vunpack.c.l.b16 %v1288
      %v1321 = vunpack.c.l.b16 %v1289
      %v1322 = vunpack.c.l.b16 %v1290
      %v1323 = vunpack.c.l.b16 %v1291
      %v1324 = vunpack.c.l.b16 %v1292
      %v1325 = vunpack.c.l.b16 %v1293
      %v1326 = vunpack.c.l.b16 %v1294
      %v1327 = vpack.c.b16 %v1312, %v1311
      %v1328 = vpack.c.b16 %v1314, %v1313
      %v1329 = vpack.c.b16 %v1316, %v1315
      %v1330 = vpack.c.b16 %v1318, %v1317
      %v1331 = vpack.c.b16 %v1320, %v1319
      %v1332 = vpack.c.b16 %v1322, %v1321
      %v1333 = vpack.c.b16 %v1324, %v1323
      %v1334 = vpack.c.b16 %v1326, %v1325
      %1343 = vmatprep.subr.bf16.mxu0 0
      %1344 = vmatpush1.bf16.msra.mxu0 %v1327
      %1345 = vmatprep.subr.bf16.mxu0 0
      %1346 = vmatpush1.bf16.msra.mxu0 %v1328
      %1347 = vmatprep.subr.bf16.mxu0 0
      %1348 = vmatpush1.bf16.msra.mxu0 %v1329
      %1349 = vmatprep.subr.bf16.mxu0 0
      %1350 = vmatpush1.bf16.msra.mxu0 %v1330
      %1351 = vmatprep.subr.bf16.mxu0 0
      %1352 = vmatpush1.bf16.msra.mxu0 %v1331
      %1353 = vmatprep.subr.bf16.mxu0 0
      %1354 = vmatpush1.bf16.msra.mxu0 %v1332
      %1355 = vmatprep.subr.bf16.mxu0 0
      %1356 = vmatpush1.bf16.msra.mxu0 %v1333
      %1357 = vmatprep.subr.bf16.mxu0 0
      %1358 = vmatpush1.bf16.msra.mxu0 %v1334
      %1359 = vmatprep.subr.bf16.mxu0 0
      %1360 = vmatpush1.bf16.msra.mxu0 0
      %1361 = vmatprep.subr.bf16.mxu0 0
      %1362 = vmatpush1.bf16.msra.mxu0 0
      %1363 = vmatprep.subr.bf16.mxu0 0
      %1364 = vmatpush1.bf16.msra.mxu0 0
      %1365 = vmatprep.subr.bf16.mxu0 0
      %1366 = vmatpush1.bf16.msra.mxu0 0
      %1367 = vmatprep.subr.bf16.mxu0 0
      %1368 = vmatpush1.bf16.msra.mxu0 0
      %1369 = vmatprep.subr.bf16.mxu0 0
      %1370 = vmatpush1.bf16.msra.mxu0 0
      %1371 = vmatprep.subr.bf16.mxu0 0
      %1372 = vmatpush1.bf16.msra.mxu0 0
      %1373 = vmatprep.subr.bf16.mxu0 0
      %1374 = vmatpush1.bf16.msra.mxu0 0
      %1375 = vmatprep.mubr.bf16.mxu0 0
      %1376 = vmatmul.mubr.bf16.gmra.mrb[0].mxu0 %v819
      %v1377 = vpop.f32.mrb[0].mxu0
      %v1378 = vadd.f32 0.0, %v1377
      %v1379 = vpop.f32.mrb[0].mxu0
      %v1380 = vpop.f32.mrb[0].mxu0
      %v1381 = vadd.f32 0.0, %v1380
      %v1382 = vpop.f32.mrb[0].mxu0
      %1383 = vmatprep.mubr.bf16.mxu0 0
      %1384 = vmatmul.mubr.bf16.gmra.mrb[0].mxu0 %v689
      %v1385 = vpop.f32.mrb[0].mxu0
      %v1386 = vadd.f32 0.0, %v1385
      %v1387 = vpop.f32.mrb[0].mxu0
      %v1388 = vpop.f32.mrb[0].mxu0
      %v1389 = vadd.f32 0.0, %v1388
      %v1390 = vpop.f32.mrb[0].mxu0
      %1391 = vmatprep.mubr.bf16.mxu0 0
      %1392 = vmatmul.mubr.bf16.gmra.mrb[0].mxu0 %v820
      %v1393 = vpop.f32.mrb[0].mxu0
      %v1394 = vadd.f32 0.0, %v1393
      %v1395 = vpop.f32.mrb[0].mxu0
      %v1396 = vpop.f32.mrb[0].mxu0
      %v1397 = vadd.f32 0.0, %v1396
      %v1398 = vpop.f32.mrb[0].mxu0
      %1399 = vmatprep.mubr.bf16.mxu0 0
      %1400 = vmatmul.mubr.bf16.gmra.mrb[0].mxu0 %v704
      %v1401 = vpop.f32.mrb[0].mxu0
      %v1402 = vadd.f32 0.0, %v1401
      %v1403 = vpop.f32.mrb[0].mxu0
      %v1404 = vpop.f32.mrb[0].mxu0
      %v1405 = vadd.f32 0.0, %v1404
      %v1406 = vpop.f32.mrb[0].mxu0
      %1407 = vmatprep.mubr.bf16.mxu0 0
      %1408 = vmatmul.mubr.bf16.gmra.mrb[0].mxu0 %v821
      %v1409 = vpop.f32.mrb[0].mxu0
      %v1410 = vadd.f32 0.0, %v1409
      %v1411 = vpop.f32.mrb[0].mxu0
      %v1412 = vpop.f32.mrb[0].mxu0
      %v1413 = vadd.f32 0.0, %v1412
      %v1414 = vpop.f32.mrb[0].mxu0
      %1415 = vmatprep.mubr.bf16.mxu0 0
      %1416 = vmatmul.mubr.bf16.gmra.mrb[0].mxu0 %v719
      %v1417 = vpop.f32.mrb[0].mxu0
      %v1418 = vadd.f32 0.0, %v1417
      %v1419 = vpop.f32.mrb[0].mxu0
      %v1420 = vpop.f32.mrb[0].mxu0
      %v1421 = vadd.f32 0.0, %v1420
      %v1422 = vpop.f32.mrb[0].mxu0
      %1423 = vmatprep.mubr.bf16.mxu0 0
      %1424 = vmatmul.mubr.bf16.gmra.mrb[0].mxu0 %v822
      %v1425 = vpop.f32.mrb[0].mxu0
      %v1426 = vadd.f32 0.0, %v1425
      %v1427 = vpop.f32.mrb[0].mxu0
      %v1428 = vpop.f32.mrb[0].mxu0
      %v1429 = vadd.f32 0.0, %v1428
      %v1430 = vpop.f32.mrb[0].mxu0
      %1431 = vmatprep.mubr.bf16.mxu0 0
      %1432 = vmatmul.mubr.bf16.gmra.mrb[0].mxu0 %v734
      %v1433 = vpop.f32.mrb[0].mxu0
      %v1434 = vadd.f32 0.0, %v1433
      %v1435 = vpop.f32.mrb[0].mxu0
      %v1436 = vpop.f32.mrb[0].mxu0
      %v1437 = vadd.f32 0.0, %v1436
      %v1438 = vpop.f32.mrb[0].mxu0
      %1439 = vmatprep.mubr.bf16.mxu0 0
      %1440 = vmatmul.mubr.bf16.gmra.mrb[0].mxu0 %v823
      %v1441 = vpop.f32.mrb[0].mxu0
      %v1442 = vadd.f32 0.0, %v1441
      %v1443 = vpop.f32.mrb[0].mxu0
      %v1444 = vpop.f32.mrb[0].mxu0
      %v1445 = vadd.f32 0.0, %v1444
      %v1446 = vpop.f32.mrb[0].mxu0
      %1447 = vmatprep.mubr.bf16.mxu0 0
      %1448 = vmatmul.mubr.bf16.gmra.mrb[0].mxu0 %v749
      %v1449 = vpop.f32.mrb[0].mxu0
      %v1450 = vadd.f32 0.0, %v1449
      %v1451 = vpop.f32.mrb[0].mxu0
      %v1452 = vpop.f32.mrb[0].mxu0
      %v1453 = vadd.f32 0.0, %v1452
      %v1454 = vpop.f32.mrb[0].mxu0
      %1455 = vmatprep.mubr.bf16.mxu0 0
      %1456 = vmatmul.mubr.bf16.gmra.mrb[0].mxu0 %v824
      %v1457 = vpop.f32.mrb[0].mxu0
      %v1458 = vadd.f32 0.0, %v1457
      %v1459 = vpop.f32.mrb[0].mxu0
      %v1460 = vpop.f32.mrb[0].mxu0
      %v1461 = vadd.f32 0.0, %v1460
      %v1462 = vpop.f32.mrb[0].mxu0
      %1463 = vmatprep.mubr.bf16.mxu0 0
      %1464 = vmatmul.mubr.bf16.gmra.mrb[0].mxu0 %v764
      %v1465 = vpop.f32.mrb[0].mxu0
      %v1466 = vadd.f32 0.0, %v1465
      %v1467 = vpop.f32.mrb[0].mxu0
      %v1468 = vpop.f32.mrb[0].mxu0
      %v1469 = vadd.f32 0.0, %v1468
      %v1470 = vpop.f32.mrb[0].mxu0
      %1471 = vmatprep.mubr.bf16.mxu0 0
      %1472 = vmatmul.mubr.bf16.gmra.mrb[0].mxu0 %v825
      %v1473 = vpop.f32.mrb[0].mxu0
      %v1474 = vadd.f32 0.0, %v1473
      %v1475 = vpop.f32.mrb[0].mxu0
      %v1476 = vpop.f32.mrb[0].mxu0
      %v1477 = vadd.f32 0.0, %v1476
      %v1478 = vpop.f32.mrb[0].mxu0
      %1479 = vmatprep.mubr.bf16.mxu0 0
      %1480 = vmatmul.mubr.bf16.gmra.mrb[0].mxu0 %v779
      %v1481 = vpop.f32.mrb[0].mxu0
      %v1482 = vadd.f32 0.0, %v1481
      %v1483 = vpop.f32.mrb[0].mxu0
      %v1484 = vpop.f32.mrb[0].mxu0
      %v1485 = vadd.f32 0.0, %v1484
      %v1486 = vpop.f32.mrb[0].mxu0
      %1487 = vmatprep.mubr.bf16.mxu0 0
      %1488 = vmatmul.mubr.bf16.gmra.mrb[0].mxu0 %v826
      %v1489 = vpop.f32.mrb[0].mxu0
      %v1490 = vadd.f32 0.0, %v1489
      %v1491 = vpop.f32.mrb[0].mxu0
      %v1492 = vpop.f32.mrb[0].mxu0
      %v1493 = vadd.f32 0.0, %v1492
      %v1494 = vpop.f32.mrb[0].mxu0
      %1495 = vmatprep.mubr.bf16.mxu0 0
      %1496 = vmatmul.mubr.bf16.gmra.mrb[0].mxu0 %v794
      %v1497 = vpop.f32.mrb[0].mxu0
      %v1498 = vadd.f32 0.0, %v1497
      %v1499 = vpop.f32.mrb[0].mxu0
      %v1500 = vpop.f32.mrb[0].mxu0
      %v1501 = vadd.f32 0.0, %v1500
      %v1502 = vpop.f32.mrb[0].mxu0
      %1503 = vdwg.mxu0
      %v1504 = vadd.f32 %v1152, %v1378
      %v1505 = vadd.f32 %v1155, %v1381
      %v1506 = vadd.f32 %v1160, %v1386
      %v1507 = vadd.f32 %v1163, %v1389
      %v1508 = vadd.f32 %v1168, %v1394
      %v1509 = vadd.f32 %v1171, %v1397
      %v1510 = vadd.f32 %v1176, %v1402
      %v1511 = vadd.f32 %v1179, %v1405
      %v1512 = vadd.f32 %v1184, %v1410
      %v1513 = vadd.f32 %v1187, %v1413
      %v1514 = vadd.f32 %v1192, %v1418
      %v1515 = vadd.f32 %v1195, %v1421
      %v1516 = vadd.f32 %v1200, %v1426
      %v1517 = vadd.f32 %v1203, %v1429
      %v1518 = vadd.f32 %v1208, %v1434
      %v1519 = vadd.f32 %v1211, %v1437
      %v1520 = vadd.f32 %v1216, %v1442
      %v1521 = vadd.f32 %v1219, %v1445
      %v1522 = vadd.f32 %v1224, %v1450
      %v1523 = vadd.f32 %v1227, %v1453
      %v1524 = vadd.f32 %v1232, %v1458
      %v1525 = vadd.f32 %v1235, %v1461
      %v1526 = vadd.f32 %v1240, %v1466
      %v1527 = vadd.f32 %v1243, %v1469
      %v1528 = vadd.f32 %v1248, %v1474
      %v1529 = vadd.f32 %v1251, %v1477
      %v1530 = vadd.f32 %v1256, %v1482
      %v1531 = vadd.f32 %v1259, %v1485
      %v1532 = vadd.f32 %v1264, %v1490
      %v1533 = vadd.f32 %v1267, %v1493
      %v1534 = vadd.f32 %v1272, %v1498
      %v1535 = vadd.f32 %v1275, %v1501
      %s1536 = scalar_lea.vmem %s3, 192
      %v1537 = vld [vmem:[%s1536] sm:$0xf]
      %v1538 = vld [vmem:[%s1536 + $0x4] sm:$0xf]
      %v1539 = vld [vmem:[%s1536 + $0x8] sm:$0xf]
      %v1540 = vld [vmem:[%s1536 + $0xc] sm:$0xf]
      %v1541 = vld [vmem:[%s1536 + $0x10] sm:$0xf]
      %v1542 = vld [vmem:[%s1536 + $0x14] sm:$0xf]
      %v1543 = vld [vmem:[%s1536 + $0x18] sm:$0xf]
      %v1544 = vld [vmem:[%s1536 + $0x1c] sm:$0xf]
      %v1545 = vld [vmem:[%s1536 + $0x20] sm:$0xf]
      %v1546 = vld [vmem:[%s1536 + $0x24] sm:$0xf]
      %v1547 = vld [vmem:[%s1536 + $0x28] sm:$0xf]
      %v1548 = vld [vmem:[%s1536 + $0x2c] sm:$0xf]
      %v1549 = vld [vmem:[%s1536 + $0x30] sm:$0xf]
      %v1550 = vld [vmem:[%s1536 + $0x34] sm:$0xf]
      %v1551 = vld [vmem:[%s1536 + $0x38] sm:$0xf]
      %v1552 = vld [vmem:[%s1536 + $0x3c] sm:$0xf]
      %v1569 = vunpack.c.l.b16 %v1537
      %v1570 = vunpack.c.l.b16 %v1538
      %v1571 = vunpack.c.l.b16 %v1539
      %v1572 = vunpack.c.l.b16 %v1540
      %v1573 = vunpack.c.l.b16 %v1541
      %v1574 = vunpack.c.l.b16 %v1542
      %v1575 = vunpack.c.l.b16 %v1543
      %v1576 = vunpack.c.l.b16 %v1544
      %v1577 = vunpack.c.l.b16 %v1545
      %v1578 = vunpack.c.l.b16 %v1546
      %v1579 = vunpack.c.l.b16 %v1547
      %v1580 = vunpack.c.l.b16 %v1548
      %v1581 = vunpack.c.l.b16 %v1549
      %v1582 = vunpack.c.l.b16 %v1550
      %v1583 = vunpack.c.l.b16 %v1551
      %v1584 = vunpack.c.l.b16 %v1552
      %v1585 = vpack.c.b16 %v1570, %v1569
      %v1586 = vpack.c.b16 %v1572, %v1571
      %v1587 = vpack.c.b16 %v1574, %v1573
      %v1588 = vpack.c.b16 %v1576, %v1575
      %v1589 = vpack.c.b16 %v1578, %v1577
      %v1590 = vpack.c.b16 %v1580, %v1579
      %v1591 = vpack.c.b16 %v1582, %v1581
      %v1592 = vpack.c.b16 %v1584, %v1583
      %1601 = vmatprep.subr.bf16.mxu0 0
      %1602 = vmatpush1.bf16.msra.mxu0 %v1585
      %1603 = vmatprep.subr.bf16.mxu0 0
      %1604 = vmatpush1.bf16.msra.mxu0 %v1586
      %1605 = vmatprep.subr.bf16.mxu0 0
      %1606 = vmatpush1.bf16.msra.mxu0 %v1587
      %1607 = vmatprep.subr.bf16.mxu0 0
      %1608 = vmatpush1.bf16.msra.mxu0 %v1588
      %1609 = vmatprep.subr.bf16.mxu0 0
      %1610 = vmatpush1.bf16.msra.mxu0 %v1589
      %1611 = vmatprep.subr.bf16.mxu0 0
      %1612 = vmatpush1.bf16.msra.mxu0 %v1590
      %1613 = vmatprep.subr.bf16.mxu0 0
      %1614 = vmatpush1.bf16.msra.mxu0 %v1591
      %1615 = vmatprep.subr.bf16.mxu0 0
      %1616 = vmatpush1.bf16.msra.mxu0 %v1592
      %1617 = vmatprep.subr.bf16.mxu0 0
      %1618 = vmatpush1.bf16.msra.mxu0 0
      %1619 = vmatprep.subr.bf16.mxu0 0
      %1620 = vmatpush1.bf16.msra.mxu0 0
      %1621 = vmatprep.subr.bf16.mxu0 0
      %1622 = vmatpush1.bf16.msra.mxu0 0
      %1623 = vmatprep.subr.bf16.mxu0 0
      %1624 = vmatpush1.bf16.msra.mxu0 0
      %1625 = vmatprep.subr.bf16.mxu0 0
      %1626 = vmatpush1.bf16.msra.mxu0 0
      %1627 = vmatprep.subr.bf16.mxu0 0
      %1628 = vmatpush1.bf16.msra.mxu0 0
      %1629 = vmatprep.subr.bf16.mxu0 0
      %1630 = vmatpush1.bf16.msra.mxu0 0
      %1631 = vmatprep.subr.bf16.mxu0 0
      %1632 = vmatpush1.bf16.msra.mxu0 0
      %1633 = vmatprep.mubr.bf16.mxu0 0
      %1634 = vmatmul.mubr.bf16.gmra.mrb[0].mxu0 %v624
      %v1635 = vpop.f32.mrb[0].mxu0
      %v1636 = vadd.f32 0.0, %v1635
      %v1637 = vpop.f32.mrb[0].mxu0
      %v1638 = vpop.f32.mrb[0].mxu0
      %v1639 = vadd.f32 0.0, %v1638
      %v1640 = vpop.f32.mrb[0].mxu0
      %1641 = vmatprep.mubr.bf16.mxu0 0
      %1642 = vmatmul.mubr.bf16.gmra.mrb[0].mxu0 %v625
      %v1643 = vpop.f32.mrb[0].mxu0
      %v1644 = vadd.f32 0.0, %v1643
      %v1645 = vpop.f32.mrb[0].mxu0
      %v1646 = vpop.f32.mrb[0].mxu0
      %v1647 = vadd.f32 0.0, %v1646
      %v1648 = vpop.f32.mrb[0].mxu0
      %1649 = vmatprep.mubr.bf16.mxu0 0
      %1650 = vmatmul.mubr.bf16.gmra.mrb[0].mxu0 %v626
      %v1651 = vpop.f32.mrb[0].mxu0
      %v1652 = vadd.f32 0.0, %v1651
      %v1653 = vpop.f32.mrb[0].mxu0
      %v1654 = vpop.f32.mrb[0].mxu0
      %v1655 = vadd.f32 0.0, %v1654
      %v1656 = vpop.f32.mrb[0].mxu0
      %1657 = vmatprep.mubr.bf16.mxu0 0
      %1658 = vmatmul.mubr.bf16.gmra.mrb[0].mxu0 %v627
      %v1659 = vpop.f32.mrb[0].mxu0
      %v1660 = vadd.f32 0.0, %v1659
      %v1661 = vpop.f32.mrb[0].mxu0
      %v1662 = vpop.f32.mrb[0].mxu0
      %v1663 = vadd.f32 0.0, %v1662
      %v1664 = vpop.f32.mrb[0].mxu0
      %1665 = vmatprep.mubr.bf16.mxu0 0
      %1666 = vmatmul.mubr.bf16.gmra.mrb[0].mxu0 %v628
      %v1667 = vpop.f32.mrb[0].mxu0
      %v1668 = vadd.f32 0.0, %v1667
      %v1669 = vpop.f32.mrb[0].mxu0
      %v1670 = vpop.f32.mrb[0].mxu0
      %v1671 = vadd.f32 0.0, %v1670
      %v1672 = vpop.f32.mrb[0].mxu0
      %1673 = vmatprep.mubr.bf16.mxu0 0
      %1674 = vmatmul.mubr.bf16.gmra.mrb[0].mxu0 %v629
      %v1675 = vpop.f32.mrb[0].mxu0
      %v1676 = vadd.f32 0.0, %v1675
      %v1677 = vpop.f32.mrb[0].mxu0
      %v1678 = vpop.f32.mrb[0].mxu0
      %v1679 = vadd.f32 0.0, %v1678
      %v1680 = vpop.f32.mrb[0].mxu0
      %1681 = vmatprep.mubr.bf16.mxu0 0
      %1682 = vmatmul.mubr.bf16.gmra.mrb[0].mxu0 %v630
      %v1683 = vpop.f32.mrb[0].mxu0
      %v1684 = vadd.f32 0.0, %v1683
      %v1685 = vpop.f32.mrb[0].mxu0
      %v1686 = vpop.f32.mrb[0].mxu0
      %v1687 = vadd.f32 0.0, %v1686
      %v1688 = vpop.f32.mrb[0].mxu0
      %1689 = vmatprep.mubr.bf16.mxu0 0
      %1690 = vmatmul.mubr.bf16.gmra.mrb[0].mxu0 %v631
      %v1691 = vpop.f32.mrb[0].mxu0
      %v1692 = vadd.f32 0.0, %v1691
      %v1693 = vpop.f32.mrb[0].mxu0
      %v1694 = vpop.f32.mrb[0].mxu0
      %v1695 = vadd.f32 0.0, %v1694
      %v1696 = vpop.f32.mrb[0].mxu0
      %1697 = vmatprep.mubr.bf16.mxu0 0
      %1698 = vmatmul.mubr.bf16.gmra.mrb[0].mxu0 %v632
      %v1699 = vpop.f32.mrb[0].mxu0
      %v1700 = vadd.f32 0.0, %v1699
      %v1701 = vpop.f32.mrb[0].mxu0
      %v1702 = vpop.f32.mrb[0].mxu0
      %v1703 = vadd.f32 0.0, %v1702
      %v1704 = vpop.f32.mrb[0].mxu0
      %1705 = vmatprep.mubr.bf16.mxu0 0
      %1706 = vmatmul.mubr.bf16.gmra.mrb[0].mxu0 %v633
      %v1707 = vpop.f32.mrb[0].mxu0
      %v1708 = vadd.f32 0.0, %v1707
      %v1709 = vpop.f32.mrb[0].mxu0
      %v1710 = vpop.f32.mrb[0].mxu0
      %v1711 = vadd.f32 0.0, %v1710
      %v1712 = vpop.f32.mrb[0].mxu0
      %1713 = vmatprep.mubr.bf16.mxu0 0
      %1714 = vmatmul.mubr.bf16.gmra.mrb[0].mxu0 %v634
      %v1715 = vpop.f32.mrb[0].mxu0
      %v1716 = vadd.f32 0.0, %v1715
      %v1717 = vpop.f32.mrb[0].mxu0
      %v1718 = vpop.f32.mrb[0].mxu0
      %v1719 = vadd.f32 0.0, %v1718
      %v1720 = vpop.f32.mrb[0].mxu0
      %1721 = vmatprep.mubr.bf16.mxu0 0
      %1722 = vmatmul.mubr.bf16.gmra.mrb[0].mxu0 %v635
      %v1723 = vpop.f32.mrb[0].mxu0
      %v1724 = vadd.f32 0.0, %v1723
      %v1725 = vpop.f32.mrb[0].mxu0
      %v1726 = vpop.f32.mrb[0].mxu0
      %v1727 = vadd.f32 0.0, %v1726
      %v1728 = vpop.f32.mrb[0].mxu0
      %1729 = vmatprep.mubr.bf16.mxu0 0
      %1730 = vmatmul.mubr.bf16.gmra.mrb[0].mxu0 %v636
      %v1731 = vpop.f32.mrb[0].mxu0
      %v1732 = vadd.f32 0.0, %v1731
      %v1733 = vpop.f32.mrb[0].mxu0
      %v1734 = vpop.f32.mrb[0].mxu0
      %v1735 = vadd.f32 0.0, %v1734
      %v1736 = vpop.f32.mrb[0].mxu0
      %1737 = vmatprep.mubr.bf16.mxu0 0
      %1738 = vmatmul.mubr.bf16.gmra.mrb[0].mxu0 %v637
      %v1739 = vpop.f32.mrb[0].mxu0
      %v1740 = vadd.f32 0.0, %v1739
      %v1741 = vpop.f32.mrb[0].mxu0
      %v1742 = vpop.f32.mrb[0].mxu0
      %v1743 = vadd.f32 0.0, %v1742
      %v1744 = vpop.f32.mrb[0].mxu0
      %1745 = vmatprep.mubr.bf16.mxu0 0
      %1746 = vmatmul.mubr.bf16.gmra.mrb[0].mxu0 %v638
      %v1747 = vpop.f32.mrb[0].mxu0
      %v1748 = vadd.f32 0.0, %v1747
      %v1749 = vpop.f32.mrb[0].mxu0
      %v1750 = vpop.f32.mrb[0].mxu0
      %v1751 = vadd.f32 0.0, %v1750
      %v1752 = vpop.f32.mrb[0].mxu0
      %1753 = vmatprep.mubr.bf16.mxu0 0
      %1754 = vmatmul.mubr.bf16.gmra.mrb[0].mxu0 %v639
      %v1755 = vpop.f32.mrb[0].mxu0
      %v1756 = vadd.f32 0.0, %v1755
      %v1757 = vpop.f32.mrb[0].mxu0
      %v1758 = vpop.f32.mrb[0].mxu0
      %v1759 = vadd.f32 0.0, %v1758
      %v1760 = vpop.f32.mrb[0].mxu0
      %1761 = vdwg.mxu0
      %v1762 = vadd.f32 %v1504, %v1636
      %v1763 = vadd.f32 %v1505, %v1639
      %v1764 = vadd.f32 %v1506, %v1644
      %v1765 = vadd.f32 %v1507, %v1647
      %v1766 = vadd.f32 %v1508, %v1652
      %v1767 = vadd.f32 %v1509, %v1655
      %v1768 = vadd.f32 %v1510, %v1660
      %v1769 = vadd.f32 %v1511, %v1663
      %v1770 = vadd.f32 %v1512, %v1668
      %v1771 = vadd.f32 %v1513, %v1671
      %v1772 = vadd.f32 %v1514, %v1676
      %v1773 = vadd.f32 %v1515, %v1679
      %v1774 = vadd.f32 %v1516, %v1684
      %v1775 = vadd.f32 %v1517, %v1687
      %v1776 = vadd.f32 %v1518, %v1692
      %v1777 = vadd.f32 %v1519, %v1695
      %v1778 = vadd.f32 %v1520, %v1700
      %v1779 = vadd.f32 %v1521, %v1703
      %v1780 = vadd.f32 %v1522, %v1708
      %v1781 = vadd.f32 %v1523, %v1711
      %v1782 = vadd.f32 %v1524, %v1716
      %v1783 = vadd.f32 %v1525, %v1719
      %v1784 = vadd.f32 %v1526, %v1724
      %v1785 = vadd.f32 %v1527, %v1727
      %v1786 = vadd.f32 %v1528, %v1732
      %v1787 = vadd.f32 %v1529, %v1735
      %v1788 = vadd.f32 %v1530, %v1740
      %v1789 = vadd.f32 %v1531, %v1743
      %v1790 = vadd.f32 %v1532, %v1748
      %v1791 = vadd.f32 %v1533, %v1751
      %v1792 = vadd.f32 %v1534, %v1756
      %v1793 = vadd.f32 %v1535, %v1759
      %s1794 = scalar_lea.vmem %s3, 256
      %v1795 = vld [vmem:[%s1794] sm:$0xf]
      %v1796 = vld [vmem:[%s1794 + $0x4] sm:$0xf]
      %v1797 = vld [vmem:[%s1794 + $0x8] sm:$0xf]
      %v1798 = vld [vmem:[%s1794 + $0xc] sm:$0xf]
      %v1799 = vld [vmem:[%s1794 + $0x10] sm:$0xf]
      %v1800 = vld [vmem:[%s1794 + $0x14] sm:$0xf]
      %v1801 = vld [vmem:[%s1794 + $0x18] sm:$0xf]
      %v1802 = vld [vmem:[%s1794 + $0x1c] sm:$0xf]
      %v1803 = vld [vmem:[%s1794 + $0x20] sm:$0xf]
      %v1804 = vld [vmem:[%s1794 + $0x24] sm:$0xf]
      %v1805 = vld [vmem:[%s1794 + $0x28] sm:$0xf]
      %v1806 = vld [vmem:[%s1794 + $0x2c] sm:$0xf]
      %v1807 = vld [vmem:[%s1794 + $0x30] sm:$0xf]
      %v1808 = vld [vmem:[%s1794 + $0x34] sm:$0xf]
      %v1809 = vld [vmem:[%s1794 + $0x38] sm:$0xf]
      %v1810 = vld [vmem:[%s1794 + $0x3c] sm:$0xf]
      %v1827 = vunpack.c.l.b16 %v1795
      %v1828 = vunpack.c.l.b16 %v1796
      %v1829 = vunpack.c.l.b16 %v1797
      %v1830 = vunpack.c.l.b16 %v1798
      %v1831 = vunpack.c.l.b16 %v1799
      %v1832 = vunpack.c.l.b16 %v1800
      %v1833 = vunpack.c.l.b16 %v1801
      %v1834 = vunpack.c.l.b16 %v1802
      %v1835 = vunpack.c.l.b16 %v1803
      %v1836 = vunpack.c.l.b16 %v1804
      %v1837 = vunpack.c.l.b16 %v1805
      %v1838 = vunpack.c.l.b16 %v1806
      %v1839 = vunpack.c.l.b16 %v1807
      %v1840 = vunpack.c.l.b16 %v1808
      %v1841 = vunpack.c.l.b16 %v1809
      %v1842 = vunpack.c.l.b16 %v1810
      %v1843 = vpack.c.b16 %v1828, %v1827
      %v1844 = vpack.c.b16 %v1830, %v1829
      %v1845 = vpack.c.b16 %v1832, %v1831
      %v1846 = vpack.c.b16 %v1834, %v1833
      %v1847 = vpack.c.b16 %v1836, %v1835
      %v1848 = vpack.c.b16 %v1838, %v1837
      %v1849 = vpack.c.b16 %v1840, %v1839
      %v1850 = vpack.c.b16 %v1842, %v1841
      %1859 = vmatprep.subr.bf16.mxu0 0
      %1860 = vmatpush1.bf16.msra.mxu0 %v1843
      %1861 = vmatprep.subr.bf16.mxu0 0
      %1862 = vmatpush1.bf16.msra.mxu0 %v1844
      %1863 = vmatprep.subr.bf16.mxu0 0
      %1864 = vmatpush1.bf16.msra.mxu0 %v1845
      %1865 = vmatprep.subr.bf16.mxu0 0
      %1866 = vmatpush1.bf16.msra.mxu0 %v1846
      %1867 = vmatprep.subr.bf16.mxu0 0
      %1868 = vmatpush1.bf16.msra.mxu0 %v1847
      %1869 = vmatprep.subr.bf16.mxu0 0
      %1870 = vmatpush1.bf16.msra.mxu0 %v1848
      %1871 = vmatprep.subr.bf16.mxu0 0
      %1872 = vmatpush1.bf16.msra.mxu0 %v1849
      %1873 = vmatprep.subr.bf16.mxu0 0
      %1874 = vmatpush1.bf16.msra.mxu0 %v1850
      %1875 = vmatprep.subr.bf16.mxu0 0
      %1876 = vmatpush1.bf16.msra.mxu0 0
      %1877 = vmatprep.subr.bf16.mxu0 0
      %1878 = vmatpush1.bf16.msra.mxu0 0
      %1879 = vmatprep.subr.bf16.mxu0 0
      %1880 = vmatpush1.bf16.msra.mxu0 0
      %1881 = vmatprep.subr.bf16.mxu0 0
      %1882 = vmatpush1.bf16.msra.mxu0 0
      %1883 = vmatprep.subr.bf16.mxu0 0
      %1884 = vmatpush1.bf16.msra.mxu0 0
      %1885 = vmatprep.subr.bf16.mxu0 0
      %1886 = vmatpush1.bf16.msra.mxu0 0
      %1887 = vmatprep.subr.bf16.mxu0 0
      %1888 = vmatpush1.bf16.msra.mxu0 0
      %1889 = vmatprep.subr.bf16.mxu0 0
      %1890 = vmatpush1.bf16.msra.mxu0 0
      %1891 = vmatprep.mubr.bf16.mxu0 0
      %1892 = vmatmul.mubr.bf16.gmra.mrb[0].mxu0 %v626
      %v1893 = vpop.f32.mrb[0].mxu0
      %v1894 = vadd.f32 0.0, %v1893
      %v1895 = vpop.f32.mrb[0].mxu0
      %v1896 = vpop.f32.mrb[0].mxu0
      %v1897 = vadd.f32 0.0, %v1896
      %v1898 = vpop.f32.mrb[0].mxu0
      %1899 = vmatprep.mubr.bf16.mxu0 0
      %1900 = vmatmul.mubr.bf16.gmra.mrb[0].mxu0 %v627
      %v1901 = vpop.f32.mrb[0].mxu0
      %v1902 = vadd.f32 0.0, %v1901
      %v1903 = vpop.f32.mrb[0].mxu0
      %v1904 = vpop.f32.mrb[0].mxu0
      %v1905 = vadd.f32 0.0, %v1904
      %v1906 = vpop.f32.mrb[0].mxu0
      %1907 = vmatprep.mubr.bf16.mxu0 0
      %1908 = vmatmul.mubr.bf16.gmra.mrb[0].mxu0 %v628
      %v1909 = vpop.f32.mrb[0].mxu0
      %v1910 = vadd.f32 0.0, %v1909
      %v1911 = vpop.f32.mrb[0].mxu0
      %v1912 = vpop.f32.mrb[0].mxu0
      %v1913 = vadd.f32 0.0, %v1912
      %v1914 = vpop.f32.mrb[0].mxu0
      %1915 = vmatprep.mubr.bf16.mxu0 0
      %1916 = vmatmul.mubr.bf16.gmra.mrb[0].mxu0 %v629
      %v1917 = vpop.f32.mrb[0].mxu0
      %v1918 = vadd.f32 0.0, %v1917
      %v1919 = vpop.f32.mrb[0].mxu0
      %v1920 = vpop.f32.mrb[0].mxu0
      %v1921 = vadd.f32 0.0, %v1920
      %v1922 = vpop.f32.mrb[0].mxu0
      %1923 = vmatprep.mubr.bf16.mxu0 0
      %1924 = vmatmul.mubr.bf16.gmra.mrb[0].mxu0 %v630
      %v1925 = vpop.f32.mrb[0].mxu0
      %v1926 = vadd.f32 0.0, %v1925
      %v1927 = vpop.f32.mrb[0].mxu0
      %v1928 = vpop.f32.mrb[0].mxu0
      %v1929 = vadd.f32 0.0, %v1928
      %v1930 = vpop.f32.mrb[0].mxu0
      %1931 = vmatprep.mubr.bf16.mxu0 0
      %1932 = vmatmul.mubr.bf16.gmra.mrb[0].mxu0 %v631
      %v1933 = vpop.f32.mrb[0].mxu0
      %v1934 = vadd.f32 0.0, %v1933
      %v1935 = vpop.f32.mrb[0].mxu0
      %v1936 = vpop.f32.mrb[0].mxu0
      %v1937 = vadd.f32 0.0, %v1936
      %v1938 = vpop.f32.mrb[0].mxu0
      %1939 = vmatprep.mubr.bf16.mxu0 0
      %1940 = vmatmul.mubr.bf16.gmra.mrb[0].mxu0 %v632
      %v1941 = vpop.f32.mrb[0].mxu0
      %v1942 = vadd.f32 0.0, %v1941
      %v1943 = vpop.f32.mrb[0].mxu0
      %v1944 = vpop.f32.mrb[0].mxu0
      %v1945 = vadd.f32 0.0, %v1944
      %v1946 = vpop.f32.mrb[0].mxu0
      %1947 = vmatprep.mubr.bf16.mxu0 0
      %1948 = vmatmul.mubr.bf16.gmra.mrb[0].mxu0 %v633
      %v1949 = vpop.f32.mrb[0].mxu0
      %v1950 = vadd.f32 0.0, %v1949
      %v1951 = vpop.f32.mrb[0].mxu0
      %v1952 = vpop.f32.mrb[0].mxu0
      %v1953 = vadd.f32 0.0, %v1952
      %v1954 = vpop.f32.mrb[0].mxu0
      %1955 = vmatprep.mubr.bf16.mxu0 0
      %1956 = vmatmul.mubr.bf16.gmra.mrb[0].mxu0 %v634
      %v1957 = vpop.f32.mrb[0].mxu0
      %v1958 = vadd.f32 0.0, %v1957
      %v1959 = vpop.f32.mrb[0].mxu0
      %v1960 = vpop.f32.mrb[0].mxu0
      %v1961 = vadd.f32 0.0, %v1960
      %v1962 = vpop.f32.mrb[0].mxu0
      %1963 = vmatprep.mubr.bf16.mxu0 0
      %1964 = vmatmul.mubr.bf16.gmra.mrb[0].mxu0 %v635
      %v1965 = vpop.f32.mrb[0].mxu0
      %v1966 = vadd.f32 0.0, %v1965
      %v1967 = vpop.f32.mrb[0].mxu0
      %v1968 = vpop.f32.mrb[0].mxu0
      %v1969 = vadd.f32 0.0, %v1968
      %v1970 = vpop.f32.mrb[0].mxu0
      %1971 = vmatprep.mubr.bf16.mxu0 0
      %1972 = vmatmul.mubr.bf16.gmra.mrb[0].mxu0 %v636
      %v1973 = vpop.f32.mrb[0].mxu0
      %v1974 = vadd.f32 0.0, %v1973
      %v1975 = vpop.f32.mrb[0].mxu0
      %v1976 = vpop.f32.mrb[0].mxu0
      %v1977 = vadd.f32 0.0, %v1976
      %v1978 = vpop.f32.mrb[0].mxu0
      %1979 = vmatprep.mubr.bf16.mxu0 0
      %1980 = vmatmul.mubr.bf16.gmra.mrb[0].mxu0 %v637
      %v1981 = vpop.f32.mrb[0].mxu0
      %v1982 = vadd.f32 0.0, %v1981
      %v1983 = vpop.f32.mrb[0].mxu0
      %v1984 = vpop.f32.mrb[0].mxu0
      %v1985 = vadd.f32 0.0, %v1984
      %v1986 = vpop.f32.mrb[0].mxu0
      %1987 = vmatprep.mubr.bf16.mxu0 0
      %1988 = vmatmul.mubr.bf16.gmra.mrb[0].mxu0 %v638
      %v1989 = vpop.f32.mrb[0].mxu0
      %v1990 = vadd.f32 0.0, %v1989
      %v1991 = vpop.f32.mrb[0].mxu0
      %v1992 = vpop.f32.mrb[0].mxu0
      %v1993 = vadd.f32 0.0, %v1992
      %v1994 = vpop.f32.mrb[0].mxu0
      %1995 = vmatprep.mubr.bf16.mxu0 0
      %1996 = vmatmul.mubr.bf16.gmra.mrb[0].mxu0 %v639
      %v1997 = vpop.f32.mrb[0].mxu0
      %v1998 = vadd.f32 0.0, %v1997
      %v1999 = vpop.f32.mrb[0].mxu0
      %v2000 = vpop.f32.mrb[0].mxu0
      %v2001 = vadd.f32 0.0, %v2000
      %v2002 = vpop.f32.mrb[0].mxu0
      %2003 = vmatprep.mubr.bf16.mxu0 0
      %2004 = vmatmul.mubr.bf16.gmra.mrb[0].mxu0 %v640
      %v2005 = vpop.f32.mrb[0].mxu0
      %v2006 = vadd.f32 0.0, %v2005
      %v2007 = vpop.f32.mrb[0].mxu0
      %v2008 = vpop.f32.mrb[0].mxu0
      %v2009 = vadd.f32 0.0, %v2008
      %v2010 = vpop.f32.mrb[0].mxu0
      %2011 = vmatprep.mubr.bf16.mxu0 0
      %2012 = vmatmul.mubr.bf16.gmra.mrb[0].mxu0 %v641
      %v2013 = vpop.f32.mrb[0].mxu0
      %v2014 = vadd.f32 0.0, %v2013
      %v2015 = vpop.f32.mrb[0].mxu0
      %v2016 = vpop.f32.mrb[0].mxu0
      %v2017 = vadd.f32 0.0, %v2016
      %v2018 = vpop.f32.mrb[0].mxu0
      %2019 = vdwg.mxu0
      %v2020 = vadd.f32 %v1762, %v1894
      %v2021 = vadd.f32 %v1763, %v1897
      %v2022 = vadd.f32 %v1764, %v1902
      %v2023 = vadd.f32 %v1765, %v1905
      %v2024 = vadd.f32 %v1766, %v1910
      %v2025 = vadd.f32 %v1767, %v1913
      %v2026 = vadd.f32 %v1768, %v1918
      %v2027 = vadd.f32 %v1769, %v1921
      %v2028 = vadd.f32 %v1770, %v1926
      %v2029 = vadd.f32 %v1771, %v1929
      %v2030 = vadd.f32 %v1772, %v1934
      %v2031 = vadd.f32 %v1773, %v1937
      %v2032 = vadd.f32 %v1774, %v1942
      %v2033 = vadd.f32 %v1775, %v1945
      %v2034 = vadd.f32 %v1776, %v1950
      %v2035 = vadd.f32 %v1777, %v1953
      %v2036 = vadd.f32 %v1778, %v1958
      %v2037 = vadd.f32 %v1779, %v1961
      %v2038 = vadd.f32 %v1780, %v1966
      %v2039 = vadd.f32 %v1781, %v1969
      %v2040 = vadd.f32 %v1782, %v1974
      %v2041 = vadd.f32 %v1783, %v1977
      %v2042 = vadd.f32 %v1784, %v1982
      %v2043 = vadd.f32 %v1785, %v1985
      %v2044 = vadd.f32 %v1786, %v1990
      %v2045 = vadd.f32 %v1787, %v1993
      %v2046 = vadd.f32 %v1788, %v1998
      %v2047 = vadd.f32 %v1789, %v2001
      %v2048 = vadd.f32 %v1790, %v2006
      %v2049 = vadd.f32 %v1791, %v2009
      %v2050 = vadd.f32 %v1792, %v2014
      %v2051 = vadd.f32 %v1793, %v2017
      %s2052 = scalar_lea.vmem %s3, 320
      %v2053 = vld [vmem:[%s2052] sm:$0xf]
      %v2054 = vld [vmem:[%s2052 + $0x4] sm:$0xf]
      %v2055 = vld [vmem:[%s2052 + $0x8] sm:$0xf]
      %v2056 = vld [vmem:[%s2052 + $0xc] sm:$0xf]
      %v2057 = vld [vmem:[%s2052 + $0x10] sm:$0xf]
      %v2058 = vld [vmem:[%s2052 + $0x14] sm:$0xf]
      %v2059 = vld [vmem:[%s2052 + $0x18] sm:$0xf]
      %v2060 = vld [vmem:[%s2052 + $0x1c] sm:$0xf]
      %v2061 = vld [vmem:[%s2052 + $0x20] sm:$0xf]
      %v2062 = vld [vmem:[%s2052 + $0x24] sm:$0xf]
      %v2063 = vld [vmem:[%s2052 + $0x28] sm:$0xf]
      %v2064 = vld [vmem:[%s2052 + $0x2c] sm:$0xf]
      %v2065 = vld [vmem:[%s2052 + $0x30] sm:$0xf]
      %v2066 = vld [vmem:[%s2052 + $0x34] sm:$0xf]
      %v2067 = vld [vmem:[%s2052 + $0x38] sm:$0xf]
      %v2068 = vld [vmem:[%s2052 + $0x3c] sm:$0xf]
      %v2085 = vunpack.c.l.b16 %v2053
      %v2086 = vunpack.c.l.b16 %v2054
      %v2087 = vunpack.c.l.b16 %v2055
      %v2088 = vunpack.c.l.b16 %v2056
      %v2089 = vunpack.c.l.b16 %v2057
      %v2090 = vunpack.c.l.b16 %v2058
      %v2091 = vunpack.c.l.b16 %v2059
      %v2092 = vunpack.c.l.b16 %v2060
      %v2093 = vunpack.c.l.b16 %v2061
      %v2094 = vunpack.c.l.b16 %v2062
      %v2095 = vunpack.c.l.b16 %v2063
      %v2096 = vunpack.c.l.b16 %v2064
      %v2097 = vunpack.c.l.b16 %v2065
      %v2098 = vunpack.c.l.b16 %v2066
      %v2099 = vunpack.c.l.b16 %v2067
      %v2100 = vunpack.c.l.b16 %v2068
      %v2101 = vpack.c.b16 %v2086, %v2085
      %v2102 = vpack.c.b16 %v2088, %v2087
      %v2103 = vpack.c.b16 %v2090, %v2089
      %v2104 = vpack.c.b16 %v2092, %v2091
      %v2105 = vpack.c.b16 %v2094, %v2093
      %v2106 = vpack.c.b16 %v2096, %v2095
      %v2107 = vpack.c.b16 %v2098, %v2097
      %v2108 = vpack.c.b16 %v2100, %v2099
      %2117 = vmatprep.subr.bf16.mxu0 0
      %2118 = vmatpush1.bf16.msra.mxu0 %v2101
      %2119 = vmatprep.subr.bf16.mxu0 0
      %2120 = vmatpush1.bf16.msra.mxu0 %v2102
      %2121 = vmatprep.subr.bf16.mxu0 0
      %2122 = vmatpush1.bf16.msra.mxu0 %v2103
      %2123 = vmatprep.subr.bf16.mxu0 0
      %2124 = vmatpush1.bf16.msra.mxu0 %v2104
      %2125 = vmatprep.subr.bf16.mxu0 0
      %2126 = vmatpush1.bf16.msra.mxu0 %v2105
      %2127 = vmatprep.subr.bf16.mxu0 0
      %2128 = vmatpush1.bf16.msra.mxu0 %v2106
      %2129 = vmatprep.subr.bf16.mxu0 0
      %2130 = vmatpush1.bf16.msra.mxu0 %v2107
      %2131 = vmatprep.subr.bf16.mxu0 0
      %2132 = vmatpush1.bf16.msra.mxu0 %v2108
      %2133 = vmatprep.subr.bf16.mxu0 0
      %2134 = vmatpush1.bf16.msra.mxu0 0
      %2135 = vmatprep.subr.bf16.mxu0 0
      %2136 = vmatpush1.bf16.msra.mxu0 0
      %2137 = vmatprep.subr.bf16.mxu0 0
      %2138 = vmatpush1.bf16.msra.mxu0 0
      %2139 = vmatprep.subr.bf16.mxu0 0
      %2140 = vmatpush1.bf16.msra.mxu0 0
      %2141 = vmatprep.subr.bf16.mxu0 0
      %2142 = vmatpush1.bf16.msra.mxu0 0
      %2143 = vmatprep.subr.bf16.mxu0 0
      %2144 = vmatpush1.bf16.msra.mxu0 0
      %2145 = vmatprep.subr.bf16.mxu0 0
      %2146 = vmatpush1.bf16.msra.mxu0 0
      %2147 = vmatprep.subr.bf16.mxu0 0
      %2148 = vmatpush1.bf16.msra.mxu0 0
      %2149 = vmatprep.mubr.bf16.mxu0 0
      %2150 = vmatmul.mubr.bf16.gmra.mrb[0].mxu0 %v628
      %v2151 = vpop.f32.mrb[0].mxu0
      %v2152 = vadd.f32 0.0, %v2151
      %v2153 = vpop.f32.mrb[0].mxu0
      %v2154 = vpop.f32.mrb[0].mxu0
      %v2155 = vadd.f32 0.0, %v2154
      %v2156 = vpop.f32.mrb[0].mxu0
      %2157 = vmatprep.mubr.bf16.mxu0 0
      %2158 = vmatmul.mubr.bf16.gmra.mrb[0].mxu0 %v629
      %v2159 = vpop.f32.mrb[0].mxu0
      %v2160 = vadd.f32 0.0, %v2159
      %v2161 = vpop.f32.mrb[0].mxu0
      %v2162 = vpop.f32.mrb[0].mxu0
      %v2163 = vadd.f32 0.0, %v2162
      %v2164 = vpop.f32.mrb[0].mxu0
      %2165 = vmatprep.mubr.bf16.mxu0 0
      %2166 = vmatmul.mubr.bf16.gmra.mrb[0].mxu0 %v630
      %v2167 = vpop.f32.mrb[0].mxu0
      %v2168 = vadd.f32 0.0, %v2167
      %v2169 = vpop.f32.mrb[0].mxu0
      %v2170 = vpop.f32.mrb[0].mxu0
      %v2171 = vadd.f32 0.0, %v2170
      %v2172 = vpop.f32.mrb[0].mxu0
      %2173 = vmatprep.mubr.bf16.mxu0 0
      %2174 = vmatmul.mubr.bf16.gmra.mrb[0].mxu0 %v631
      %v2175 = vpop.f32.mrb[0].mxu0
      %v2176 = vadd.f32 0.0, %v2175
      %v2177 = vpop.f32.mrb[0].mxu0
      %v2178 = vpop.f32.mrb[0].mxu0
      %v2179 = vadd.f32 0.0, %v2178
      %v2180 = vpop.f32.mrb[0].mxu0
      %2181 = vmatprep.mubr.bf16.mxu0 0
      %2182 = vmatmul.mubr.bf16.gmra.mrb[0].mxu0 %v632
      %v2183 = vpop.f32.mrb[0].mxu0
      %v2184 = vadd.f32 0.0, %v2183
      %v2185 = vpop.f32.mrb[0].mxu0
      %v2186 = vpop.f32.mrb[0].mxu0
      %v2187 = vadd.f32 0.0, %v2186
      %v2188 = vpop.f32.mrb[0].mxu0
      %2189 = vmatprep.mubr.bf16.mxu0 0
      %2190 = vmatmul.mubr.bf16.gmra.mrb[0].mxu0 %v633
      %v2191 = vpop.f32.mrb[0].mxu0
      %v2192 = vadd.f32 0.0, %v2191
      %v2193 = vpop.f32.mrb[0].mxu0
      %v2194 = vpop.f32.mrb[0].mxu0
      %v2195 = vadd.f32 0.0, %v2194
      %v2196 = vpop.f32.mrb[0].mxu0
      %2197 = vmatprep.mubr.bf16.mxu0 0
      %2198 = vmatmul.mubr.bf16.gmra.mrb[0].mxu0 %v634
      %v2199 = vpop.f32.mrb[0].mxu0
      %v2200 = vadd.f32 0.0, %v2199
      %v2201 = vpop.f32.mrb[0].mxu0
      %v2202 = vpop.f32.mrb[0].mxu0
      %v2203 = vadd.f32 0.0, %v2202
      %v2204 = vpop.f32.mrb[0].mxu0
      %2205 = vmatprep.mubr.bf16.mxu0 0
      %2206 = vmatmul.mubr.bf16.gmra.mrb[0].mxu0 %v635
      %v2207 = vpop.f32.mrb[0].mxu0
      %v2208 = vadd.f32 0.0, %v2207
      %v2209 = vpop.f32.mrb[0].mxu0
      %v2210 = vpop.f32.mrb[0].mxu0
      %v2211 = vadd.f32 0.0, %v2210
      %v2212 = vpop.f32.mrb[0].mxu0
      %2213 = vmatprep.mubr.bf16.mxu0 0
      %2214 = vmatmul.mubr.bf16.gmra.mrb[0].mxu0 %v636
      %v2215 = vpop.f32.mrb[0].mxu0
      %v2216 = vadd.f32 0.0, %v2215
      %v2217 = vpop.f32.mrb[0].mxu0
      %v2218 = vpop.f32.mrb[0].mxu0
      %v2219 = vadd.f32 0.0, %v2218
      %v2220 = vpop.f32.mrb[0].mxu0
      %2221 = vmatprep.mubr.bf16.mxu0 0
      %2222 = vmatmul.mubr.bf16.gmra.mrb[0].mxu0 %v637
      %v2223 = vpop.f32.mrb[0].mxu0
      %v2224 = vadd.f32 0.0, %v2223
      %v2225 = vpop.f32.mrb[0].mxu0
      %v2226 = vpop.f32.mrb[0].mxu0
      %v2227 = vadd.f32 0.0, %v2226
      %v2228 = vpop.f32.mrb[0].mxu0
      %2229 = vmatprep.mubr.bf16.mxu0 0
      %2230 = vmatmul.mubr.bf16.gmra.mrb[0].mxu0 %v638
      %v2231 = vpop.f32.mrb[0].mxu0
      %v2232 = vadd.f32 0.0, %v2231
      %v2233 = vpop.f32.mrb[0].mxu0
      %v2234 = vpop.f32.mrb[0].mxu0
      %v2235 = vadd.f32 0.0, %v2234
      %v2236 = vpop.f32.mrb[0].mxu0
      %2237 = vmatprep.mubr.bf16.mxu0 0
      %2238 = vmatmul.mubr.bf16.gmra.mrb[0].mxu0 %v639
      %v2239 = vpop.f32.mrb[0].mxu0
      %v2240 = vadd.f32 0.0, %v2239
      %v2241 = vpop.f32.mrb[0].mxu0
      %v2242 = vpop.f32.mrb[0].mxu0
      %v2243 = vadd.f32 0.0, %v2242
      %v2244 = vpop.f32.mrb[0].mxu0
      %2245 = vmatprep.mubr.bf16.mxu0 0
      %2246 = vmatmul.mubr.bf16.gmra.mrb[0].mxu0 %v640
      %v2247 = vpop.f32.mrb[0].mxu0
      %v2248 = vadd.f32 0.0, %v2247
      %v2249 = vpop.f32.mrb[0].mxu0
      %v2250 = vpop.f32.mrb[0].mxu0
      %v2251 = vadd.f32 0.0, %v2250
      %v2252 = vpop.f32.mrb[0].mxu0
      %2253 = vmatprep.mubr.bf16.mxu0 0
      %2254 = vmatmul.mubr.bf16.gmra.mrb[0].mxu0 %v641
      %v2255 = vpop.f32.mrb[0].mxu0
      %v2256 = vadd.f32 0.0, %v2255
      %v2257 = vpop.f32.mrb[0].mxu0
      %v2258 = vpop.f32.mrb[0].mxu0
      %v2259 = vadd.f32 0.0, %v2258
      %v2260 = vpop.f32.mrb[0].mxu0
      %2261 = vmatprep.mubr.bf16.mxu0 0
      %2262 = vmatmul.mubr.bf16.gmra.mrb[0].mxu0 %v642
      %v2263 = vpop.f32.mrb[0].mxu0
      %v2264 = vadd.f32 0.0, %v2263
      %v2265 = vpop.f32.mrb[0].mxu0
      %v2266 = vpop.f32.mrb[0].mxu0
      %v2267 = vadd.f32 0.0, %v2266
      %v2268 = vpop.f32.mrb[0].mxu0
      %2269 = vmatprep.mubr.bf16.mxu0 0
      %2270 = vmatmul.mubr.bf16.gmra.mrb[0].mxu0 %v643
      %v2271 = vpop.f32.mrb[0].mxu0
      %v2272 = vadd.f32 0.0, %v2271
      %v2273 = vpop.f32.mrb[0].mxu0
      %v2274 = vpop.f32.mrb[0].mxu0
      %v2275 = vadd.f32 0.0, %v2274
      %v2276 = vpop.f32.mrb[0].mxu0
      %2277 = vdwg.mxu0
      %v2278 = vadd.f32 %v2020, %v2152
      %v2279 = vadd.f32 %v2021, %v2155
      %v2280 = vadd.f32 %v2022, %v2160
      %v2281 = vadd.f32 %v2023, %v2163
      %v2282 = vadd.f32 %v2024, %v2168
      %v2283 = vadd.f32 %v2025, %v2171
      %v2284 = vadd.f32 %v2026, %v2176
      %v2285 = vadd.f32 %v2027, %v2179
      %v2286 = vadd.f32 %v2028, %v2184
      %v2287 = vadd.f32 %v2029, %v2187
      %v2288 = vadd.f32 %v2030, %v2192
      %v2289 = vadd.f32 %v2031, %v2195
      %v2290 = vadd.f32 %v2032, %v2200
      %v2291 = vadd.f32 %v2033, %v2203
      %v2292 = vadd.f32 %v2034, %v2208
      %v2293 = vadd.f32 %v2035, %v2211
      %v2294 = vadd.f32 %v2036, %v2216
      %v2295 = vadd.f32 %v2037, %v2219
      %v2296 = vadd.f32 %v2038, %v2224
      %v2297 = vadd.f32 %v2039, %v2227
      %v2298 = vadd.f32 %v2040, %v2232
      %v2299 = vadd.f32 %v2041, %v2235
      %v2300 = vadd.f32 %v2042, %v2240
      %v2301 = vadd.f32 %v2043, %v2243
      %v2302 = vadd.f32 %v2044, %v2248
      %v2303 = vadd.f32 %v2045, %v2251
      %v2304 = vadd.f32 %v2046, %v2256
      %v2305 = vadd.f32 %v2047, %v2259
      %v2306 = vadd.f32 %v2048, %v2264
      %v2307 = vadd.f32 %v2049, %v2267
      %v2308 = vadd.f32 %v2050, %v2272
      %v2309 = vadd.f32 %v2051, %v2275
      %vm2310 = vsmask.f32 7424
      %v2311 = vrot.slane %v649, 1
      %v2312 = vor.u32 %v646, %v2311
      %v2313 = vrot.slane %v656, 1
      %v2314 = vsel %vm2310, %v2312, %v2313
      %v2315 = vor.u32 %v653, %v2313
      %v2316 = vrot.slane %v664, 1
      %v2317 = vor.u32 %v661, %v2316
      %v2318 = vrot.slane %v671, 1
      %v2319 = vsel %vm2310, %v2317, %v2318
      %v2320 = vor.u32 %v668, %v2318
      %v2321 = vrot.slane %v679, 1
      %v2322 = vor.u32 %v676, %v2321
      %v2323 = vrot.slane %v686, 1
      %v2324 = vsel %vm2310, %v2322, %v2323
      %v2325 = vor.u32 %v683, %v2323
      %v2326 = vrot.slane %v694, 1
      %v2327 = vor.u32 %v691, %v2326
      %v2328 = vrot.slane %v701, 1
      %v2329 = vsel %vm2310, %v2327, %v2328
      %v2330 = vor.u32 %v698, %v2328
      %v2331 = vrot.slane %v709, 1
      %v2332 = vor.u32 %v706, %v2331
      %v2333 = vrot.slane %v716, 1
      %v2334 = vsel %vm2310, %v2332, %v2333
      %v2335 = vor.u32 %v713, %v2333
      %v2336 = vrot.slane %v724, 1
      %v2337 = vor.u32 %v721, %v2336
      %v2338 = vrot.slane %v731, 1
      %v2339 = vsel %vm2310, %v2337, %v2338
      %v2340 = vor.u32 %v728, %v2338
      %v2341 = vrot.slane %v739, 1
      %v2342 = vor.u32 %v736, %v2341
      %v2343 = vrot.slane %v746, 1
      %v2344 = vsel %vm2310, %v2342, %v2343
      %v2345 = vor.u32 %v743, %v2343
      %v2346 = vrot.slane %v754, 1
      %v2347 = vor.u32 %v751, %v2346
      %v2348 = vrot.slane %v761, 1
      %v2349 = vsel %vm2310, %v2347, %v2348
      %v2350 = vor.u32 %v758, %v2348
      %v2351 = vrot.slane %v769, 1
      %v2352 = vor.u32 %v766, %v2351
      %v2353 = vrot.slane %v776, 1
      %v2354 = vsel %vm2310, %v2352, %v2353
      %v2355 = vor.u32 %v773, %v2353
      %v2356 = vrot.slane %v784, 1
      %v2357 = vor.u32 %v781, %v2356
      %v2358 = vrot.slane %v791, 1
      %v2359 = vsel %vm2310, %v2357, %v2358
      %v2360 = vor.u32 %v788, %v2358
      %vm2381 = vcmask 1047552
      %vm2382 = vmand %vm2381, %vm2310
      %v2383 = vsel %vm2382, %v2315, 0
      %v2384 = vsel %vm2382, %v2320, 0
      %v2385 = vsel %vm2382, %v2325, 0
      %v2386 = vsel %vm2382, %v2330, 0
      %v2387 = vsel %vm2382, %v2335, 0
      %v2388 = vsel %vm2382, %v2340, 0
      %v2389 = vsel %vm2382, %v2345, 0
      %v2390 = vsel %vm2382, %v2350, 0
      %v2391 = vsel %vm2382, %v2355, 0
      %v2392 = vsel %vm2382, %v2360, 0
      %s2393 = scalar_lea.vmem %s3, 384
      %v2394 = vld [vmem:[%s2393] sm:$0xf]
      %v2395 = vld [vmem:[%s2393 + $0x4] sm:$0xf]
      %v2396 = vld [vmem:[%s2393 + $0x8] sm:$0xf]
      %v2397 = vld [vmem:[%s2393 + $0xc] sm:$0xf]
      %v2398 = vld [vmem:[%s2393 + $0x10] sm:$0xf]
      %v2399 = vld [vmem:[%s2393 + $0x14] sm:$0xf]
      %v2400 = vld [vmem:[%s2393 + $0x18] sm:$0xf]
      %v2401 = vld [vmem:[%s2393 + $0x1c] sm:$0xf]
      %v2402 = vld [vmem:[%s2393 + $0x20] sm:$0xf]
      %v2403 = vld [vmem:[%s2393 + $0x24] sm:$0xf]
      %v2404 = vld [vmem:[%s2393 + $0x28] sm:$0xf]
      %v2405 = vld [vmem:[%s2393 + $0x2c] sm:$0xf]
      %v2406 = vld [vmem:[%s2393 + $0x30] sm:$0xf]
      %v2407 = vld [vmem:[%s2393 + $0x34] sm:$0xf]
      %v2408 = vld [vmem:[%s2393 + $0x38] sm:$0xf]
      %v2409 = vld [vmem:[%s2393 + $0x3c] sm:$0xf]
      %v2426 = vunpack.c.l.b16 %v2394
      %v2427 = vunpack.c.l.b16 %v2395
      %v2428 = vunpack.c.l.b16 %v2396
      %v2429 = vunpack.c.l.b16 %v2397
      %v2430 = vunpack.c.l.b16 %v2398
      %v2431 = vunpack.c.l.b16 %v2399
      %v2432 = vunpack.c.l.b16 %v2400
      %v2433 = vunpack.c.l.b16 %v2401
      %v2434 = vunpack.c.l.b16 %v2402
      %v2435 = vunpack.c.l.b16 %v2403
      %v2436 = vunpack.c.l.b16 %v2404
      %v2437 = vunpack.c.l.b16 %v2405
      %v2438 = vunpack.c.l.b16 %v2406
      %v2439 = vunpack.c.l.b16 %v2407
      %v2440 = vunpack.c.l.b16 %v2408
      %v2441 = vunpack.c.l.b16 %v2409
      %v2442 = vpack.c.b16 %v2427, %v2426
      %v2443 = vpack.c.b16 %v2429, %v2428
      %v2444 = vpack.c.b16 %v2431, %v2430
      %v2445 = vpack.c.b16 %v2433, %v2432
      %v2446 = vpack.c.b16 %v2435, %v2434
      %v2447 = vpack.c.b16 %v2437, %v2436
      %v2448 = vpack.c.b16 %v2439, %v2438
      %v2449 = vpack.c.b16 %v2441, %v2440
      %2458 = vmatprep.subr.bf16.mxu0 0
      %2459 = vmatpush1.bf16.msra.mxu0 %v2442
      %2460 = vmatprep.subr.bf16.mxu0 0
      %2461 = vmatpush1.bf16.msra.mxu0 %v2443
      %2462 = vmatprep.subr.bf16.mxu0 0
      %2463 = vmatpush1.bf16.msra.mxu0 %v2444
      %2464 = vmatprep.subr.bf16.mxu0 0
      %2465 = vmatpush1.bf16.msra.mxu0 %v2445
      %2466 = vmatprep.subr.bf16.mxu0 0
      %2467 = vmatpush1.bf16.msra.mxu0 %v2446
      %2468 = vmatprep.subr.bf16.mxu0 0
      %2469 = vmatpush1.bf16.msra.mxu0 %v2447
      %2470 = vmatprep.subr.bf16.mxu0 0
      %2471 = vmatpush1.bf16.msra.mxu0 %v2448
      %2472 = vmatprep.subr.bf16.mxu0 0
      %2473 = vmatpush1.bf16.msra.mxu0 %v2449
      %2474 = vmatprep.subr.bf16.mxu0 0
      %2475 = vmatpush1.bf16.msra.mxu0 0
      %2476 = vmatprep.subr.bf16.mxu0 0
      %2477 = vmatpush1.bf16.msra.mxu0 0
      %2478 = vmatprep.subr.bf16.mxu0 0
      %2479 = vmatpush1.bf16.msra.mxu0 0
      %2480 = vmatprep.subr.bf16.mxu0 0
      %2481 = vmatpush1.bf16.msra.mxu0 0
      %2482 = vmatprep.subr.bf16.mxu0 0
      %2483 = vmatpush1.bf16.msra.mxu0 0
      %2484 = vmatprep.subr.bf16.mxu0 0
      %2485 = vmatpush1.bf16.msra.mxu0 0
      %2486 = vmatprep.subr.bf16.mxu0 0
      %2487 = vmatpush1.bf16.msra.mxu0 0
      %2488 = vmatprep.subr.bf16.mxu0 0
      %2489 = vmatpush1.bf16.msra.mxu0 0
      %2490 = vmatprep.mubr.bf16.mxu0 0
      %2491 = vmatmul.mubr.bf16.gmra.mrb[0].mxu0 %v2314
      %v2492 = vpop.f32.mrb[0].mxu0
      %v2493 = vadd.f32 0.0, %v2492
      %v2494 = vpop.f32.mrb[0].mxu0
      %v2495 = vpop.f32.mrb[0].mxu0
      %v2496 = vadd.f32 0.0, %v2495
      %v2497 = vpop.f32.mrb[0].mxu0
      %2498 = vmatprep.mubr.bf16.mxu0 0
      %2499 = vmatmul.mubr.bf16.gmra.mrb[0].mxu0 %v2383
      %v2500 = vpop.f32.mrb[0].mxu0
      %v2501 = vadd.f32 0.0, %v2500
      %v2502 = vpop.f32.mrb[0].mxu0
      %v2503 = vpop.f32.mrb[0].mxu0
      %v2504 = vadd.f32 0.0, %v2503
      %v2505 = vpop.f32.mrb[0].mxu0
      %2506 = vmatprep.mubr.bf16.mxu0 0
      %2507 = vmatmul.mubr.bf16.gmra.mrb[0].mxu0 %v2319
      %v2508 = vpop.f32.mrb[0].mxu0
      %v2509 = vadd.f32 0.0, %v2508
      %v2510 = vpop.f32.mrb[0].mxu0
      %v2511 = vpop.f32.mrb[0].mxu0
      %v2512 = vadd.f32 0.0, %v2511
      %v2513 = vpop.f32.mrb[0].mxu0
      %2514 = vmatprep.mubr.bf16.mxu0 0
      %2515 = vmatmul.mubr.bf16.gmra.mrb[0].mxu0 %v2384
      %v2516 = vpop.f32.mrb[0].mxu0
      %v2517 = vadd.f32 0.0, %v2516
      %v2518 = vpop.f32.mrb[0].mxu0
      %v2519 = vpop.f32.mrb[0].mxu0
      %v2520 = vadd.f32 0.0, %v2519
      %v2521 = vpop.f32.mrb[0].mxu0
      %2522 = vmatprep.mubr.bf16.mxu0 0
      %2523 = vmatmul.mubr.bf16.gmra.mrb[0].mxu0 %v2324
      %v2524 = vpop.f32.mrb[0].mxu0
      %v2525 = vadd.f32 0.0, %v2524
      %v2526 = vpop.f32.mrb[0].mxu0
      %v2527 = vpop.f32.mrb[0].mxu0
      %v2528 = vadd.f32 0.0, %v2527
      %v2529 = vpop.f32.mrb[0].mxu0
      %2530 = vmatprep.mubr.bf16.mxu0 0
      %2531 = vmatmul.mubr.bf16.gmra.mrb[0].mxu0 %v2385
      %v2532 = vpop.f32.mrb[0].mxu0
      %v2533 = vadd.f32 0.0, %v2532
      %v2534 = vpop.f32.mrb[0].mxu0
      %v2535 = vpop.f32.mrb[0].mxu0
      %v2536 = vadd.f32 0.0, %v2535
      %v2537 = vpop.f32.mrb[0].mxu0
      %2538 = vmatprep.mubr.bf16.mxu0 0
      %2539 = vmatmul.mubr.bf16.gmra.mrb[0].mxu0 %v2329
      %v2540 = vpop.f32.mrb[0].mxu0
      %v2541 = vadd.f32 0.0, %v2540
      %v2542 = vpop.f32.mrb[0].mxu0
      %v2543 = vpop.f32.mrb[0].mxu0
      %v2544 = vadd.f32 0.0, %v2543
      %v2545 = vpop.f32.mrb[0].mxu0
      %2546 = vmatprep.mubr.bf16.mxu0 0
      %2547 = vmatmul.mubr.bf16.gmra.mrb[0].mxu0 %v2386
      %v2548 = vpop.f32.mrb[0].mxu0
      %v2549 = vadd.f32 0.0, %v2548
      %v2550 = vpop.f32.mrb[0].mxu0
      %v2551 = vpop.f32.mrb[0].mxu0
      %v2552 = vadd.f32 0.0, %v2551
      %v2553 = vpop.f32.mrb[0].mxu0
      %2554 = vmatprep.mubr.bf16.mxu0 0
      %2555 = vmatmul.mubr.bf16.gmra.mrb[0].mxu0 %v2334
      %v2556 = vpop.f32.mrb[0].mxu0
      %v2557 = vadd.f32 0.0, %v2556
      %v2558 = vpop.f32.mrb[0].mxu0
      %v2559 = vpop.f32.mrb[0].mxu0
      %v2560 = vadd.f32 0.0, %v2559
      %v2561 = vpop.f32.mrb[0].mxu0
      %2562 = vmatprep.mubr.bf16.mxu0 0
      %2563 = vmatmul.mubr.bf16.gmra.mrb[0].mxu0 %v2387
      %v2564 = vpop.f32.mrb[0].mxu0
      %v2565 = vadd.f32 0.0, %v2564
      %v2566 = vpop.f32.mrb[0].mxu0
      %v2567 = vpop.f32.mrb[0].mxu0
      %v2568 = vadd.f32 0.0, %v2567
      %v2569 = vpop.f32.mrb[0].mxu0
      %2570 = vmatprep.mubr.bf16.mxu0 0
      %2571 = vmatmul.mubr.bf16.gmra.mrb[0].mxu0 %v2339
      %v2572 = vpop.f32.mrb[0].mxu0
      %v2573 = vadd.f32 0.0, %v2572
      %v2574 = vpop.f32.mrb[0].mxu0
      %v2575 = vpop.f32.mrb[0].mxu0
      %v2576 = vadd.f32 0.0, %v2575
      %v2577 = vpop.f32.mrb[0].mxu0
      %2578 = vmatprep.mubr.bf16.mxu0 0
      %2579 = vmatmul.mubr.bf16.gmra.mrb[0].mxu0 %v2388
      %v2580 = vpop.f32.mrb[0].mxu0
      %v2581 = vadd.f32 0.0, %v2580
      %v2582 = vpop.f32.mrb[0].mxu0
      %v2583 = vpop.f32.mrb[0].mxu0
      %v2584 = vadd.f32 0.0, %v2583
      %v2585 = vpop.f32.mrb[0].mxu0
      %2586 = vmatprep.mubr.bf16.mxu0 0
      %2587 = vmatmul.mubr.bf16.gmra.mrb[0].mxu0 %v2344
      %v2588 = vpop.f32.mrb[0].mxu0
      %v2589 = vadd.f32 0.0, %v2588
      %v2590 = vpop.f32.mrb[0].mxu0
      %v2591 = vpop.f32.mrb[0].mxu0
      %v2592 = vadd.f32 0.0, %v2591
      %v2593 = vpop.f32.mrb[0].mxu0
      %2594 = vmatprep.mubr.bf16.mxu0 0
      %2595 = vmatmul.mubr.bf16.gmra.mrb[0].mxu0 %v2389
      %v2596 = vpop.f32.mrb[0].mxu0
      %v2597 = vadd.f32 0.0, %v2596
      %v2598 = vpop.f32.mrb[0].mxu0
      %v2599 = vpop.f32.mrb[0].mxu0
      %v2600 = vadd.f32 0.0, %v2599
      %v2601 = vpop.f32.mrb[0].mxu0
      %2602 = vmatprep.mubr.bf16.mxu0 0
      %2603 = vmatmul.mubr.bf16.gmra.mrb[0].mxu0 %v2349
      %v2604 = vpop.f32.mrb[0].mxu0
      %v2605 = vadd.f32 0.0, %v2604
      %v2606 = vpop.f32.mrb[0].mxu0
      %v2607 = vpop.f32.mrb[0].mxu0
      %v2608 = vadd.f32 0.0, %v2607
      %v2609 = vpop.f32.mrb[0].mxu0
      %2610 = vmatprep.mubr.bf16.mxu0 0
      %2611 = vmatmul.mubr.bf16.gmra.mrb[0].mxu0 %v2390
      %v2612 = vpop.f32.mrb[0].mxu0
      %v2613 = vadd.f32 0.0, %v2612
      %v2614 = vpop.f32.mrb[0].mxu0
      %v2615 = vpop.f32.mrb[0].mxu0
      %v2616 = vadd.f32 0.0, %v2615
      %v2617 = vpop.f32.mrb[0].mxu0
      %2618 = vdwg.mxu0
      %v2619 = vadd.f32 %v2278, %v2493
      %v2620 = vadd.f32 %v2279, %v2496
      %v2621 = vadd.f32 %v2280, %v2501
      %v2622 = vadd.f32 %v2281, %v2504
      %v2623 = vadd.f32 %v2282, %v2509
      %v2624 = vadd.f32 %v2283, %v2512
      %v2625 = vadd.f32 %v2284, %v2517
      %v2626 = vadd.f32 %v2285, %v2520
      %v2627 = vadd.f32 %v2286, %v2525
      %v2628 = vadd.f32 %v2287, %v2528
      %v2629 = vadd.f32 %v2288, %v2533
      %v2630 = vadd.f32 %v2289, %v2536
      %v2631 = vadd.f32 %v2290, %v2541
      %v2632 = vadd.f32 %v2291, %v2544
      %v2633 = vadd.f32 %v2292, %v2549
      %v2634 = vadd.f32 %v2293, %v2552
      %v2635 = vadd.f32 %v2294, %v2557
      %v2636 = vadd.f32 %v2295, %v2560
      %v2637 = vadd.f32 %v2296, %v2565
      %v2638 = vadd.f32 %v2297, %v2568
      %v2639 = vadd.f32 %v2298, %v2573
      %v2640 = vadd.f32 %v2299, %v2576
      %v2641 = vadd.f32 %v2300, %v2581
      %v2642 = vadd.f32 %v2301, %v2584
      %v2643 = vadd.f32 %v2302, %v2589
      %v2644 = vadd.f32 %v2303, %v2592
      %v2645 = vadd.f32 %v2304, %v2597
      %v2646 = vadd.f32 %v2305, %v2600
      %v2647 = vadd.f32 %v2306, %v2605
      %v2648 = vadd.f32 %v2307, %v2608
      %v2649 = vadd.f32 %v2308, %v2613
      %v2650 = vadd.f32 %v2309, %v2616
      %s2651 = scalar_lea.vmem %s3, 448
      %v2652 = vld [vmem:[%s2651] sm:$0xf]
      %v2653 = vld [vmem:[%s2651 + $0x4] sm:$0xf]
      %v2654 = vld [vmem:[%s2651 + $0x8] sm:$0xf]
      %v2655 = vld [vmem:[%s2651 + $0xc] sm:$0xf]
      %v2656 = vld [vmem:[%s2651 + $0x10] sm:$0xf]
      %v2657 = vld [vmem:[%s2651 + $0x14] sm:$0xf]
      %v2658 = vld [vmem:[%s2651 + $0x18] sm:$0xf]
      %v2659 = vld [vmem:[%s2651 + $0x1c] sm:$0xf]
      %v2660 = vld [vmem:[%s2651 + $0x20] sm:$0xf]
      %v2661 = vld [vmem:[%s2651 + $0x24] sm:$0xf]
      %v2662 = vld [vmem:[%s2651 + $0x28] sm:$0xf]
      %v2663 = vld [vmem:[%s2651 + $0x2c] sm:$0xf]
      %v2664 = vld [vmem:[%s2651 + $0x30] sm:$0xf]
      %v2665 = vld [vmem:[%s2651 + $0x34] sm:$0xf]
      %v2666 = vld [vmem:[%s2651 + $0x38] sm:$0xf]
      %v2667 = vld [vmem:[%s2651 + $0x3c] sm:$0xf]
      %v2684 = vunpack.c.l.b16 %v2652
      %v2685 = vunpack.c.l.b16 %v2653
      %v2686 = vunpack.c.l.b16 %v2654
      %v2687 = vunpack.c.l.b16 %v2655
      %v2688 = vunpack.c.l.b16 %v2656
      %v2689 = vunpack.c.l.b16 %v2657
      %v2690 = vunpack.c.l.b16 %v2658
      %v2691 = vunpack.c.l.b16 %v2659
      %v2692 = vunpack.c.l.b16 %v2660
      %v2693 = vunpack.c.l.b16 %v2661
      %v2694 = vunpack.c.l.b16 %v2662
      %v2695 = vunpack.c.l.b16 %v2663
      %v2696 = vunpack.c.l.b16 %v2664
      %v2697 = vunpack.c.l.b16 %v2665
      %v2698 = vunpack.c.l.b16 %v2666
      %v2699 = vunpack.c.l.b16 %v2667
      %v2700 = vpack.c.b16 %v2685, %v2684
      %v2701 = vpack.c.b16 %v2687, %v2686
      %v2702 = vpack.c.b16 %v2689, %v2688
      %v2703 = vpack.c.b16 %v2691, %v2690
      %v2704 = vpack.c.b16 %v2693, %v2692
      %v2705 = vpack.c.b16 %v2695, %v2694
      %v2706 = vpack.c.b16 %v2697, %v2696
      %v2707 = vpack.c.b16 %v2699, %v2698
      %2716 = vmatprep.subr.bf16.mxu0 0
      %2717 = vmatpush1.bf16.msra.mxu0 %v2700
      %2718 = vmatprep.subr.bf16.mxu0 0
      %2719 = vmatpush1.bf16.msra.mxu0 %v2701
      %2720 = vmatprep.subr.bf16.mxu0 0
      %2721 = vmatpush1.bf16.msra.mxu0 %v2702
      %2722 = vmatprep.subr.bf16.mxu0 0
      %2723 = vmatpush1.bf16.msra.mxu0 %v2703
      %2724 = vmatprep.subr.bf16.mxu0 0
      %2725 = vmatpush1.bf16.msra.mxu0 %v2704
      %2726 = vmatprep.subr.bf16.mxu0 0
      %2727 = vmatpush1.bf16.msra.mxu0 %v2705
      %2728 = vmatprep.subr.bf16.mxu0 0
      %2729 = vmatpush1.bf16.msra.mxu0 %v2706
      %2730 = vmatprep.subr.bf16.mxu0 0
      %2731 = vmatpush1.bf16.msra.mxu0 %v2707
      %2732 = vmatprep.subr.bf16.mxu0 0
      %2733 = vmatpush1.bf16.msra.mxu0 0
      %2734 = vmatprep.subr.bf16.mxu0 0
      %2735 = vmatpush1.bf16.msra.mxu0 0
      %2736 = vmatprep.subr.bf16.mxu0 0
      %2737 = vmatpush1.bf16.msra.mxu0 0
      %2738 = vmatprep.subr.bf16.mxu0 0
      %2739 = vmatpush1.bf16.msra.mxu0 0
      %2740 = vmatprep.subr.bf16.mxu0 0
      %2741 = vmatpush1.bf16.msra.mxu0 0
      %2742 = vmatprep.subr.bf16.mxu0 0
      %2743 = vmatpush1.bf16.msra.mxu0 0
      %2744 = vmatprep.subr.bf16.mxu0 0
      %2745 = vmatpush1.bf16.msra.mxu0 0
      %2746 = vmatprep.subr.bf16.mxu0 0
      %2747 = vmatpush1.bf16.msra.mxu0 0
      %2748 = vmatprep.mubr.bf16.mxu0 0
      %2749 = vmatmul.mubr.bf16.gmra.mrb[0].mxu0 %v2319
      %v2750 = vpop.f32.mrb[0].mxu0
      %v2751 = vadd.f32 0.0, %v2750
      %v2752 = vpop.f32.mrb[0].mxu0
      %v2753 = vpop.f32.mrb[0].mxu0
      %v2754 = vadd.f32 0.0, %v2753
      %v2755 = vpop.f32.mrb[0].mxu0
      %2756 = vmatprep.mubr.bf16.mxu0 0
      %2757 = vmatmul.mubr.bf16.gmra.mrb[0].mxu0 %v2384
      %v2758 = vpop.f32.mrb[0].mxu0
      %v2759 = vadd.f32 0.0, %v2758
      %v2760 = vpop.f32.mrb[0].mxu0
      %v2761 = vpop.f32.mrb[0].mxu0
      %v2762 = vadd.f32 0.0, %v2761
      %v2763 = vpop.f32.mrb[0].mxu0
      %2764 = vmatprep.mubr.bf16.mxu0 0
      %2765 = vmatmul.mubr.bf16.gmra.mrb[0].mxu0 %v2324
      %v2766 = vpop.f32.mrb[0].mxu0
      %v2767 = vadd.f32 0.0, %v2766
      %v2768 = vpop.f32.mrb[0].mxu0
      %v2769 = vpop.f32.mrb[0].mxu0
      %v2770 = vadd.f32 0.0, %v2769
      %v2771 = vpop.f32.mrb[0].mxu0
      %2772 = vmatprep.mubr.bf16.mxu0 0
      %2773 = vmatmul.mubr.bf16.gmra.mrb[0].mxu0 %v2385
      %v2774 = vpop.f32.mrb[0].mxu0
      %v2775 = vadd.f32 0.0, %v2774
      %v2776 = vpop.f32.mrb[0].mxu0
      %v2777 = vpop.f32.mrb[0].mxu0
      %v2778 = vadd.f32 0.0, %v2777
      %v2779 = vpop.f32.mrb[0].mxu0
      %2780 = vmatprep.mubr.bf16.mxu0 0
      %2781 = vmatmul.mubr.bf16.gmra.mrb[0].mxu0 %v2329
      %v2782 = vpop.f32.mrb[0].mxu0
      %v2783 = vadd.f32 0.0, %v2782
      %v2784 = vpop.f32.mrb[0].mxu0
      %v2785 = vpop.f32.mrb[0].mxu0
      %v2786 = vadd.f32 0.0, %v2785
      %v2787 = vpop.f32.mrb[0].mxu0
      %2788 = vmatprep.mubr.bf16.mxu0 0
      %2789 = vmatmul.mubr.bf16.gmra.mrb[0].mxu0 %v2386
      %v2790 = vpop.f32.mrb[0].mxu0
      %v2791 = vadd.f32 0.0, %v2790
      %v2792 = vpop.f32.mrb[0].mxu0
      %v2793 = vpop.f32.mrb[0].mxu0
      %v2794 = vadd.f32 0.0, %v2793
      %v2795 = vpop.f32.mrb[0].mxu0
      %2796 = vmatprep.mubr.bf16.mxu0 0
      %2797 = vmatmul.mubr.bf16.gmra.mrb[0].mxu0 %v2334
      %v2798 = vpop.f32.mrb[0].mxu0
      %v2799 = vadd.f32 0.0, %v2798
      %v2800 = vpop.f32.mrb[0].mxu0
      %v2801 = vpop.f32.mrb[0].mxu0
      %v2802 = vadd.f32 0.0, %v2801
      %v2803 = vpop.f32.mrb[0].mxu0
      %2804 = vmatprep.mubr.bf16.mxu0 0
      %2805 = vmatmul.mubr.bf16.gmra.mrb[0].mxu0 %v2387
      %v2806 = vpop.f32.mrb[0].mxu0
      %v2807 = vadd.f32 0.0, %v2806
      %v2808 = vpop.f32.mrb[0].mxu0
      %v2809 = vpop.f32.mrb[0].mxu0
      %v2810 = vadd.f32 0.0, %v2809
      %v2811 = vpop.f32.mrb[0].mxu0
      %2812 = vmatprep.mubr.bf16.mxu0 0
      %2813 = vmatmul.mubr.bf16.gmra.mrb[0].mxu0 %v2339
      %v2814 = vpop.f32.mrb[0].mxu0
      %v2815 = vadd.f32 0.0, %v2814
      %v2816 = vpop.f32.mrb[0].mxu0
      %v2817 = vpop.f32.mrb[0].mxu0
      %v2818 = vadd.f32 0.0, %v2817
      %v2819 = vpop.f32.mrb[0].mxu0
      %2820 = vmatprep.mubr.bf16.mxu0 0
      %2821 = vmatmul.mubr.bf16.gmra.mrb[0].mxu0 %v2388
      %v2822 = vpop.f32.mrb[0].mxu0
      %v2823 = vadd.f32 0.0, %v2822
      %v2824 = vpop.f32.mrb[0].mxu0
      %v2825 = vpop.f32.mrb[0].mxu0
      %v2826 = vadd.f32 0.0, %v2825
      %v2827 = vpop.f32.mrb[0].mxu0
      %2828 = vmatprep.mubr.bf16.mxu0 0
      %2829 = vmatmul.mubr.bf16.gmra.mrb[0].mxu0 %v2344
      %v2830 = vpop.f32.mrb[0].mxu0
      %v2831 = vadd.f32 0.0, %v2830
      %v2832 = vpop.f32.mrb[0].mxu0
      %v2833 = vpop.f32.mrb[0].mxu0
      %v2834 = vadd.f32 0.0, %v2833
      %v2835 = vpop.f32.mrb[0].mxu0
      %2836 = vmatprep.mubr.bf16.mxu0 0
      %2837 = vmatmul.mubr.bf16.gmra.mrb[0].mxu0 %v2389
      %v2838 = vpop.f32.mrb[0].mxu0
      %v2839 = vadd.f32 0.0, %v2838
      %v2840 = vpop.f32.mrb[0].mxu0
      %v2841 = vpop.f32.mrb[0].mxu0
      %v2842 = vadd.f32 0.0, %v2841
      %v2843 = vpop.f32.mrb[0].mxu0
      %2844 = vmatprep.mubr.bf16.mxu0 0
      %2845 = vmatmul.mubr.bf16.gmra.mrb[0].mxu0 %v2349
      %v2846 = vpop.f32.mrb[0].mxu0
      %v2847 = vadd.f32 0.0, %v2846
      %v2848 = vpop.f32.mrb[0].mxu0
      %v2849 = vpop.f32.mrb[0].mxu0
      %v2850 = vadd.f32 0.0, %v2849
      %v2851 = vpop.f32.mrb[0].mxu0
      %2852 = vmatprep.mubr.bf16.mxu0 0
      %2853 = vmatmul.mubr.bf16.gmra.mrb[0].mxu0 %v2390
      %v2854 = vpop.f32.mrb[0].mxu0
      %v2855 = vadd.f32 0.0, %v2854
      %v2856 = vpop.f32.mrb[0].mxu0
      %v2857 = vpop.f32.mrb[0].mxu0
      %v2858 = vadd.f32 0.0, %v2857
      %v2859 = vpop.f32.mrb[0].mxu0
      %2860 = vmatprep.mubr.bf16.mxu0 0
      %2861 = vmatmul.mubr.bf16.gmra.mrb[0].mxu0 %v2354
      %v2862 = vpop.f32.mrb[0].mxu0
      %v2863 = vadd.f32 0.0, %v2862
      %v2864 = vpop.f32.mrb[0].mxu0
      %v2865 = vpop.f32.mrb[0].mxu0
      %v2866 = vadd.f32 0.0, %v2865
      %v2867 = vpop.f32.mrb[0].mxu0
      %2868 = vmatprep.mubr.bf16.mxu0 0
      %2869 = vmatmul.mubr.bf16.gmra.mrb[0].mxu0 %v2391
      %v2870 = vpop.f32.mrb[0].mxu0
      %v2871 = vadd.f32 0.0, %v2870
      %v2872 = vpop.f32.mrb[0].mxu0
      %v2873 = vpop.f32.mrb[0].mxu0
      %v2874 = vadd.f32 0.0, %v2873
      %v2875 = vpop.f32.mrb[0].mxu0
      %2876 = vdwg.mxu0
      %v2877 = vadd.f32 %v2619, %v2751
      %v2878 = vadd.f32 %v2620, %v2754
      %v2879 = vadd.f32 %v2621, %v2759
      %v2880 = vadd.f32 %v2622, %v2762
      %v2881 = vadd.f32 %v2623, %v2767
      %v2882 = vadd.f32 %v2624, %v2770
      %v2883 = vadd.f32 %v2625, %v2775
      %v2884 = vadd.f32 %v2626, %v2778
      %v2885 = vadd.f32 %v2627, %v2783
      %v2886 = vadd.f32 %v2628, %v2786
      %v2887 = vadd.f32 %v2629, %v2791
      %v2888 = vadd.f32 %v2630, %v2794
      %v2889 = vadd.f32 %v2631, %v2799
      %v2890 = vadd.f32 %v2632, %v2802
      %v2891 = vadd.f32 %v2633, %v2807
      %v2892 = vadd.f32 %v2634, %v2810
      %v2893 = vadd.f32 %v2635, %v2815
      %v2894 = vadd.f32 %v2636, %v2818
      %v2895 = vadd.f32 %v2637, %v2823
      %v2896 = vadd.f32 %v2638, %v2826
      %v2897 = vadd.f32 %v2639, %v2831
      %v2898 = vadd.f32 %v2640, %v2834
      %v2899 = vadd.f32 %v2641, %v2839
      %v2900 = vadd.f32 %v2642, %v2842
      %v2901 = vadd.f32 %v2643, %v2847
      %v2902 = vadd.f32 %v2644, %v2850
      %v2903 = vadd.f32 %v2645, %v2855
      %v2904 = vadd.f32 %v2646, %v2858
      %v2905 = vadd.f32 %v2647, %v2863
      %v2906 = vadd.f32 %v2648, %v2866
      %v2907 = vadd.f32 %v2649, %v2871
      %v2908 = vadd.f32 %v2650, %v2874
      %s2909 = scalar_lea.vmem %s3, 512
      %v2910 = vld [vmem:[%s2909] sm:$0xf]
      %v2911 = vld [vmem:[%s2909 + $0x4] sm:$0xf]
      %v2912 = vld [vmem:[%s2909 + $0x8] sm:$0xf]
      %v2913 = vld [vmem:[%s2909 + $0xc] sm:$0xf]
      %v2914 = vld [vmem:[%s2909 + $0x10] sm:$0xf]
      %v2915 = vld [vmem:[%s2909 + $0x14] sm:$0xf]
      %v2916 = vld [vmem:[%s2909 + $0x18] sm:$0xf]
      %v2917 = vld [vmem:[%s2909 + $0x1c] sm:$0xf]
      %v2918 = vld [vmem:[%s2909 + $0x20] sm:$0xf]
      %v2919 = vld [vmem:[%s2909 + $0x24] sm:$0xf]
      %v2920 = vld [vmem:[%s2909 + $0x28] sm:$0xf]
      %v2921 = vld [vmem:[%s2909 + $0x2c] sm:$0xf]
      %v2922 = vld [vmem:[%s2909 + $0x30] sm:$0xf]
      %v2923 = vld [vmem:[%s2909 + $0x34] sm:$0xf]
      %v2924 = vld [vmem:[%s2909 + $0x38] sm:$0xf]
      %v2925 = vld [vmem:[%s2909 + $0x3c] sm:$0xf]
      %v2942 = vunpack.c.l.b16 %v2910
      %v2943 = vunpack.c.l.b16 %v2911
      %v2944 = vunpack.c.l.b16 %v2912
      %v2945 = vunpack.c.l.b16 %v2913
      %v2946 = vunpack.c.l.b16 %v2914
      %v2947 = vunpack.c.l.b16 %v2915
      %v2948 = vunpack.c.l.b16 %v2916
      %v2949 = vunpack.c.l.b16 %v2917
      %v2950 = vunpack.c.l.b16 %v2918
      %v2951 = vunpack.c.l.b16 %v2919
      %v2952 = vunpack.c.l.b16 %v2920
      %v2953 = vunpack.c.l.b16 %v2921
      %v2954 = vunpack.c.l.b16 %v2922
      %v2955 = vunpack.c.l.b16 %v2923
      %v2956 = vunpack.c.l.b16 %v2924
      %v2957 = vunpack.c.l.b16 %v2925
      %v2958 = vpack.c.b16 %v2943, %v2942
      %v2959 = vpack.c.b16 %v2945, %v2944
      %v2960 = vpack.c.b16 %v2947, %v2946
      %v2961 = vpack.c.b16 %v2949, %v2948
      %v2962 = vpack.c.b16 %v2951, %v2950
      %v2963 = vpack.c.b16 %v2953, %v2952
      %v2964 = vpack.c.b16 %v2955, %v2954
      %v2965 = vpack.c.b16 %v2957, %v2956
      %2974 = vmatprep.subr.bf16.mxu0 0
      %2975 = vmatpush1.bf16.msra.mxu0 %v2958
      %2976 = vmatprep.subr.bf16.mxu0 0
      %2977 = vmatpush1.bf16.msra.mxu0 %v2959
      %2978 = vmatprep.subr.bf16.mxu0 0
      %2979 = vmatpush1.bf16.msra.mxu0 %v2960
      %2980 = vmatprep.subr.bf16.mxu0 0
      %2981 = vmatpush1.bf16.msra.mxu0 %v2961
      %2982 = vmatprep.subr.bf16.mxu0 0
      %2983 = vmatpush1.bf16.msra.mxu0 %v2962
      %2984 = vmatprep.subr.bf16.mxu0 0
      %2985 = vmatpush1.bf16.msra.mxu0 %v2963
      %2986 = vmatprep.subr.bf16.mxu0 0
      %2987 = vmatpush1.bf16.msra.mxu0 %v2964
      %2988 = vmatprep.subr.bf16.mxu0 0
      %2989 = vmatpush1.bf16.msra.mxu0 %v2965
      %2990 = vmatprep.subr.bf16.mxu0 0
      %2991 = vmatpush1.bf16.msra.mxu0 0
      %2992 = vmatprep.subr.bf16.mxu0 0
      %2993 = vmatpush1.bf16.msra.mxu0 0
      %2994 = vmatprep.subr.bf16.mxu0 0
      %2995 = vmatpush1.bf16.msra.mxu0 0
      %2996 = vmatprep.subr.bf16.mxu0 0
      %2997 = vmatpush1.bf16.msra.mxu0 0
      %2998 = vmatprep.subr.bf16.mxu0 0
      %2999 = vmatpush1.bf16.msra.mxu0 0
      %3000 = vmatprep.subr.bf16.mxu0 0
      %3001 = vmatpush1.bf16.msra.mxu0 0
      %3002 = vmatprep.subr.bf16.mxu0 0
      %3003 = vmatpush1.bf16.msra.mxu0 0
      %3004 = vmatprep.subr.bf16.mxu0 0
      %3005 = vmatpush1.bf16.msra.mxu0 0
      %3006 = vmatprep.mubr.bf16.mxu0 0
      %3007 = vmatmul.mubr.bf16.gmra.mrb[0].mxu0 %v2324
      %v3008 = vpop.f32.mrb[0].mxu0
      %v3009 = vadd.f32 0.0, %v3008
      %v3010 = vpop.f32.mrb[0].mxu0
      %v3011 = vpop.f32.mrb[0].mxu0
      %v3012 = vadd.f32 0.0, %v3011
      %v3013 = vpop.f32.mrb[0].mxu0
      %3014 = vmatprep.mubr.bf16.mxu0 0
      %3015 = vmatmul.mubr.bf16.gmra.mrb[0].mxu0 %v2385
      %v3016 = vpop.f32.mrb[0].mxu0
      %v3017 = vadd.f32 0.0, %v3016
      %v3018 = vpop.f32.mrb[0].mxu0
      %v3019 = vpop.f32.mrb[0].mxu0
      %v3020 = vadd.f32 0.0, %v3019
      %v3021 = vpop.f32.mrb[0].mxu0
      %3022 = vmatprep.mubr.bf16.mxu0 0
      %3023 = vmatmul.mubr.bf16.gmra.mrb[0].mxu0 %v2329
      %v3024 = vpop.f32.mrb[0].mxu0
      %v3025 = vadd.f32 0.0, %v3024
      %v3026 = vpop.f32.mrb[0].mxu0
      %v3027 = vpop.f32.mrb[0].mxu0
      %v3028 = vadd.f32 0.0, %v3027
      %v3029 = vpop.f32.mrb[0].mxu0
      %3030 = vmatprep.mubr.bf16.mxu0 0
      %3031 = vmatmul.mubr.bf16.gmra.mrb[0].mxu0 %v2386
      %v3032 = vpop.f32.mrb[0].mxu0
      %v3033 = vadd.f32 0.0, %v3032
      %v3034 = vpop.f32.mrb[0].mxu0
      %v3035 = vpop.f32.mrb[0].mxu0
      %v3036 = vadd.f32 0.0, %v3035
      %v3037 = vpop.f32.mrb[0].mxu0
      %3038 = vmatprep.mubr.bf16.mxu0 0
      %3039 = vmatmul.mubr.bf16.gmra.mrb[0].mxu0 %v2334
      %v3040 = vpop.f32.mrb[0].mxu0
      %v3041 = vadd.f32 0.0, %v3040
      %v3042 = vpop.f32.mrb[0].mxu0
      %v3043 = vpop.f32.mrb[0].mxu0
      %v3044 = vadd.f32 0.0, %v3043
      %v3045 = vpop.f32.mrb[0].mxu0
      %3046 = vmatprep.mubr.bf16.mxu0 0
      %3047 = vmatmul.mubr.bf16.gmra.mrb[0].mxu0 %v2387
      %v3048 = vpop.f32.mrb[0].mxu0
      %v3049 = vadd.f32 0.0, %v3048
      %v3050 = vpop.f32.mrb[0].mxu0
      %v3051 = vpop.f32.mrb[0].mxu0
      %v3052 = vadd.f32 0.0, %v3051
      %v3053 = vpop.f32.mrb[0].mxu0
      %3054 = vmatprep.mubr.bf16.mxu0 0
      %3055 = vmatmul.mubr.bf16.gmra.mrb[0].mxu0 %v2339
      %v3056 = vpop.f32.mrb[0].mxu0
      %v3057 = vadd.f32 0.0, %v3056
      %v3058 = vpop.f32.mrb[0].mxu0
      %v3059 = vpop.f32.mrb[0].mxu0
      %v3060 = vadd.f32 0.0, %v3059
      %v3061 = vpop.f32.mrb[0].mxu0
      %3062 = vmatprep.mubr.bf16.mxu0 0
      %3063 = vmatmul.mubr.bf16.gmra.mrb[0].mxu0 %v2388
      %v3064 = vpop.f32.mrb[0].mxu0
      %v3065 = vadd.f32 0.0, %v3064
      %v3066 = vpop.f32.mrb[0].mxu0
      %v3067 = vpop.f32.mrb[0].mxu0
      %v3068 = vadd.f32 0.0, %v3067
      %v3069 = vpop.f32.mrb[0].mxu0
      %3070 = vmatprep.mubr.bf16.mxu0 0
      %3071 = vmatmul.mubr.bf16.gmra.mrb[0].mxu0 %v2344
      %v3072 = vpop.f32.mrb[0].mxu0
      %v3073 = vadd.f32 0.0, %v3072
      %v3074 = vpop.f32.mrb[0].mxu0
      %v3075 = vpop.f32.mrb[0].mxu0
      %v3076 = vadd.f32 0.0, %v3075
      %v3077 = vpop.f32.mrb[0].mxu0
      %3078 = vmatprep.mubr.bf16.mxu0 0
      %3079 = vmatmul.mubr.bf16.gmra.mrb[0].mxu0 %v2389
      %v3080 = vpop.f32.mrb[0].mxu0
      %v3081 = vadd.f32 0.0, %v3080
      %v3082 = vpop.f32.mrb[0].mxu0
      %v3083 = vpop.f32.mrb[0].mxu0
      %v3084 = vadd.f32 0.0, %v3083
      %v3085 = vpop.f32.mrb[0].mxu0
      %3086 = vmatprep.mubr.bf16.mxu0 0
      %3087 = vmatmul.mubr.bf16.gmra.mrb[0].mxu0 %v2349
      %v3088 = vpop.f32.mrb[0].mxu0
      %v3089 = vadd.f32 0.0, %v3088
      %v3090 = vpop.f32.mrb[0].mxu0
      %v3091 = vpop.f32.mrb[0].mxu0
      %v3092 = vadd.f32 0.0, %v3091
      %v3093 = vpop.f32.mrb[0].mxu0
      %3094 = vmatprep.mubr.bf16.mxu0 0
      %3095 = vmatmul.mubr.bf16.gmra.mrb[0].mxu0 %v2390
      %v3096 = vpop.f32.mrb[0].mxu0
      %v3097 = vadd.f32 0.0, %v3096
      %v3098 = vpop.f32.mrb[0].mxu0
      %v3099 = vpop.f32.mrb[0].mxu0
      %v3100 = vadd.f32 0.0, %v3099
      %v3101 = vpop.f32.mrb[0].mxu0
      %3102 = vmatprep.mubr.bf16.mxu0 0
      %3103 = vmatmul.mubr.bf16.gmra.mrb[0].mxu0 %v2354
      %v3104 = vpop.f32.mrb[0].mxu0
      %v3105 = vadd.f32 0.0, %v3104
      %v3106 = vpop.f32.mrb[0].mxu0
      %v3107 = vpop.f32.mrb[0].mxu0
      %v3108 = vadd.f32 0.0, %v3107
      %v3109 = vpop.f32.mrb[0].mxu0
      %3110 = vmatprep.mubr.bf16.mxu0 0
      %3111 = vmatmul.mubr.bf16.gmra.mrb[0].mxu0 %v2391
      %v3112 = vpop.f32.mrb[0].mxu0
      %v3113 = vadd.f32 0.0, %v3112
      %v3114 = vpop.f32.mrb[0].mxu0
      %v3115 = vpop.f32.mrb[0].mxu0
      %v3116 = vadd.f32 0.0, %v3115
      %v3117 = vpop.f32.mrb[0].mxu0
      %3118 = vmatprep.mubr.bf16.mxu0 0
      %3119 = vmatmul.mubr.bf16.gmra.mrb[0].mxu0 %v2359
      %v3120 = vpop.f32.mrb[0].mxu0
      %v3121 = vadd.f32 0.0, %v3120
      %v3122 = vpop.f32.mrb[0].mxu0
      %v3123 = vpop.f32.mrb[0].mxu0
      %v3124 = vadd.f32 0.0, %v3123
      %v3125 = vpop.f32.mrb[0].mxu0
      %3126 = vmatprep.mubr.bf16.mxu0 0
      %3127 = vmatmul.mubr.bf16.gmra.mrb[0].mxu0 %v2392
      %v3128 = vpop.f32.mrb[0].mxu0
      %v3129 = vadd.f32 0.0, %v3128
      %v3130 = vpop.f32.mrb[0].mxu0
      %v3131 = vpop.f32.mrb[0].mxu0
      %v3132 = vadd.f32 0.0, %v3131
      %v3133 = vpop.f32.mrb[0].mxu0
      %3134 = vdwg.mxu0
      %v3135 = vadd.f32 %v2877, %v3009
      %v3136 = vadd.f32 %v2878, %v3012
      %v3137 = vadd.f32 %v2879, %v3017
      %v3138 = vadd.f32 %v2880, %v3020
      %v3139 = vadd.f32 %v2881, %v3025
      %v3140 = vadd.f32 %v2882, %v3028
      %v3141 = vadd.f32 %v2883, %v3033
      %v3142 = vadd.f32 %v2884, %v3036
      %v3143 = vadd.f32 %v2885, %v3041
      %v3144 = vadd.f32 %v2886, %v3044
      %v3145 = vadd.f32 %v2887, %v3049
      %v3146 = vadd.f32 %v2888, %v3052
      %v3147 = vadd.f32 %v2889, %v3057
      %v3148 = vadd.f32 %v2890, %v3060
      %v3149 = vadd.f32 %v2891, %v3065
      %v3150 = vadd.f32 %v2892, %v3068
      %v3151 = vadd.f32 %v2893, %v3073
      %v3152 = vadd.f32 %v2894, %v3076
      %v3153 = vadd.f32 %v2895, %v3081
      %v3154 = vadd.f32 %v2896, %v3084
      %v3155 = vadd.f32 %v2897, %v3089
      %v3156 = vadd.f32 %v2898, %v3092
      %v3157 = vadd.f32 %v2899, %v3097
      %v3158 = vadd.f32 %v2900, %v3100
      %v3159 = vadd.f32 %v2901, %v3105
      %v3160 = vadd.f32 %v2902, %v3108
      %v3161 = vadd.f32 %v2903, %v3113
      %v3162 = vadd.f32 %v2904, %v3116
      %v3163 = vadd.f32 %v2905, %v3121
      %v3164 = vadd.f32 %v2906, %v3124
      %v3165 = vadd.f32 %v2907, %v3129
      %v3166 = vadd.f32 %v2908, %v3132
      %v3167 = vld [vmem:[%s4] sm:$0x1]
      %v3169 = vlaneseq
      %v3170 = vshrl.u32 %v3169, 7
      %v3171 = vsub.s32 0, %v3170
      %v3172 = vrot.slane %v3167, %v3171
      %v3174 = vmul.f32 %v3135, %v3172
      %v3175 = vmul.f32 %v3136, %v3172
      %v3176 = vmul.f32 %v3137, %v3172
      %v3177 = vmul.f32 %v3138, %v3172
      %v3178 = vmul.f32 %v3139, %v3172
      %v3179 = vmul.f32 %v3140, %v3172
      %v3180 = vmul.f32 %v3141, %v3172
      %v3181 = vmul.f32 %v3142, %v3172
      %v3182 = vmul.f32 %v3143, %v3172
      %v3183 = vmul.f32 %v3144, %v3172
      %v3184 = vmul.f32 %v3145, %v3172
      %v3185 = vmul.f32 %v3146, %v3172
      %v3186 = vmul.f32 %v3147, %v3172
      %v3187 = vmul.f32 %v3148, %v3172
      %v3188 = vmul.f32 %v3149, %v3172
      %v3189 = vmul.f32 %v3150, %v3172
      %v3190 = vmul.f32 %v3151, %v3172
      %v3191 = vmul.f32 %v3152, %v3172
      %v3192 = vmul.f32 %v3153, %v3172
      %v3193 = vmul.f32 %v3154, %v3172
      %v3194 = vmul.f32 %v3155, %v3172
      %v3195 = vmul.f32 %v3156, %v3172
      %v3196 = vmul.f32 %v3157, %v3172
      %v3197 = vmul.f32 %v3158, %v3172
      %v3198 = vmul.f32 %v3159, %v3172
      %v3199 = vmul.f32 %v3160, %v3172
      %v3200 = vmul.f32 %v3161, %v3172
      %v3201 = vmul.f32 %v3162, %v3172
      %v3202 = vmul.f32 %v3163, %v3172
      %v3203 = vmul.f32 %v3164, %v3172
      %v3204 = vmul.f32 %v3165, %v3172
      %v3205 = vmul.f32 %v3166, %v3172
      %v3206 = vld [vmem:[%s5] sm:$0x1]
      %v3208 = vlaneseq
      %v3209 = vshrl.u32 %v3208, 7
      %v3210 = vsub.s32 0, %v3209
      %v3211 = vrot.slane %v3206, %v3210
      %v3213 = vadd.f32 %v3174, %v3211
      %v3214 = vadd.f32 %v3175, %v3211
      %v3215 = vadd.f32 %v3176, %v3211
      %v3216 = vadd.f32 %v3177, %v3211
      %v3217 = vadd.f32 %v3178, %v3211
      %v3218 = vadd.f32 %v3179, %v3211
      %v3219 = vadd.f32 %v3180, %v3211
      %v3220 = vadd.f32 %v3181, %v3211
      %v3221 = vadd.f32 %v3182, %v3211
      %v3222 = vadd.f32 %v3183, %v3211
      %v3223 = vadd.f32 %v3184, %v3211
      %v3224 = vadd.f32 %v3185, %v3211
      %v3225 = vadd.f32 %v3186, %v3211
      %v3226 = vadd.f32 %v3187, %v3211
      %v3227 = vadd.f32 %v3188, %v3211
      %v3228 = vadd.f32 %v3189, %v3211
      %v3229 = vadd.f32 %v3190, %v3211
      %v3230 = vadd.f32 %v3191, %v3211
      %v3231 = vadd.f32 %v3192, %v3211
      %v3232 = vadd.f32 %v3193, %v3211
      %v3233 = vadd.f32 %v3194, %v3211
      %v3234 = vadd.f32 %v3195, %v3211
      %v3235 = vadd.f32 %v3196, %v3211
      %v3236 = vadd.f32 %v3197, %v3211
      %v3237 = vadd.f32 %v3198, %v3211
      %v3238 = vadd.f32 %v3199, %v3211
      %v3239 = vadd.f32 %v3200, %v3211
      %v3240 = vadd.f32 %v3201, %v3211
      %v3241 = vadd.f32 %v3202, %v3211
      %v3242 = vadd.f32 %v3203, %v3211
      %v3243 = vadd.f32 %v3204, %v3211
      %v3244 = vadd.f32 %v3205, %v3211
      %v3245 = vmax.f32 %v3213, 0.0
      %v3246 = vmax.f32 %v3214, 0.0
      %v3247 = vmax.f32 %v3215, 0.0
      %v3248 = vmax.f32 %v3216, 0.0
      %v3249 = vmax.f32 %v3217, 0.0
      %v3250 = vmax.f32 %v3218, 0.0
      %v3251 = vmax.f32 %v3219, 0.0
      %v3252 = vmax.f32 %v3220, 0.0
      %v3253 = vmax.f32 %v3221, 0.0
      %v3254 = vmax.f32 %v3222, 0.0
      %v3255 = vmax.f32 %v3223, 0.0
      %v3256 = vmax.f32 %v3224, 0.0
      %v3257 = vmax.f32 %v3225, 0.0
      %v3258 = vmax.f32 %v3226, 0.0
      %v3259 = vmax.f32 %v3227, 0.0
      %v3260 = vmax.f32 %v3228, 0.0
      %v3261 = vmax.f32 %v3229, 0.0
      %v3262 = vmax.f32 %v3230, 0.0
      %v3263 = vmax.f32 %v3231, 0.0
      %v3264 = vmax.f32 %v3232, 0.0
      %v3265 = vmax.f32 %v3233, 0.0
      %v3266 = vmax.f32 %v3234, 0.0
      %v3267 = vmax.f32 %v3235, 0.0
      %v3268 = vmax.f32 %v3236, 0.0
      %v3269 = vmax.f32 %v3237, 0.0
      %v3270 = vmax.f32 %v3238, 0.0
      %v3271 = vmax.f32 %v3239, 0.0
      %v3272 = vmax.f32 %v3240, 0.0
      %v3273 = vmax.f32 %v3241, 0.0
      %v3274 = vmax.f32 %v3242, 0.0
      %v3275 = vmax.f32 %v3243, 0.0
      %v3276 = vmax.f32 %v3244, 0.0
      %v3277 = vpack.c.bf16 %v3246, %v3245
      %v3278 = vpack.c.bf16 %v3248, %v3247
      %v3279 = vpack.c.bf16 %v3250, %v3249
      %v3280 = vpack.c.bf16 %v3252, %v3251
      %v3281 = vpack.c.bf16 %v3254, %v3253
      %v3282 = vpack.c.bf16 %v3256, %v3255
      %v3283 = vpack.c.bf16 %v3258, %v3257
      %v3284 = vpack.c.bf16 %v3260, %v3259
      %v3285 = vpack.c.bf16 %v3262, %v3261
      %v3286 = vpack.c.bf16 %v3264, %v3263
      %v3287 = vpack.c.bf16 %v3266, %v3265
      %v3288 = vpack.c.bf16 %v3268, %v3267
      %v3289 = vpack.c.bf16 %v3270, %v3269
      %v3290 = vpack.c.bf16 %v3272, %v3271
      %v3291 = vpack.c.bf16 %v3274, %v3273
      %v3292 = vpack.c.bf16 %v3276, %v3275
      %v3309 = vunpack.c.l.b16 %v3277
      %v3310 = vunpack.c.h.b16 %v3277
      %v3311 = vunpack.c.l.b16 %v3278
      %v3312 = vunpack.c.h.b16 %v3278
      %v3313 = vunpack.c.l.b16 %v3279
      %v3314 = vunpack.c.h.b16 %v3279
      %v3315 = vunpack.c.l.b16 %v3280
      %v3316 = vunpack.c.h.b16 %v3280
      %v3317 = vunpack.c.l.b16 %v3281
      %v3318 = vunpack.c.h.b16 %v3281
      %v3319 = vunpack.c.l.b16 %v3282
      %v3320 = vunpack.c.h.b16 %v3282
      %v3321 = vunpack.c.l.b16 %v3283
      %v3322 = vunpack.c.h.b16 %v3283
      %v3323 = vunpack.c.l.b16 %v3284
      %v3324 = vunpack.c.h.b16 %v3284
      %v3325 = vunpack.c.l.b16 %v3285
      %v3326 = vunpack.c.h.b16 %v3285
      %v3327 = vunpack.c.l.b16 %v3286
      %v3328 = vunpack.c.h.b16 %v3286
      %v3329 = vunpack.c.l.b16 %v3287
      %v3330 = vunpack.c.h.b16 %v3287
      %v3331 = vunpack.c.l.b16 %v3288
      %v3332 = vunpack.c.h.b16 %v3288
      %v3333 = vunpack.c.l.b16 %v3289
      %v3334 = vunpack.c.h.b16 %v3289
      %v3335 = vunpack.c.l.b16 %v3290
      %v3336 = vunpack.c.h.b16 %v3290
      %v3337 = vunpack.c.l.b16 %v3291
      %v3338 = vunpack.c.h.b16 %v3291
      %v3339 = vunpack.c.l.b16 %v3292
      %v3340 = vunpack.c.h.b16 %v3292
      %v3341 = vpack.c.b16 %v3309, %v3309
      %v3342 = vpack.c.b16 %v3310, %v3310
      %v3343 = vpack.c.b16 %v3311, %v3311
      %v3344 = vpack.c.b16 %v3312, %v3312
      %v3345 = vpack.c.b16 %v3313, %v3313
      %v3346 = vpack.c.b16 %v3314, %v3314
      %v3347 = vpack.c.b16 %v3315, %v3315
      %v3348 = vpack.c.b16 %v3316, %v3316
      %v3349 = vpack.c.b16 %v3317, %v3317
      %v3350 = vpack.c.b16 %v3318, %v3318
      %v3351 = vpack.c.b16 %v3319, %v3319
      %v3352 = vpack.c.b16 %v3320, %v3320
      %v3353 = vpack.c.b16 %v3321, %v3321
      %v3354 = vpack.c.b16 %v3322, %v3322
      %v3355 = vpack.c.b16 %v3323, %v3323
      %v3356 = vpack.c.b16 %v3324, %v3324
      %v3357 = vpack.c.b16 %v3325, %v3325
      %v3358 = vpack.c.b16 %v3326, %v3326
      %v3359 = vpack.c.b16 %v3327, %v3327
      %v3360 = vpack.c.b16 %v3328, %v3328
      %v3361 = vpack.c.b16 %v3329, %v3329
      %v3362 = vpack.c.b16 %v3330, %v3330
      %v3363 = vpack.c.b16 %v3331, %v3331
      %v3364 = vpack.c.b16 %v3332, %v3332
      %v3365 = vpack.c.b16 %v3333, %v3333
      %v3366 = vpack.c.b16 %v3334, %v3334
      %v3367 = vpack.c.b16 %v3335, %v3335
      %v3368 = vpack.c.b16 %v3336, %v3336
      %v3369 = vpack.c.b16 %v3337, %v3337
      %v3370 = vpack.c.b16 %v3338, %v3338
      %v3371 = vpack.c.b16 %v3339, %v3339
      %v3372 = vpack.c.b16 %v3340, %v3340
      %3405 = vst [vmem:[%s418] sm:$0xf] %v3341
      %3406 = vst [vmem:[%s418 + $0x4] sm:$0xf] %v3342
      %3407 = vst [vmem:[%s418 + $0x8] sm:$0xf] %v3343
      %3408 = vst [vmem:[%s418 + $0xc] sm:$0xf] %v3344
      %3409 = vst [vmem:[%s418 + $0x10] sm:$0xf] %v3345
      %3410 = vst [vmem:[%s418 + $0x14] sm:$0xf] %v3346
      %3411 = vst [vmem:[%s418 + $0x18] sm:$0xf] %v3347
      %3412 = vst [vmem:[%s418 + $0x1c] sm:$0xf] %v3348
      %3413 = vst [vmem:[%s418 + $0x20] sm:$0xf] %v3349
      %3414 = vst [vmem:[%s418 + $0x24] sm:$0xf] %v3350
      %3415 = vst [vmem:[%s418 + $0x28] sm:$0xf] %v3351
      %3416 = vst [vmem:[%s418 + $0x2c] sm:$0xf] %v3352
      %3417 = vst [vmem:[%s418 + $0x30] sm:$0xf] %v3353
      %3418 = vst [vmem:[%s418 + $0x34] sm:$0xf] %v3354
      %3419 = vst [vmem:[%s418 + $0x38] sm:$0xf] %v3355
      %3420 = vst [vmem:[%s418 + $0x3c] sm:$0xf] %v3356
      %3421 = vst [vmem:[%s418 + $0x40] sm:$0xf] %v3357
      %3422 = vst [vmem:[%s418 + $0x44] sm:$0xf] %v3358
      %3423 = vst [vmem:[%s418 + $0x48] sm:$0xf] %v3359
      %3424 = vst [vmem:[%s418 + $0x4c] sm:$0xf] %v3360
      %3425 = vst [vmem:[%s418 + $0x50] sm:$0xf] %v3361
      %3426 = vst [vmem:[%s418 + $0x54] sm:$0xf] %v3362
      %3427 = vst [vmem:[%s418 + $0x58] sm:$0xf] %v3363
      %3428 = vst [vmem:[%s418 + $0x5c] sm:$0xf] %v3364
      %3429 = vst [vmem:[%s418 + $0x60] sm:$0xf] %v3365
      %3430 = vst [vmem:[%s418 + $0x64] sm:$0xf] %v3366
      %3431 = vst [vmem:[%s418 + $0x68] sm:$0xf] %v3367
      %3432 = vst [vmem:[%s418 + $0x6c] sm:$0xf] %v3368
      %3433 = vst [vmem:[%s418 + $0x70] sm:$0xf] %v3369
      %3434 = vst [vmem:[%s418 + $0x74] sm:$0xf] %v3370
      %3435 = vst [vmem:[%s418 + $0x78] sm:$0xf] %v3371
      %3436 = vst [vmem:[%s418 + $0x7c] sm:$0xf] %v3372
      %s3437 = smul.u32 8, %s22
      %p3438 = scmp.lt.s32.totalorder %s21, 1
      %s3439 = scalar_select %p3438, %s21, 1
      %p3440 = scmp.lt.s32.totalorder %s3437, 31
      %s3441 = scalar_select %p3440, %s3437, 31
      %s3442 = smul.addr %s3441, 4
      %s3443 = smul.addr %s3439, 128
      %s3444 = sadd.s32 %s3442, %s3443
      %s3445 = smul.addr %s3444, 4
      %s3446 = scalar_lea.vmem %s6, %s3445
      // Predicated region
      $region61: #{decoder_block_forward.5} parent=43 // pred_check
        %p3447 = pneg %p212
      $region62: #{decoder_block_forward.5} parent=43 // pred_check_branch
        %3449 = sbr.rel (%p3447) target = $region64
      $region63: #{decoder_block_forward.5} parent=43 // pred_region
        %s3450 = smul.u32 8, %s22
      $region64: #{decoder_block_forward.5} parent=43 // pred_fallthru
        _
    $region44: #{decoder_block_forward.5} parent=5 // pred_fallthru
      _
    %p3451 = scmp.le.s32.totalorder 2, %s12
    // Predicated region
    $region65: #{decoder_block_forward.5} parent=5 // pred_check
      %p3452 = pneg %p3451
    $region66: #{decoder_block_forward.5} parent=5 // pred_check_branch
      %3454 = sbr.rel (%p3452) target = $region68
    $region67: #{decoder_block_forward.5} parent=5 // pred_region
      %s3455 = ssub.s32 %s12, 2
      // Predicated region
      $region69: #{decoder_block_forward.5} parent=67 // pred_check
        %p3456 = pneg %p218
      $region70: #{decoder_block_forward.5} parent=67 // pred_check_branch
        %3458 = sbr.rel (%p3456) target = $region72
      $region71: #{decoder_block_forward.5} parent=67 // pred_region
        %s3459 = smul.u32 8, %s24
        %p3460 = scmp.lt.s32.totalorder %s23, 1
        %s3461 = scalar_select %p3460, %s23, 1
        %p3462 = scmp.lt.s32.totalorder %s3459, 31
        %s3463 = scalar_select %p3462, %s3459, 31
        %s3464 = smul.addr %s3463, 4
        %s3465 = smul.addr %s3461, 128
        %s3466 = sadd.s32 %s3464, %s3465
        %s3467 = smul.addr %s3466, 4
        %s3468 = scalar_lea.vmem %s6, %s3467
      $region72: #{decoder_block_forward.5} parent=67 // pred_fallthru
        _
    $region68: #{decoder_block_forward.5} parent=5 // pred_fallthru
      _
  $region6: #{decoder_block_forward.5} parent=0 // loop_footer
    %s16 = sadd.s32 1, %s12
  $region7: #{decoder_block_forward.5} parent=0 // loop_footer_branch
    %11 = sbr.rel target = $region3
  $region8: #{decoder_block_forward.5} parent=0 // loop_exit
    _

</llo_original>
